<compile_context>
chip_gen: v7x
topology: tpu7x:2x2x1
jax: 0.10.0
libtpu: 0.0.40
codegen_flags: <defaults>
</compile_context>

<pallas_src>
import functools

import numpy as np
import jax
import jax.numpy as jnp
from jax import lax
from jax.experimental import pallas as pl
from jax.experimental.pallas import tpu as pltpu

F_HIDDEN = 4   # colorizer hidden channels `f`
K_SIZE = 3     # conv kernel size `k`
EMB = 32       # synthetic classifier embedding size


# ---------------------------------------------------------------------------
# Host-side helper: 'same'-padding validity masks for each (kh, kw) tap,
# in the flattened (h*W + w) lane layout.  Precomputed once (tiny), passed in.
# ---------------------------------------------------------------------------
def _build_window_masks(H, W, k):
    P = k // 2
    yy, xx = np.meshgrid(np.arange(H), np.arange(W), indexing="ij")
    masks = np.zeros((k * k, H * W), np.float32)
    for kh in range(k):
        for kw in range(k):
            dh, dw = kh - P, kw - P
            valid = ((yy + dh >= 0) & (yy + dh < H) &
                     (xx + dw >= 0) & (xx + dw < W))
            masks[kh * k + kw] = valid.astype(np.float32).reshape(-1)
    return jnp.asarray(masks)


# ---------------------------------------------------------------------------
# Fused kernel: x/255 -> conv(1->f) -> ReLU -> conv(f->3) -> sigmoid
#               -> + skip -> flatten -> linear (synthetic classifier head)
# One grid step = one batch block of BLK images, each a lane-dense (H*W,) row.
# ---------------------------------------------------------------------------
def fused_region_kernel(x_ref, masks_ref, w1_ref, b1_ref, w2_ref, b2_ref,
                        wc_ref, bc_ref, out_ref, *, H, W, f, k):
    HW = H * W
    P = k // 2
    dmax = P * W + P                       # max |lane shift| of a (k,k) window
    BLK = x_ref.shape[0]

    xs = x_ref[...] * jnp.float32(1.0 / 255.0)        # (BLK, HW)
    masks = masks_ref[...]                             # (k*k, HW)
    zpad = jnp.zeros((BLK, dmax), jnp.float32)

    def windows(v):
        # All k*k shifted+masked views of v (BLK, HW).  Computed once per
        # input channel and reused for every output channel.
        vpad = jnp.concatenate([zpad, v, zpad], axis=1)   # (BLK, HW + 2*dmax)
        outs = []
        for kh in range(k):
            for kw in range(k):
                d = (kh - P) * W + (kw - P)
                if d == 0:
                    outs.append(v)                        # center tap: no mask
                else:
                    sl = vpad[:, dmax + d: dmax + d + HW]
                    outs.append(sl * masks[kh * k + kw: kh * k + kw + 1, :])
        return outs

    # ---- conv1 (1 -> f), 'same' padding, + ReLU ---------------------------
    xwin = windows(xs)
    hs = []
    for co in range(f):
        acc = jnp.full((BLK, HW), b1_ref[0, co], dtype=jnp.float32)
        for idx in range(k * k):
            acc = acc + w1_ref[co, idx] * xwin[idx]
        hs.append(jnp.maximum(acc, 0.0))

    # ---- conv2 (f -> 3), 'same' padding, + sigmoid + skip connection ------
    accs = [jnp.full((BLK, HW), b2_ref[0, co], dtype=jnp.float32)
            for co in range(3)]
    for ci in range(f):
        hwin = windows(hs[ci])             # shifted once, shared by 3 outputs
        for idx in range(k * k):
            win = hwin[idx]
            for co in range(3):
                accs[co] = accs[co] + w2_ref[co, ci * k * k + idx] * win

    rgb = [jax.nn.sigmoid(a) + xs for a in accs]       # skip: + x/255 each ch

    # ---- fused synthetic classifier head (flatten + linear, on the MXU) ---
    rgb_flat = jnp.concatenate(rgb, axis=1)            # (BLK, 3*HW) lane-dense
    out_ref[...] = (jnp.dot(rgb_flat, wc_ref[...],
                            preferred_element_type=jnp.float32)
                    + bc_ref[...])


# ---------------------------------------------------------------------------
# Wrapper
# ---------------------------------------------------------------------------
def region_model_forward(x, w1, b1, w2, b2, wc, bc, *, k):
    B, C, H, W = x.shape
    assert C == 1
    f = w1.shape[0]
    HW = H * W
    emb = wc.shape[1]

    # Batch block: multiple of 8 sublanes, at most 32 images per grid step.
    BLK = min(32, max(8, ((B + 7) // 8) * 8))
    Bp = ((B + BLK - 1) // BLK) * BLK

    x_flat = x.reshape(B, HW)              # lane-dense spatial layout (free)
    if Bp != B:
        x_flat = jnp.pad(x_flat, ((0, Bp - B), (0, 0)))

    masks = _build_window_masks(H, W, k)
    w1f = w1.reshape(f, k * k)
    w2f = w2.reshape(3, f * k * k)
    b1r = b1.reshape(1, f)
    b2r = b2.reshape(1, 3)
    bcr = bc.reshape(1, emb)

    smem = pl.BlockSpec(memory_space=pltpu.MemorySpace.SMEM)
    kern = functools.partial(fused_region_kernel, H=H, W=W, f=f, k=k)

    # TODO(synk): for non-toy H*W, tile the classifier reduction axis (3*H*W)
    # and the spatial dim so the resident wc block fits v7x's 64 MiB VMEM; at
    # these sizes (wc ~96 KB, masks ~9 KB) the default VMEM limit is ample.
    out = pl.pallas_call(
        kern,
        out_shape=jax.ShapeDtypeStruct((Bp, emb), jnp.float32),
        grid_spec=pltpu.PrefetchScalarGridSpec(
            num_scalar_prefetch=0,
            grid=(Bp // BLK,),
            in_specs=[
                pl.BlockSpec((BLK, HW), lambda b: (b, 0)),       # x block
                pl.BlockSpec((k * k, HW), lambda b: (0, 0)),     # masks (resident)
                smem, smem, smem, smem,                          # conv weights
                pl.BlockSpec((3 * HW, emb), lambda b: (0, 0)),   # wc (resident)
                pl.BlockSpec((1, emb), lambda b: (0, 0)),        # bc (resident)
            ],
            out_specs=pl.BlockSpec((BLK, emb), lambda b: (b, 0)),
        ),
        compiler_params=pltpu.CompilerParams(
            dimension_semantics=("parallel",)),
    )(x_flat, masks, w1f, b1r, w2f, b2r, wc, bcr)
    return out[:B]


# ---------------------------------------------------------------------------
# Pure-JAX reference for correctness checking
# ---------------------------------------------------------------------------
def ref_forward(x, w1, b1, w2, b2, wc, bc):
    xs = x / 255.0
    h = lax.conv_general_dilated(
        xs, w1, (1, 1), "SAME",
        dimension_numbers=("NCHW", "OIHW", "NCHW"),
        precision=lax.Precision.HIGHEST)
    h = jnp.maximum(h + b1.reshape(1, -1, 1, 1), 0.0)
    r = lax.conv_general_dilated(
        h, w2, (1, 1), "SAME",
        dimension_numbers=("NCHW", "OIHW", "NCHW"),
        precision=lax.Precision.HIGHEST)
    r = jax.nn.sigmoid(r + b2.reshape(1, -1, 1, 1))
    rgb = r + jnp.concatenate([xs, xs, xs], axis=1)
    flat = rgb.reshape(rgb.shape[0], -1)
    return jnp.dot(flat, wc, precision=lax.Precision.HIGHEST) + bc[None, :]


if __name__ == "__main__":
    B, H, W = 2, 16, 16
    f, k = F_HIDDEN, K_SIZE

    key = jax.random.PRNGKey(0)
    kx, k1, k2, k3, k4, k5, k6 = jax.random.split(key, 7)

    x = jax.random.uniform(kx, (B, 1, H, W), jnp.float32, 0.0, 255.0)
    w1 = jax.random.normal(k1, (f, 1, k, k), jnp.float32) * 0.1
    b1 = jax.random.normal(k2, (f,), jnp.float32) * 0.1
    w2 = jax.random.normal(k3, (3, f, k, k), jnp.float32) * 0.1
    b2 = jax.random.normal(k4, (3,), jnp.float32) * 0.1
    wc = jax.random.normal(k5, (3 * H * W, EMB), jnp.float32) * 0.05
    bc = jax.random.normal(k6, (EMB,), jnp.float32) * 0.05

    feats = region_model_forward(x, w1, b1, w2, b2, wc, bc, k=k)
    feats = jax.block_until_ready(feats)

    ref = ref_forward(x, w1, b1, w2, b2, wc, bc)
    assert feats.shape == (B, EMB), feats.shape
    err = float(jnp.max(jnp.abs(feats - ref)))
    assert jnp.allclose(feats, ref, atol=1e-3, rtol=1e-3), f"max abs err {err}"

    print("KERNEL_OK")
</pallas_src>

<mosaic_0001>
module attributes {stable_mosaic.version = 11 : i64} {
  func.func @fused_region_kernel(%arg0: i32, %arg1: memref<8x256xf32, #tpu.memory_space<vmem>>, %arg2: memref<9x256xf32, #tpu.memory_space<vmem>>, %arg3: memref<4x9xf32, #tpu.memory_space<smem>>, %arg4: memref<1x4xf32, #tpu.memory_space<smem>>, %arg5: memref<3x36xf32, #tpu.memory_space<smem>>, %arg6: memref<1x3xf32, #tpu.memory_space<smem>>, %arg7: memref<768x32xf32, #tpu.memory_space<vmem>>, %arg8: memref<1x32xf32, #tpu.memory_space<vmem>>, %arg9: memref<8x32xf32, #tpu.memory_space<vmem>>) attributes {dimension_semantics = [#tpu.dimension_semantics<parallel>], iteration_bounds = array<i64: 1>, scalar_prefetch = 0 : i64, scratch_operands = 0 : i64, tpu.core_type = #tpu.core_type<tc>, window_params = [{transform_indices = @transform_0, window_bounds = array<i64: 8, 256>}, {pipeline_mode = #tpu.pipeline_mode<synchronous>, transform_indices = @transform_1, window_bounds = array<i64: 9, 256>}, {transform_indices = @transform_2, window_bounds = array<i64: 4, 9>}, {transform_indices = @transform_3, window_bounds = array<i64: 1, 4>}, {transform_indices = @transform_4, window_bounds = array<i64: 3, 36>}, {transform_indices = @transform_5, window_bounds = array<i64: 1, 3>}, {pipeline_mode = #tpu.pipeline_mode<synchronous>, transform_indices = @transform_6, window_bounds = array<i64: 768, 32>}, {pipeline_mode = #tpu.pipeline_mode<synchronous>, transform_indices = @transform_7, window_bounds = array<i64: 1, 32>}, {transform_indices = @transform_8, window_bounds = array<i64: 8, 32>}]} {
    %c0 = arith.constant 0 : index
    %c0_0 = arith.constant 0 : index
    %0 = vector.load %arg1[%c0, %c0_0] : memref<8x256xf32, #tpu.memory_space<vmem>>, vector<8x256xf32>
    %cst = arith.constant 0.00392156886 : f32
    %1 = vector.broadcast %cst : f32 to vector<8x256xf32>
    %2 = arith.mulf %0, %1 : vector<8x256xf32>
    %c0_1 = arith.constant 0 : index
    %c0_2 = arith.constant 0 : index
    %3 = vector.load %arg2[%c0_1, %c0_2] : memref<9x256xf32, #tpu.memory_space<vmem>>, vector<9x256xf32>
    %cst_3 = arith.constant 0.000000e+00 : f32
    %4 = vector.broadcast %cst_3 : f32 to vector<8x17xf32>
    %5 = tpu.concatenate %4, %2, %4 in 1 : vector<8x17xf32>, vector<8x256xf32>, vector<8x17xf32> -> vector<8x290xf32>
    %6 = vector.extract_strided_slice %5 {offsets = [0, 0], sizes = [8, 256], strides = [1, 1]} : vector<8x290xf32> to vector<8x256xf32>
    %7 = vector.extract_strided_slice %3 {offsets = [0, 0], sizes = [1, 256], strides = [1, 1]} : vector<9x256xf32> to vector<1x256xf32>
    %8 = vector.broadcast %7 : vector<1x256xf32> to vector<8x256xf32>
    %9 = arith.mulf %6, %8 : vector<8x256xf32>
    %10 = vector.extract_strided_slice %5 {offsets = [0, 1], sizes = [8, 256], strides = [1, 1]} : vector<8x290xf32> to vector<8x256xf32>
    %11 = vector.extract_strided_slice %3 {offsets = [1, 0], sizes = [1, 256], strides = [1, 1]} : vector<9x256xf32> to vector<1x256xf32>
    %12 = vector.broadcast %11 : vector<1x256xf32> to vector<8x256xf32>
    %13 = arith.mulf %10, %12 : vector<8x256xf32>
    %14 = vector.extract_strided_slice %5 {offsets = [0, 2], sizes = [8, 256], strides = [1, 1]} : vector<8x290xf32> to vector<8x256xf32>
    %15 = vector.extract_strided_slice %3 {offsets = [2, 0], sizes = [1, 256], strides = [1, 1]} : vector<9x256xf32> to vector<1x256xf32>
    %16 = vector.broadcast %15 : vector<1x256xf32> to vector<8x256xf32>
    %17 = arith.mulf %14, %16 : vector<8x256xf32>
    %18 = vector.extract_strided_slice %5 {offsets = [0, 16], sizes = [8, 256], strides = [1, 1]} : vector<8x290xf32> to vector<8x256xf32>
    %19 = vector.extract_strided_slice %3 {offsets = [3, 0], sizes = [1, 256], strides = [1, 1]} : vector<9x256xf32> to vector<1x256xf32>
    %20 = vector.broadcast %19 : vector<1x256xf32> to vector<8x256xf32>
    %21 = arith.mulf %18, %20 : vector<8x256xf32>
    %22 = vector.extract_strided_slice %5 {offsets = [0, 18], sizes = [8, 256], strides = [1, 1]} : vector<8x290xf32> to vector<8x256xf32>
    %23 = vector.extract_strided_slice %3 {offsets = [5, 0], sizes = [1, 256], strides = [1, 1]} : vector<9x256xf32> to vector<1x256xf32>
    %24 = vector.broadcast %23 : vector<1x256xf32> to vector<8x256xf32>
    %25 = arith.mulf %22, %24 : vector<8x256xf32>
    %26 = vector.extract_strided_slice %5 {offsets = [0, 32], sizes = [8, 256], strides = [1, 1]} : vector<8x290xf32> to vector<8x256xf32>
    %27 = vector.extract_strided_slice %3 {offsets = [6, 0], sizes = [1, 256], strides = [1, 1]} : vector<9x256xf32> to vector<1x256xf32>
    %28 = vector.broadcast %27 : vector<1x256xf32> to vector<8x256xf32>
    %29 = arith.mulf %26, %28 : vector<8x256xf32>
    %30 = vector.extract_strided_slice %5 {offsets = [0, 33], sizes = [8, 256], strides = [1, 1]} : vector<8x290xf32> to vector<8x256xf32>
    %31 = vector.extract_strided_slice %3 {offsets = [7, 0], sizes = [1, 256], strides = [1, 1]} : vector<9x256xf32> to vector<1x256xf32>
    %32 = vector.broadcast %31 : vector<1x256xf32> to vector<8x256xf32>
    %33 = arith.mulf %30, %32 : vector<8x256xf32>
    %34 = vector.extract_strided_slice %5 {offsets = [0, 34], sizes = [8, 256], strides = [1, 1]} : vector<8x290xf32> to vector<8x256xf32>
    %35 = vector.extract_strided_slice %3 {offsets = [8, 0], sizes = [1, 256], strides = [1, 1]} : vector<9x256xf32> to vector<1x256xf32>
    %36 = vector.broadcast %35 : vector<1x256xf32> to vector<8x256xf32>
    %37 = arith.mulf %34, %36 : vector<8x256xf32>
    %c0_4 = arith.constant 0 : index
    %c0_5 = arith.constant 0 : index
    %38 = memref.load %arg4[%c0_4, %c0_5] : memref<1x4xf32, #tpu.memory_space<smem>>
    %39 = vector.broadcast %38 : f32 to vector<8x256xf32>
    %c0_6 = arith.constant 0 : index
    %c0_7 = arith.constant 0 : index
    %40 = memref.load %arg3[%c0_6, %c0_7] : memref<4x9xf32, #tpu.memory_space<smem>>
    %41 = vector.broadcast %40 : f32 to vector<8x256xf32>
    %42 = arith.mulf %41, %9 : vector<8x256xf32>
    %43 = arith.addf %39, %42 : vector<8x256xf32>
    %c0_8 = arith.constant 0 : index
    %c1 = arith.constant 1 : index
    %44 = memref.load %arg3[%c0_8, %c1] : memref<4x9xf32, #tpu.memory_space<smem>>
    %45 = vector.broadcast %44 : f32 to vector<8x256xf32>
    %46 = arith.mulf %45, %13 : vector<8x256xf32>
    %47 = arith.addf %43, %46 : vector<8x256xf32>
    %c0_9 = arith.constant 0 : index
    %c2 = arith.constant 2 : index
    %48 = memref.load %arg3[%c0_9, %c2] : memref<4x9xf32, #tpu.memory_space<smem>>
    %49 = vector.broadcast %48 : f32 to vector<8x256xf32>
    %50 = arith.mulf %49, %17 : vector<8x256xf32>
    %51 = arith.addf %47, %50 : vector<8x256xf32>
    %c0_10 = arith.constant 0 : index
    %c3 = arith.constant 3 : index
    %52 = memref.load %arg3[%c0_10, %c3] : memref<4x9xf32, #tpu.memory_space<smem>>
    %53 = vector.broadcast %52 : f32 to vector<8x256xf32>
    %54 = arith.mulf %53, %21 : vector<8x256xf32>
    %55 = arith.addf %51, %54 : vector<8x256xf32>
    %c0_11 = arith.constant 0 : index
    %c4 = arith.constant 4 : index
    %56 = memref.load %arg3[%c0_11, %c4] : memref<4x9xf32, #tpu.memory_space<smem>>
    %57 = vector.broadcast %56 : f32 to vector<8x256xf32>
    %58 = arith.mulf %57, %2 : vector<8x256xf32>
    %59 = arith.addf %55, %58 : vector<8x256xf32>
    %c0_12 = arith.constant 0 : index
    %c5 = arith.constant 5 : index
    %60 = memref.load %arg3[%c0_12, %c5] : memref<4x9xf32, #tpu.memory_space<smem>>
    %61 = vector.broadcast %60 : f32 to vector<8x256xf32>
    %62 = arith.mulf %61, %25 : vector<8x256xf32>
    %63 = arith.addf %59, %62 : vector<8x256xf32>
    %c0_13 = arith.constant 0 : index
    %c6 = arith.constant 6 : index
    %64 = memref.load %arg3[%c0_13, %c6] : memref<4x9xf32, #tpu.memory_space<smem>>
    %65 = vector.broadcast %64 : f32 to vector<8x256xf32>
    %66 = arith.mulf %65, %29 : vector<8x256xf32>
    %67 = arith.addf %63, %66 : vector<8x256xf32>
    %c0_14 = arith.constant 0 : index
    %c7 = arith.constant 7 : index
    %68 = memref.load %arg3[%c0_14, %c7] : memref<4x9xf32, #tpu.memory_space<smem>>
    %69 = vector.broadcast %68 : f32 to vector<8x256xf32>
    %70 = arith.mulf %69, %33 : vector<8x256xf32>
    %71 = arith.addf %67, %70 : vector<8x256xf32>
    %c0_15 = arith.constant 0 : index
    %c8 = arith.constant 8 : index
    %72 = memref.load %arg3[%c0_15, %c8] : memref<4x9xf32, #tpu.memory_space<smem>>
    %73 = vector.broadcast %72 : f32 to vector<8x256xf32>
    %74 = arith.mulf %73, %37 : vector<8x256xf32>
    %75 = arith.addf %71, %74 : vector<8x256xf32>
    %cst_16 = arith.constant 0.000000e+00 : f32
    %76 = vector.broadcast %cst_16 : f32 to vector<8x256xf32>
    %77 = arith.maximumf %75, %76 : vector<8x256xf32>
    %c0_17 = arith.constant 0 : index
    %c1_18 = arith.constant 1 : index
    %78 = memref.load %arg4[%c0_17, %c1_18] : memref<1x4xf32, #tpu.memory_space<smem>>
    %79 = vector.broadcast %78 : f32 to vector<8x256xf32>
    %c1_19 = arith.constant 1 : index
    %c0_20 = arith.constant 0 : index
    %80 = memref.load %arg3[%c1_19, %c0_20] : memref<4x9xf32, #tpu.memory_space<smem>>
    %81 = vector.broadcast %80 : f32 to vector<8x256xf32>
    %82 = arith.mulf %81, %9 : vector<8x256xf32>
    %83 = arith.addf %79, %82 : vector<8x256xf32>
    %c1_21 = arith.constant 1 : index
    %c1_22 = arith.constant 1 : index
    %84 = memref.load %arg3[%c1_21, %c1_22] : memref<4x9xf32, #tpu.memory_space<smem>>
    %85 = vector.broadcast %84 : f32 to vector<8x256xf32>
    %86 = arith.mulf %85, %13 : vector<8x256xf32>
    %87 = arith.addf %83, %86 : vector<8x256xf32>
    %c1_23 = arith.constant 1 : index
    %c2_24 = arith.constant 2 : index
    %88 = memref.load %arg3[%c1_23, %c2_24] : memref<4x9xf32, #tpu.memory_space<smem>>
    %89 = vector.broadcast %88 : f32 to vector<8x256xf32>
    %90 = arith.mulf %89, %17 : vector<8x256xf32>
    %91 = arith.addf %87, %90 : vector<8x256xf32>
    %c1_25 = arith.constant 1 : index
    %c3_26 = arith.constant 3 : index
    %92 = memref.load %arg3[%c1_25, %c3_26] : memref<4x9xf32, #tpu.memory_space<smem>>
    %93 = vector.broadcast %92 : f32 to vector<8x256xf32>
    %94 = arith.mulf %93, %21 : vector<8x256xf32>
    %95 = arith.addf %91, %94 : vector<8x256xf32>
    %c1_27 = arith.constant 1 : index
    %c4_28 = arith.constant 4 : index
    %96 = memref.load %arg3[%c1_27, %c4_28] : memref<4x9xf32, #tpu.memory_space<smem>>
    %97 = vector.broadcast %96 : f32 to vector<8x256xf32>
    %98 = arith.mulf %97, %2 : vector<8x256xf32>
    %99 = arith.addf %95, %98 : vector<8x256xf32>
    %c1_29 = arith.constant 1 : index
    %c5_30 = arith.constant 5 : index
    %100 = memref.load %arg3[%c1_29, %c5_30] : memref<4x9xf32, #tpu.memory_space<smem>>
    %101 = vector.broadcast %100 : f32 to vector<8x256xf32>
    %102 = arith.mulf %101, %25 : vector<8x256xf32>
    %103 = arith.addf %99, %102 : vector<8x256xf32>
    %c1_31 = arith.constant 1 : index
    %c6_32 = arith.constant 6 : index
    %104 = memref.load %arg3[%c1_31, %c6_32] : memref<4x9xf32, #tpu.memory_space<smem>>
    %105 = vector.broadcast %104 : f32 to vector<8x256xf32>
    %106 = arith.mulf %105, %29 : vector<8x256xf32>
    %107 = arith.addf %103, %106 : vector<8x256xf32>
    %c1_33 = arith.constant 1 : index
    %c7_34 = arith.constant 7 : index
    %108 = memref.load %arg3[%c1_33, %c7_34] : memref<4x9xf32, #tpu.memory_space<smem>>
    %109 = vector.broadcast %108 : f32 to vector<8x256xf32>
    %110 = arith.mulf %109, %33 : vector<8x256xf32>
    %111 = arith.addf %107, %110 : vector<8x256xf32>
    %c1_35 = arith.constant 1 : index
    %c8_36 = arith.constant 8 : index
    %112 = memref.load %arg3[%c1_35, %c8_36] : memref<4x9xf32, #tpu.memory_space<smem>>
    %113 = vector.broadcast %112 : f32 to vector<8x256xf32>
    %114 = arith.mulf %113, %37 : vector<8x256xf32>
    %115 = arith.addf %111, %114 : vector<8x256xf32>
    %cst_37 = arith.constant 0.000000e+00 : f32
    %116 = vector.broadcast %cst_37 : f32 to vector<8x256xf32>
    %117 = arith.maximumf %115, %116 : vector<8x256xf32>
    %c0_38 = arith.constant 0 : index
    %c2_39 = arith.constant 2 : index
    %118 = memref.load %arg4[%c0_38, %c2_39] : memref<1x4xf32, #tpu.memory_space<smem>>
    %119 = vector.broadcast %118 : f32 to vector<8x256xf32>
    %c2_40 = arith.constant 2 : index
    %c0_41 = arith.constant 0 : index
    %120 = memref.load %arg3[%c2_40, %c0_41] : memref<4x9xf32, #tpu.memory_space<smem>>
    %121 = vector.broadcast %120 : f32 to vector<8x256xf32>
    %122 = arith.mulf %121, %9 : vector<8x256xf32>
    %123 = arith.addf %119, %122 : vector<8x256xf32>
    %c2_42 = arith.constant 2 : index
    %c1_43 = arith.constant 1 : index
    %124 = memref.load %arg3[%c2_42, %c1_43] : memref<4x9xf32, #tpu.memory_space<smem>>
    %125 = vector.broadcast %124 : f32 to vector<8x256xf32>
    %126 = arith.mulf %125, %13 : vector<8x256xf32>
    %127 = arith.addf %123, %126 : vector<8x256xf32>
    %c2_44 = arith.constant 2 : index
    %c2_45 = arith.constant 2 : index
    %128 = memref.load %arg3[%c2_44, %c2_45] : memref<4x9xf32, #tpu.memory_space<smem>>
    %129 = vector.broadcast %128 : f32 to vector<8x256xf32>
    %130 = arith.mulf %129, %17 : vector<8x256xf32>
    %131 = arith.addf %127, %130 : vector<8x256xf32>
    %c2_46 = arith.constant 2 : index
    %c3_47 = arith.constant 3 : index
    %132 = memref.load %arg3[%c2_46, %c3_47] : memref<4x9xf32, #tpu.memory_space<smem>>
    %133 = vector.broadcast %132 : f32 to vector<8x256xf32>
    %134 = arith.mulf %133, %21 : vector<8x256xf32>
    %135 = arith.addf %131, %134 : vector<8x256xf32>
    %c2_48 = arith.constant 2 : index
    %c4_49 = arith.constant 4 : index
    %136 = memref.load %arg3[%c2_48, %c4_49] : memref<4x9xf32, #tpu.memory_space<smem>>
    %137 = vector.broadcast %136 : f32 to vector<8x256xf32>
    %138 = arith.mulf %137, %2 : vector<8x256xf32>
    %139 = arith.addf %135, %138 : vector<8x256xf32>
    %c2_50 = arith.constant 2 : index
    %c5_51 = arith.constant 5 : index
    %140 = memref.load %arg3[%c2_50, %c5_51] : memref<4x9xf32, #tpu.memory_space<smem>>
    %141 = vector.broadcast %140 : f32 to vector<8x256xf32>
    %142 = arith.mulf %141, %25 : vector<8x256xf32>
    %143 = arith.addf %139, %142 : vector<8x256xf32>
    %c2_52 = arith.constant 2 : index
    %c6_53 = arith.constant 6 : index
    %144 = memref.load %arg3[%c2_52, %c6_53] : memref<4x9xf32, #tpu.memory_space<smem>>
    %145 = vector.broadcast %144 : f32 to vector<8x256xf32>
    %146 = arith.mulf %145, %29 : vector<8x256xf32>
    %147 = arith.addf %143, %146 : vector<8x256xf32>
    %c2_54 = arith.constant 2 : index
    %c7_55 = arith.constant 7 : index
    %148 = memref.load %arg3[%c2_54, %c7_55] : memref<4x9xf32, #tpu.memory_space<smem>>
    %149 = vector.broadcast %148 : f32 to vector<8x256xf32>
    %150 = arith.mulf %149, %33 : vector<8x256xf32>
    %151 = arith.addf %147, %150 : vector<8x256xf32>
    %c2_56 = arith.constant 2 : index
    %c8_57 = arith.constant 8 : index
    %152 = memref.load %arg3[%c2_56, %c8_57] : memref<4x9xf32, #tpu.memory_space<smem>>
    %153 = vector.broadcast %152 : f32 to vector<8x256xf32>
    %154 = arith.mulf %153, %37 : vector<8x256xf32>
    %155 = arith.addf %151, %154 : vector<8x256xf32>
    %cst_58 = arith.constant 0.000000e+00 : f32
    %156 = vector.broadcast %cst_58 : f32 to vector<8x256xf32>
    %157 = arith.maximumf %155, %156 : vector<8x256xf32>
    %c0_59 = arith.constant 0 : index
    %c3_60 = arith.constant 3 : index
    %158 = memref.load %arg4[%c0_59, %c3_60] : memref<1x4xf32, #tpu.memory_space<smem>>
    %159 = vector.broadcast %158 : f32 to vector<8x256xf32>
    %c3_61 = arith.constant 3 : index
    %c0_62 = arith.constant 0 : index
    %160 = memref.load %arg3[%c3_61, %c0_62] : memref<4x9xf32, #tpu.memory_space<smem>>
    %161 = vector.broadcast %160 : f32 to vector<8x256xf32>
    %162 = arith.mulf %161, %9 : vector<8x256xf32>
    %163 = arith.addf %159, %162 : vector<8x256xf32>
    %c3_63 = arith.constant 3 : index
    %c1_64 = arith.constant 1 : index
    %164 = memref.load %arg3[%c3_63, %c1_64] : memref<4x9xf32, #tpu.memory_space<smem>>
    %165 = vector.broadcast %164 : f32 to vector<8x256xf32>
    %166 = arith.mulf %165, %13 : vector<8x256xf32>
    %167 = arith.addf %163, %166 : vector<8x256xf32>
    %c3_65 = arith.constant 3 : index
    %c2_66 = arith.constant 2 : index
    %168 = memref.load %arg3[%c3_65, %c2_66] : memref<4x9xf32, #tpu.memory_space<smem>>
    %169 = vector.broadcast %168 : f32 to vector<8x256xf32>
    %170 = arith.mulf %169, %17 : vector<8x256xf32>
    %171 = arith.addf %167, %170 : vector<8x256xf32>
    %c3_67 = arith.constant 3 : index
    %c3_68 = arith.constant 3 : index
    %172 = memref.load %arg3[%c3_67, %c3_68] : memref<4x9xf32, #tpu.memory_space<smem>>
    %173 = vector.broadcast %172 : f32 to vector<8x256xf32>
    %174 = arith.mulf %173, %21 : vector<8x256xf32>
    %175 = arith.addf %171, %174 : vector<8x256xf32>
    %c3_69 = arith.constant 3 : index
    %c4_70 = arith.constant 4 : index
    %176 = memref.load %arg3[%c3_69, %c4_70] : memref<4x9xf32, #tpu.memory_space<smem>>
    %177 = vector.broadcast %176 : f32 to vector<8x256xf32>
    %178 = arith.mulf %177, %2 : vector<8x256xf32>
    %179 = arith.addf %175, %178 : vector<8x256xf32>
    %c3_71 = arith.constant 3 : index
    %c5_72 = arith.constant 5 : index
    %180 = memref.load %arg3[%c3_71, %c5_72] : memref<4x9xf32, #tpu.memory_space<smem>>
    %181 = vector.broadcast %180 : f32 to vector<8x256xf32>
    %182 = arith.mulf %181, %25 : vector<8x256xf32>
    %183 = arith.addf %179, %182 : vector<8x256xf32>
    %c3_73 = arith.constant 3 : index
    %c6_74 = arith.constant 6 : index
    %184 = memref.load %arg3[%c3_73, %c6_74] : memref<4x9xf32, #tpu.memory_space<smem>>
    %185 = vector.broadcast %184 : f32 to vector<8x256xf32>
    %186 = arith.mulf %185, %29 : vector<8x256xf32>
    %187 = arith.addf %183, %186 : vector<8x256xf32>
    %c3_75 = arith.constant 3 : index
    %c7_76 = arith.constant 7 : index
    %188 = memref.load %arg3[%c3_75, %c7_76] : memref<4x9xf32, #tpu.memory_space<smem>>
    %189 = vector.broadcast %188 : f32 to vector<8x256xf32>
    %190 = arith.mulf %189, %33 : vector<8x256xf32>
    %191 = arith.addf %187, %190 : vector<8x256xf32>
    %c3_77 = arith.constant 3 : index
    %c8_78 = arith.constant 8 : index
    %192 = memref.load %arg3[%c3_77, %c8_78] : memref<4x9xf32, #tpu.memory_space<smem>>
    %193 = vector.broadcast %192 : f32 to vector<8x256xf32>
    %194 = arith.mulf %193, %37 : vector<8x256xf32>
    %195 = arith.addf %191, %194 : vector<8x256xf32>
    %cst_79 = arith.constant 0.000000e+00 : f32
    %196 = vector.broadcast %cst_79 : f32 to vector<8x256xf32>
    %197 = arith.maximumf %195, %196 : vector<8x256xf32>
    %c0_80 = arith.constant 0 : index
    %c0_81 = arith.constant 0 : index
    %198 = memref.load %arg6[%c0_80, %c0_81] : memref<1x3xf32, #tpu.memory_space<smem>>
    %199 = vector.broadcast %198 : f32 to vector<8x256xf32>
    %c0_82 = arith.constant 0 : index
    %c1_83 = arith.constant 1 : index
    %200 = memref.load %arg6[%c0_82, %c1_83] : memref<1x3xf32, #tpu.memory_space<smem>>
    %201 = vector.broadcast %200 : f32 to vector<8x256xf32>
    %c0_84 = arith.constant 0 : index
    %c2_85 = arith.constant 2 : index
    %202 = memref.load %arg6[%c0_84, %c2_85] : memref<1x3xf32, #tpu.memory_space<smem>>
    %203 = vector.broadcast %202 : f32 to vector<8x256xf32>
    %204 = tpu.concatenate %4, %77, %4 in 1 : vector<8x17xf32>, vector<8x256xf32>, vector<8x17xf32> -> vector<8x290xf32>
    %205 = vector.extract_strided_slice %204 {offsets = [0, 0], sizes = [8, 256], strides = [1, 1]} : vector<8x290xf32> to vector<8x256xf32>
    %206 = vector.extract_strided_slice %3 {offsets = [0, 0], sizes = [1, 256], strides = [1, 1]} : vector<9x256xf32> to vector<1x256xf32>
    %207 = vector.broadcast %206 : vector<1x256xf32> to vector<8x256xf32>
    %208 = arith.mulf %205, %207 : vector<8x256xf32>
    %209 = vector.extract_strided_slice %204 {offsets = [0, 1], sizes = [8, 256], strides = [1, 1]} : vector<8x290xf32> to vector<8x256xf32>
    %210 = vector.extract_strided_slice %3 {offsets = [1, 0], sizes = [1, 256], strides = [1, 1]} : vector<9x256xf32> to vector<1x256xf32>
    %211 = vector.broadcast %210 : vector<1x256xf32> to vector<8x256xf32>
    %212 = arith.mulf %209, %211 : vector<8x256xf32>
    %213 = vector.extract_strided_slice %204 {offsets = [0, 2], sizes = [8, 256], strides = [1, 1]} : vector<8x290xf32> to vector<8x256xf32>
    %214 = vector.extract_strided_slice %3 {offsets = [2, 0], sizes = [1, 256], strides = [1, 1]} : vector<9x256xf32> to vector<1x256xf32>
    %215 = vector.broadcast %214 : vector<1x256xf32> to vector<8x256xf32>
    %216 = arith.mulf %213, %215 : vector<8x256xf32>
    %217 = vector.extract_strided_slice %204 {offsets = [0, 16], sizes = [8, 256], strides = [1, 1]} : vector<8x290xf32> to vector<8x256xf32>
    %218 = vector.extract_strided_slice %3 {offsets = [3, 0], sizes = [1, 256], strides = [1, 1]} : vector<9x256xf32> to vector<1x256xf32>
    %219 = vector.broadcast %218 : vector<1x256xf32> to vector<8x256xf32>
    %220 = arith.mulf %217, %219 : vector<8x256xf32>
    %221 = vector.extract_strided_slice %204 {offsets = [0, 18], sizes = [8, 256], strides = [1, 1]} : vector<8x290xf32> to vector<8x256xf32>
    %222 = vector.extract_strided_slice %3 {offsets = [5, 0], sizes = [1, 256], strides = [1, 1]} : vector<9x256xf32> to vector<1x256xf32>
    %223 = vector.broadcast %222 : vector<1x256xf32> to vector<8x256xf32>
    %224 = arith.mulf %221, %223 : vector<8x256xf32>
    %225 = vector.extract_strided_slice %204 {offsets = [0, 32], sizes = [8, 256], strides = [1, 1]} : vector<8x290xf32> to vector<8x256xf32>
    %226 = vector.extract_strided_slice %3 {offsets = [6, 0], sizes = [1, 256], strides = [1, 1]} : vector<9x256xf32> to vector<1x256xf32>
    %227 = vector.broadcast %226 : vector<1x256xf32> to vector<8x256xf32>
    %228 = arith.mulf %225, %227 : vector<8x256xf32>
    %229 = vector.extract_strided_slice %204 {offsets = [0, 33], sizes = [8, 256], strides = [1, 1]} : vector<8x290xf32> to vector<8x256xf32>
    %230 = vector.extract_strided_slice %3 {offsets = [7, 0], sizes = [1, 256], strides = [1, 1]} : vector<9x256xf32> to vector<1x256xf32>
    %231 = vector.broadcast %230 : vector<1x256xf32> to vector<8x256xf32>
    %232 = arith.mulf %229, %231 : vector<8x256xf32>
    %233 = vector.extract_strided_slice %204 {offsets = [0, 34], sizes = [8, 256], strides = [1, 1]} : vector<8x290xf32> to vector<8x256xf32>
    %234 = vector.extract_strided_slice %3 {offsets = [8, 0], sizes = [1, 256], strides = [1, 1]} : vector<9x256xf32> to vector<1x256xf32>
    %235 = vector.broadcast %234 : vector<1x256xf32> to vector<8x256xf32>
    %236 = arith.mulf %233, %235 : vector<8x256xf32>
    %c0_86 = arith.constant 0 : index
    %c0_87 = arith.constant 0 : index
    %237 = memref.load %arg5[%c0_86, %c0_87] : memref<3x36xf32, #tpu.memory_space<smem>>
    %238 = vector.broadcast %237 : f32 to vector<8x256xf32>
    %239 = arith.mulf %238, %208 : vector<8x256xf32>
    %240 = arith.addf %199, %239 : vector<8x256xf32>
    %c1_88 = arith.constant 1 : index
    %c0_89 = arith.constant 0 : index
    %241 = memref.load %arg5[%c1_88, %c0_89] : memref<3x36xf32, #tpu.memory_space<smem>>
    %242 = vector.broadcast %241 : f32 to vector<8x256xf32>
    %243 = arith.mulf %242, %208 : vector<8x256xf32>
    %244 = arith.addf %201, %243 : vector<8x256xf32>
    %c2_90 = arith.constant 2 : index
    %c0_91 = arith.constant 0 : index
    %245 = memref.load %arg5[%c2_90, %c0_91] : memref<3x36xf32, #tpu.memory_space<smem>>
    %246 = vector.broadcast %245 : f32 to vector<8x256xf32>
    %247 = arith.mulf %246, %208 : vector<8x256xf32>
    %248 = arith.addf %203, %247 : vector<8x256xf32>
    %c0_92 = arith.constant 0 : index
    %c1_93 = arith.constant 1 : index
    %249 = memref.load %arg5[%c0_92, %c1_93] : memref<3x36xf32, #tpu.memory_space<smem>>
    %250 = vector.broadcast %249 : f32 to vector<8x256xf32>
    %251 = arith.mulf %250, %212 : vector<8x256xf32>
    %252 = arith.addf %240, %251 : vector<8x256xf32>
    %c1_94 = arith.constant 1 : index
    %c1_95 = arith.constant 1 : index
    %253 = memref.load %arg5[%c1_94, %c1_95] : memref<3x36xf32, #tpu.memory_space<smem>>
    %254 = vector.broadcast %253 : f32 to vector<8x256xf32>
    %255 = arith.mulf %254, %212 : vector<8x256xf32>
    %256 = arith.addf %244, %255 : vector<8x256xf32>
    %c2_96 = arith.constant 2 : index
    %c1_97 = arith.constant 1 : index
    %257 = memref.load %arg5[%c2_96, %c1_97] : memref<3x36xf32, #tpu.memory_space<smem>>
    %258 = vector.broadcast %257 : f32 to vector<8x256xf32>
    %259 = arith.mulf %258, %212 : vector<8x256xf32>
    %260 = arith.addf %248, %259 : vector<8x256xf32>
    %c0_98 = arith.constant 0 : index
    %c2_99 = arith.constant 2 : index
    %261 = memref.load %arg5[%c0_98, %c2_99] : memref<3x36xf32, #tpu.memory_space<smem>>
    %262 = vector.broadcast %261 : f32 to vector<8x256xf32>
    %263 = arith.mulf %262, %216 : vector<8x256xf32>
    %264 = arith.addf %252, %263 : vector<8x256xf32>
    %c1_100 = arith.constant 1 : index
    %c2_101 = arith.constant 2 : index
    %265 = memref.load %arg5[%c1_100, %c2_101] : memref<3x36xf32, #tpu.memory_space<smem>>
    %266 = vector.broadcast %265 : f32 to vector<8x256xf32>
    %267 = arith.mulf %266, %216 : vector<8x256xf32>
    %268 = arith.addf %256, %267 : vector<8x256xf32>
    %c2_102 = arith.constant 2 : index
    %c2_103 = arith.constant 2 : index
    %269 = memref.load %arg5[%c2_102, %c2_103] : memref<3x36xf32, #tpu.memory_space<smem>>
    %270 = vector.broadcast %269 : f32 to vector<8x256xf32>
    %271 = arith.mulf %270, %216 : vector<8x256xf32>
    %272 = arith.addf %260, %271 : vector<8x256xf32>
    %c0_104 = arith.constant 0 : index
    %c3_105 = arith.constant 3 : index
    %273 = memref.load %arg5[%c0_104, %c3_105] : memref<3x36xf32, #tpu.memory_space<smem>>
    %274 = vector.broadcast %273 : f32 to vector<8x256xf32>
    %275 = arith.mulf %274, %220 : vector<8x256xf32>
    %276 = arith.addf %264, %275 : vector<8x256xf32>
    %c1_106 = arith.constant 1 : index
    %c3_107 = arith.constant 3 : index
    %277 = memref.load %arg5[%c1_106, %c3_107] : memref<3x36xf32, #tpu.memory_space<smem>>
    %278 = vector.broadcast %277 : f32 to vector<8x256xf32>
    %279 = arith.mulf %278, %220 : vector<8x256xf32>
    %280 = arith.addf %268, %279 : vector<8x256xf32>
    %c2_108 = arith.constant 2 : index
    %c3_109 = arith.constant 3 : index
    %281 = memref.load %arg5[%c2_108, %c3_109] : memref<3x36xf32, #tpu.memory_space<smem>>
    %282 = vector.broadcast %281 : f32 to vector<8x256xf32>
    %283 = arith.mulf %282, %220 : vector<8x256xf32>
    %284 = arith.addf %272, %283 : vector<8x256xf32>
    %c0_110 = arith.constant 0 : index
    %c4_111 = arith.constant 4 : index
    %285 = memref.load %arg5[%c0_110, %c4_111] : memref<3x36xf32, #tpu.memory_space<smem>>
    %286 = vector.broadcast %285 : f32 to vector<8x256xf32>
    %287 = arith.mulf %286, %77 : vector<8x256xf32>
    %288 = arith.addf %276, %287 : vector<8x256xf32>
    %c1_112 = arith.constant 1 : index
    %c4_113 = arith.constant 4 : index
    %289 = memref.load %arg5[%c1_112, %c4_113] : memref<3x36xf32, #tpu.memory_space<smem>>
    %290 = vector.broadcast %289 : f32 to vector<8x256xf32>
    %291 = arith.mulf %290, %77 : vector<8x256xf32>
    %292 = arith.addf %280, %291 : vector<8x256xf32>
    %c2_114 = arith.constant 2 : index
    %c4_115 = arith.constant 4 : index
    %293 = memref.load %arg5[%c2_114, %c4_115] : memref<3x36xf32, #tpu.memory_space<smem>>
    %294 = vector.broadcast %293 : f32 to vector<8x256xf32>
    %295 = arith.mulf %294, %77 : vector<8x256xf32>
    %296 = arith.addf %284, %295 : vector<8x256xf32>
    %c0_116 = arith.constant 0 : index
    %c5_117 = arith.constant 5 : index
    %297 = memref.load %arg5[%c0_116, %c5_117] : memref<3x36xf32, #tpu.memory_space<smem>>
    %298 = vector.broadcast %297 : f32 to vector<8x256xf32>
    %299 = arith.mulf %298, %224 : vector<8x256xf32>
    %300 = arith.addf %288, %299 : vector<8x256xf32>
    %c1_118 = arith.constant 1 : index
    %c5_119 = arith.constant 5 : index
    %301 = memref.load %arg5[%c1_118, %c5_119] : memref<3x36xf32, #tpu.memory_space<smem>>
    %302 = vector.broadcast %301 : f32 to vector<8x256xf32>
    %303 = arith.mulf %302, %224 : vector<8x256xf32>
    %304 = arith.addf %292, %303 : vector<8x256xf32>
    %c2_120 = arith.constant 2 : index
    %c5_121 = arith.constant 5 : index
    %305 = memref.load %arg5[%c2_120, %c5_121] : memref<3x36xf32, #tpu.memory_space<smem>>
    %306 = vector.broadcast %305 : f32 to vector<8x256xf32>
    %307 = arith.mulf %306, %224 : vector<8x256xf32>
    %308 = arith.addf %296, %307 : vector<8x256xf32>
    %c0_122 = arith.constant 0 : index
    %c6_123 = arith.constant 6 : index
    %309 = memref.load %arg5[%c0_122, %c6_123] : memref<3x36xf32, #tpu.memory_space<smem>>
    %310 = vector.broadcast %309 : f32 to vector<8x256xf32>
    %311 = arith.mulf %310, %228 : vector<8x256xf32>
    %312 = arith.addf %300, %311 : vector<8x256xf32>
    %c1_124 = arith.constant 1 : index
    %c6_125 = arith.constant 6 : index
    %313 = memref.load %arg5[%c1_124, %c6_125] : memref<3x36xf32, #tpu.memory_space<smem>>
    %314 = vector.broadcast %313 : f32 to vector<8x256xf32>
    %315 = arith.mulf %314, %228 : vector<8x256xf32>
    %316 = arith.addf %304, %315 : vector<8x256xf32>
    %c2_126 = arith.constant 2 : index
    %c6_127 = arith.constant 6 : index
    %317 = memref.load %arg5[%c2_126, %c6_127] : memref<3x36xf32, #tpu.memory_space<smem>>
    %318 = vector.broadcast %317 : f32 to vector<8x256xf32>
    %319 = arith.mulf %318, %228 : vector<8x256xf32>
    %320 = arith.addf %308, %319 : vector<8x256xf32>
    %c0_128 = arith.constant 0 : index
    %c7_129 = arith.constant 7 : index
    %321 = memref.load %arg5[%c0_128, %c7_129] : memref<3x36xf32, #tpu.memory_space<smem>>
    %322 = vector.broadcast %321 : f32 to vector<8x256xf32>
    %323 = arith.mulf %322, %232 : vector<8x256xf32>
    %324 = arith.addf %312, %323 : vector<8x256xf32>
    %c1_130 = arith.constant 1 : index
    %c7_131 = arith.constant 7 : index
    %325 = memref.load %arg5[%c1_130, %c7_131] : memref<3x36xf32, #tpu.memory_space<smem>>
    %326 = vector.broadcast %325 : f32 to vector<8x256xf32>
    %327 = arith.mulf %326, %232 : vector<8x256xf32>
    %328 = arith.addf %316, %327 : vector<8x256xf32>
    %c2_132 = arith.constant 2 : index
    %c7_133 = arith.constant 7 : index
    %329 = memref.load %arg5[%c2_132, %c7_133] : memref<3x36xf32, #tpu.memory_space<smem>>
    %330 = vector.broadcast %329 : f32 to vector<8x256xf32>
    %331 = arith.mulf %330, %232 : vector<8x256xf32>
    %332 = arith.addf %320, %331 : vector<8x256xf32>
    %c0_134 = arith.constant 0 : index
    %c8_135 = arith.constant 8 : index
    %333 = memref.load %arg5[%c0_134, %c8_135] : memref<3x36xf32, #tpu.memory_space<smem>>
    %334 = vector.broadcast %333 : f32 to vector<8x256xf32>
    %335 = arith.mulf %334, %236 : vector<8x256xf32>
    %336 = arith.addf %324, %335 : vector<8x256xf32>
    %c1_136 = arith.constant 1 : index
    %c8_137 = arith.constant 8 : index
    %337 = memref.load %arg5[%c1_136, %c8_137] : memref<3x36xf32, #tpu.memory_space<smem>>
    %338 = vector.broadcast %337 : f32 to vector<8x256xf32>
    %339 = arith.mulf %338, %236 : vector<8x256xf32>
    %340 = arith.addf %328, %339 : vector<8x256xf32>
    %c2_138 = arith.constant 2 : index
    %c8_139 = arith.constant 8 : index
    %341 = memref.load %arg5[%c2_138, %c8_139] : memref<3x36xf32, #tpu.memory_space<smem>>
    %342 = vector.broadcast %341 : f32 to vector<8x256xf32>
    %343 = arith.mulf %342, %236 : vector<8x256xf32>
    %344 = arith.addf %332, %343 : vector<8x256xf32>
    %345 = tpu.concatenate %4, %117, %4 in 1 : vector<8x17xf32>, vector<8x256xf32>, vector<8x17xf32> -> vector<8x290xf32>
    %346 = vector.extract_strided_slice %345 {offsets = [0, 0], sizes = [8, 256], strides = [1, 1]} : vector<8x290xf32> to vector<8x256xf32>
    %347 = vector.extract_strided_slice %3 {offsets = [0, 0], sizes = [1, 256], strides = [1, 1]} : vector<9x256xf32> to vector<1x256xf32>
    %348 = vector.broadcast %347 : vector<1x256xf32> to vector<8x256xf32>
    %349 = arith.mulf %346, %348 : vector<8x256xf32>
    %350 = vector.extract_strided_slice %345 {offsets = [0, 1], sizes = [8, 256], strides = [1, 1]} : vector<8x290xf32> to vector<8x256xf32>
    %351 = vector.extract_strided_slice %3 {offsets = [1, 0], sizes = [1, 256], strides = [1, 1]} : vector<9x256xf32> to vector<1x256xf32>
    %352 = vector.broadcast %351 : vector<1x256xf32> to vector<8x256xf32>
    %353 = arith.mulf %350, %352 : vector<8x256xf32>
    %354 = vector.extract_strided_slice %345 {offsets = [0, 2], sizes = [8, 256], strides = [1, 1]} : vector<8x290xf32> to vector<8x256xf32>
    %355 = vector.extract_strided_slice %3 {offsets = [2, 0], sizes = [1, 256], strides = [1, 1]} : vector<9x256xf32> to vector<1x256xf32>
    %356 = vector.broadcast %355 : vector<1x256xf32> to vector<8x256xf32>
    %357 = arith.mulf %354, %356 : vector<8x256xf32>
    %358 = vector.extract_strided_slice %345 {offsets = [0, 16], sizes = [8, 256], strides = [1, 1]} : vector<8x290xf32> to vector<8x256xf32>
    %359 = vector.extract_strided_slice %3 {offsets = [3, 0], sizes = [1, 256], strides = [1, 1]} : vector<9x256xf32> to vector<1x256xf32>
    %360 = vector.broadcast %359 : vector<1x256xf32> to vector<8x256xf32>
    %361 = arith.mulf %358, %360 : vector<8x256xf32>
    %362 = vector.extract_strided_slice %345 {offsets = [0, 18], sizes = [8, 256], strides = [1, 1]} : vector<8x290xf32> to vector<8x256xf32>
    %363 = vector.extract_strided_slice %3 {offsets = [5, 0], sizes = [1, 256], strides = [1, 1]} : vector<9x256xf32> to vector<1x256xf32>
    %364 = vector.broadcast %363 : vector<1x256xf32> to vector<8x256xf32>
    %365 = arith.mulf %362, %364 : vector<8x256xf32>
    %366 = vector.extract_strided_slice %345 {offsets = [0, 32], sizes = [8, 256], strides = [1, 1]} : vector<8x290xf32> to vector<8x256xf32>
    %367 = vector.extract_strided_slice %3 {offsets = [6, 0], sizes = [1, 256], strides = [1, 1]} : vector<9x256xf32> to vector<1x256xf32>
    %368 = vector.broadcast %367 : vector<1x256xf32> to vector<8x256xf32>
    %369 = arith.mulf %366, %368 : vector<8x256xf32>
    %370 = vector.extract_strided_slice %345 {offsets = [0, 33], sizes = [8, 256], strides = [1, 1]} : vector<8x290xf32> to vector<8x256xf32>
    %371 = vector.extract_strided_slice %3 {offsets = [7, 0], sizes = [1, 256], strides = [1, 1]} : vector<9x256xf32> to vector<1x256xf32>
    %372 = vector.broadcast %371 : vector<1x256xf32> to vector<8x256xf32>
    %373 = arith.mulf %370, %372 : vector<8x256xf32>
    %374 = vector.extract_strided_slice %345 {offsets = [0, 34], sizes = [8, 256], strides = [1, 1]} : vector<8x290xf32> to vector<8x256xf32>
    %375 = vector.extract_strided_slice %3 {offsets = [8, 0], sizes = [1, 256], strides = [1, 1]} : vector<9x256xf32> to vector<1x256xf32>
    %376 = vector.broadcast %375 : vector<1x256xf32> to vector<8x256xf32>
    %377 = arith.mulf %374, %376 : vector<8x256xf32>
    %c0_140 = arith.constant 0 : index
    %c9 = arith.constant 9 : index
    %378 = memref.load %arg5[%c0_140, %c9] : memref<3x36xf32, #tpu.memory_space<smem>>
    %379 = vector.broadcast %378 : f32 to vector<8x256xf32>
    %380 = arith.mulf %379, %349 : vector<8x256xf32>
    %381 = arith.addf %336, %380 : vector<8x256xf32>
    %c1_141 = arith.constant 1 : index
    %c9_142 = arith.constant 9 : index
    %382 = memref.load %arg5[%c1_141, %c9_142] : memref<3x36xf32, #tpu.memory_space<smem>>
    %383 = vector.broadcast %382 : f32 to vector<8x256xf32>
    %384 = arith.mulf %383, %349 : vector<8x256xf32>
    %385 = arith.addf %340, %384 : vector<8x256xf32>
    %c2_143 = arith.constant 2 : index
    %c9_144 = arith.constant 9 : index
    %386 = memref.load %arg5[%c2_143, %c9_144] : memref<3x36xf32, #tpu.memory_space<smem>>
    %387 = vector.broadcast %386 : f32 to vector<8x256xf32>
    %388 = arith.mulf %387, %349 : vector<8x256xf32>
    %389 = arith.addf %344, %388 : vector<8x256xf32>
    %c0_145 = arith.constant 0 : index
    %c10 = arith.constant 10 : index
    %390 = memref.load %arg5[%c0_145, %c10] : memref<3x36xf32, #tpu.memory_space<smem>>
    %391 = vector.broadcast %390 : f32 to vector<8x256xf32>
    %392 = arith.mulf %391, %353 : vector<8x256xf32>
    %393 = arith.addf %381, %392 : vector<8x256xf32>
    %c1_146 = arith.constant 1 : index
    %c10_147 = arith.constant 10 : index
    %394 = memref.load %arg5[%c1_146, %c10_147] : memref<3x36xf32, #tpu.memory_space<smem>>
    %395 = vector.broadcast %394 : f32 to vector<8x256xf32>
    %396 = arith.mulf %395, %353 : vector<8x256xf32>
    %397 = arith.addf %385, %396 : vector<8x256xf32>
    %c2_148 = arith.constant 2 : index
    %c10_149 = arith.constant 10 : index
    %398 = memref.load %arg5[%c2_148, %c10_149] : memref<3x36xf32, #tpu.memory_space<smem>>
    %399 = vector.broadcast %398 : f32 to vector<8x256xf32>
    %400 = arith.mulf %399, %353 : vector<8x256xf32>
    %401 = arith.addf %389, %400 : vector<8x256xf32>
    %c0_150 = arith.constant 0 : index
    %c11 = arith.constant 11 : index
    %402 = memref.load %arg5[%c0_150, %c11] : memref<3x36xf32, #tpu.memory_space<smem>>
    %403 = vector.broadcast %402 : f32 to vector<8x256xf32>
    %404 = arith.mulf %403, %357 : vector<8x256xf32>
    %405 = arith.addf %393, %404 : vector<8x256xf32>
    %c1_151 = arith.constant 1 : index
    %c11_152 = arith.constant 11 : index
    %406 = memref.load %arg5[%c1_151, %c11_152] : memref<3x36xf32, #tpu.memory_space<smem>>
    %407 = vector.broadcast %406 : f32 to vector<8x256xf32>
    %408 = arith.mulf %407, %357 : vector<8x256xf32>
    %409 = arith.addf %397, %408 : vector<8x256xf32>
    %c2_153 = arith.constant 2 : index
    %c11_154 = arith.constant 11 : index
    %410 = memref.load %arg5[%c2_153, %c11_154] : memref<3x36xf32, #tpu.memory_space<smem>>
    %411 = vector.broadcast %410 : f32 to vector<8x256xf32>
    %412 = arith.mulf %411, %357 : vector<8x256xf32>
    %413 = arith.addf %401, %412 : vector<8x256xf32>
    %c0_155 = arith.constant 0 : index
    %c12 = arith.constant 12 : index
    %414 = memref.load %arg5[%c0_155, %c12] : memref<3x36xf32, #tpu.memory_space<smem>>
    %415 = vector.broadcast %414 : f32 to vector<8x256xf32>
    %416 = arith.mulf %415, %361 : vector<8x256xf32>
    %417 = arith.addf %405, %416 : vector<8x256xf32>
    %c1_156 = arith.constant 1 : index
    %c12_157 = arith.constant 12 : index
    %418 = memref.load %arg5[%c1_156, %c12_157] : memref<3x36xf32, #tpu.memory_space<smem>>
    %419 = vector.broadcast %418 : f32 to vector<8x256xf32>
    %420 = arith.mulf %419, %361 : vector<8x256xf32>
    %421 = arith.addf %409, %420 : vector<8x256xf32>
    %c2_158 = arith.constant 2 : index
    %c12_159 = arith.constant 12 : index
    %422 = memref.load %arg5[%c2_158, %c12_159] : memref<3x36xf32, #tpu.memory_space<smem>>
    %423 = vector.broadcast %422 : f32 to vector<8x256xf32>
    %424 = arith.mulf %423, %361 : vector<8x256xf32>
    %425 = arith.addf %413, %424 : vector<8x256xf32>
    %c0_160 = arith.constant 0 : index
    %c13 = arith.constant 13 : index
    %426 = memref.load %arg5[%c0_160, %c13] : memref<3x36xf32, #tpu.memory_space<smem>>
    %427 = vector.broadcast %426 : f32 to vector<8x256xf32>
    %428 = arith.mulf %427, %117 : vector<8x256xf32>
    %429 = arith.addf %417, %428 : vector<8x256xf32>
    %c1_161 = arith.constant 1 : index
    %c13_162 = arith.constant 13 : index
    %430 = memref.load %arg5[%c1_161, %c13_162] : memref<3x36xf32, #tpu.memory_space<smem>>
    %431 = vector.broadcast %430 : f32 to vector<8x256xf32>
    %432 = arith.mulf %431, %117 : vector<8x256xf32>
    %433 = arith.addf %421, %432 : vector<8x256xf32>
    %c2_163 = arith.constant 2 : index
    %c13_164 = arith.constant 13 : index
    %434 = memref.load %arg5[%c2_163, %c13_164] : memref<3x36xf32, #tpu.memory_space<smem>>
    %435 = vector.broadcast %434 : f32 to vector<8x256xf32>
    %436 = arith.mulf %435, %117 : vector<8x256xf32>
    %437 = arith.addf %425, %436 : vector<8x256xf32>
    %c0_165 = arith.constant 0 : index
    %c14 = arith.constant 14 : index
    %438 = memref.load %arg5[%c0_165, %c14] : memref<3x36xf32, #tpu.memory_space<smem>>
    %439 = vector.broadcast %438 : f32 to vector<8x256xf32>
    %440 = arith.mulf %439, %365 : vector<8x256xf32>
    %441 = arith.addf %429, %440 : vector<8x256xf32>
    %c1_166 = arith.constant 1 : index
    %c14_167 = arith.constant 14 : index
    %442 = memref.load %arg5[%c1_166, %c14_167] : memref<3x36xf32, #tpu.memory_space<smem>>
    %443 = vector.broadcast %442 : f32 to vector<8x256xf32>
    %444 = arith.mulf %443, %365 : vector<8x256xf32>
    %445 = arith.addf %433, %444 : vector<8x256xf32>
    %c2_168 = arith.constant 2 : index
    %c14_169 = arith.constant 14 : index
    %446 = memref.load %arg5[%c2_168, %c14_169] : memref<3x36xf32, #tpu.memory_space<smem>>
    %447 = vector.broadcast %446 : f32 to vector<8x256xf32>
    %448 = arith.mulf %447, %365 : vector<8x256xf32>
    %449 = arith.addf %437, %448 : vector<8x256xf32>
    %c0_170 = arith.constant 0 : index
    %c15 = arith.constant 15 : index
    %450 = memref.load %arg5[%c0_170, %c15] : memref<3x36xf32, #tpu.memory_space<smem>>
    %451 = vector.broadcast %450 : f32 to vector<8x256xf32>
    %452 = arith.mulf %451, %369 : vector<8x256xf32>
    %453 = arith.addf %441, %452 : vector<8x256xf32>
    %c1_171 = arith.constant 1 : index
    %c15_172 = arith.constant 15 : index
    %454 = memref.load %arg5[%c1_171, %c15_172] : memref<3x36xf32, #tpu.memory_space<smem>>
    %455 = vector.broadcast %454 : f32 to vector<8x256xf32>
    %456 = arith.mulf %455, %369 : vector<8x256xf32>
    %457 = arith.addf %445, %456 : vector<8x256xf32>
    %c2_173 = arith.constant 2 : index
    %c15_174 = arith.constant 15 : index
    %458 = memref.load %arg5[%c2_173, %c15_174] : memref<3x36xf32, #tpu.memory_space<smem>>
    %459 = vector.broadcast %458 : f32 to vector<8x256xf32>
    %460 = arith.mulf %459, %369 : vector<8x256xf32>
    %461 = arith.addf %449, %460 : vector<8x256xf32>
    %c0_175 = arith.constant 0 : index
    %c16 = arith.constant 16 : index
    %462 = memref.load %arg5[%c0_175, %c16] : memref<3x36xf32, #tpu.memory_space<smem>>
    %463 = vector.broadcast %462 : f32 to vector<8x256xf32>
    %464 = arith.mulf %463, %373 : vector<8x256xf32>
    %465 = arith.addf %453, %464 : vector<8x256xf32>
    %c1_176 = arith.constant 1 : index
    %c16_177 = arith.constant 16 : index
    %466 = memref.load %arg5[%c1_176, %c16_177] : memref<3x36xf32, #tpu.memory_space<smem>>
    %467 = vector.broadcast %466 : f32 to vector<8x256xf32>
    %468 = arith.mulf %467, %373 : vector<8x256xf32>
    %469 = arith.addf %457, %468 : vector<8x256xf32>
    %c2_178 = arith.constant 2 : index
    %c16_179 = arith.constant 16 : index
    %470 = memref.load %arg5[%c2_178, %c16_179] : memref<3x36xf32, #tpu.memory_space<smem>>
    %471 = vector.broadcast %470 : f32 to vector<8x256xf32>
    %472 = arith.mulf %471, %373 : vector<8x256xf32>
    %473 = arith.addf %461, %472 : vector<8x256xf32>
    %c0_180 = arith.constant 0 : index
    %c17 = arith.constant 17 : index
    %474 = memref.load %arg5[%c0_180, %c17] : memref<3x36xf32, #tpu.memory_space<smem>>
    %475 = vector.broadcast %474 : f32 to vector<8x256xf32>
    %476 = arith.mulf %475, %377 : vector<8x256xf32>
    %477 = arith.addf %465, %476 : vector<8x256xf32>
    %c1_181 = arith.constant 1 : index
    %c17_182 = arith.constant 17 : index
    %478 = memref.load %arg5[%c1_181, %c17_182] : memref<3x36xf32, #tpu.memory_space<smem>>
    %479 = vector.broadcast %478 : f32 to vector<8x256xf32>
    %480 = arith.mulf %479, %377 : vector<8x256xf32>
    %481 = arith.addf %469, %480 : vector<8x256xf32>
    %c2_183 = arith.constant 2 : index
    %c17_184 = arith.constant 17 : index
    %482 = memref.load %arg5[%c2_183, %c17_184] : memref<3x36xf32, #tpu.memory_space<smem>>
    %483 = vector.broadcast %482 : f32 to vector<8x256xf32>
    %484 = arith.mulf %483, %377 : vector<8x256xf32>
    %485 = arith.addf %473, %484 : vector<8x256xf32>
    %486 = tpu.concatenate %4, %157, %4 in 1 : vector<8x17xf32>, vector<8x256xf32>, vector<8x17xf32> -> vector<8x290xf32>
    %487 = vector.extract_strided_slice %486 {offsets = [0, 0], sizes = [8, 256], strides = [1, 1]} : vector<8x290xf32> to vector<8x256xf32>
    %488 = vector.extract_strided_slice %3 {offsets = [0, 0], sizes = [1, 256], strides = [1, 1]} : vector<9x256xf32> to vector<1x256xf32>
    %489 = vector.broadcast %488 : vector<1x256xf32> to vector<8x256xf32>
    %490 = arith.mulf %487, %489 : vector<8x256xf32>
    %491 = vector.extract_strided_slice %486 {offsets = [0, 1], sizes = [8, 256], strides = [1, 1]} : vector<8x290xf32> to vector<8x256xf32>
    %492 = vector.extract_strided_slice %3 {offsets = [1, 0], sizes = [1, 256], strides = [1, 1]} : vector<9x256xf32> to vector<1x256xf32>
    %493 = vector.broadcast %492 : vector<1x256xf32> to vector<8x256xf32>
    %494 = arith.mulf %491, %493 : vector<8x256xf32>
    %495 = vector.extract_strided_slice %486 {offsets = [0, 2], sizes = [8, 256], strides = [1, 1]} : vector<8x290xf32> to vector<8x256xf32>
    %496 = vector.extract_strided_slice %3 {offsets = [2, 0], sizes = [1, 256], strides = [1, 1]} : vector<9x256xf32> to vector<1x256xf32>
    %497 = vector.broadcast %496 : vector<1x256xf32> to vector<8x256xf32>
    %498 = arith.mulf %495, %497 : vector<8x256xf32>
    %499 = vector.extract_strided_slice %486 {offsets = [0, 16], sizes = [8, 256], strides = [1, 1]} : vector<8x290xf32> to vector<8x256xf32>
    %500 = vector.extract_strided_slice %3 {offsets = [3, 0], sizes = [1, 256], strides = [1, 1]} : vector<9x256xf32> to vector<1x256xf32>
    %501 = vector.broadcast %500 : vector<1x256xf32> to vector<8x256xf32>
    %502 = arith.mulf %499, %501 : vector<8x256xf32>
    %503 = vector.extract_strided_slice %486 {offsets = [0, 18], sizes = [8, 256], strides = [1, 1]} : vector<8x290xf32> to vector<8x256xf32>
    %504 = vector.extract_strided_slice %3 {offsets = [5, 0], sizes = [1, 256], strides = [1, 1]} : vector<9x256xf32> to vector<1x256xf32>
    %505 = vector.broadcast %504 : vector<1x256xf32> to vector<8x256xf32>
    %506 = arith.mulf %503, %505 : vector<8x256xf32>
    %507 = vector.extract_strided_slice %486 {offsets = [0, 32], sizes = [8, 256], strides = [1, 1]} : vector<8x290xf32> to vector<8x256xf32>
    %508 = vector.extract_strided_slice %3 {offsets = [6, 0], sizes = [1, 256], strides = [1, 1]} : vector<9x256xf32> to vector<1x256xf32>
    %509 = vector.broadcast %508 : vector<1x256xf32> to vector<8x256xf32>
    %510 = arith.mulf %507, %509 : vector<8x256xf32>
    %511 = vector.extract_strided_slice %486 {offsets = [0, 33], sizes = [8, 256], strides = [1, 1]} : vector<8x290xf32> to vector<8x256xf32>
    %512 = vector.extract_strided_slice %3 {offsets = [7, 0], sizes = [1, 256], strides = [1, 1]} : vector<9x256xf32> to vector<1x256xf32>
    %513 = vector.broadcast %512 : vector<1x256xf32> to vector<8x256xf32>
    %514 = arith.mulf %511, %513 : vector<8x256xf32>
    %515 = vector.extract_strided_slice %486 {offsets = [0, 34], sizes = [8, 256], strides = [1, 1]} : vector<8x290xf32> to vector<8x256xf32>
    %516 = vector.extract_strided_slice %3 {offsets = [8, 0], sizes = [1, 256], strides = [1, 1]} : vector<9x256xf32> to vector<1x256xf32>
    %517 = vector.broadcast %516 : vector<1x256xf32> to vector<8x256xf32>
    %518 = arith.mulf %515, %517 : vector<8x256xf32>
    %c0_185 = arith.constant 0 : index
    %c18 = arith.constant 18 : index
    %519 = memref.load %arg5[%c0_185, %c18] : memref<3x36xf32, #tpu.memory_space<smem>>
    %520 = vector.broadcast %519 : f32 to vector<8x256xf32>
    %521 = arith.mulf %520, %490 : vector<8x256xf32>
    %522 = arith.addf %477, %521 : vector<8x256xf32>
    %c1_186 = arith.constant 1 : index
    %c18_187 = arith.constant 18 : index
    %523 = memref.load %arg5[%c1_186, %c18_187] : memref<3x36xf32, #tpu.memory_space<smem>>
    %524 = vector.broadcast %523 : f32 to vector<8x256xf32>
    %525 = arith.mulf %524, %490 : vector<8x256xf32>
    %526 = arith.addf %481, %525 : vector<8x256xf32>
    %c2_188 = arith.constant 2 : index
    %c18_189 = arith.constant 18 : index
    %527 = memref.load %arg5[%c2_188, %c18_189] : memref<3x36xf32, #tpu.memory_space<smem>>
    %528 = vector.broadcast %527 : f32 to vector<8x256xf32>
    %529 = arith.mulf %528, %490 : vector<8x256xf32>
    %530 = arith.addf %485, %529 : vector<8x256xf32>
    %c0_190 = arith.constant 0 : index
    %c19 = arith.constant 19 : index
    %531 = memref.load %arg5[%c0_190, %c19] : memref<3x36xf32, #tpu.memory_space<smem>>
    %532 = vector.broadcast %531 : f32 to vector<8x256xf32>
    %533 = arith.mulf %532, %494 : vector<8x256xf32>
    %534 = arith.addf %522, %533 : vector<8x256xf32>
    %c1_191 = arith.constant 1 : index
    %c19_192 = arith.constant 19 : index
    %535 = memref.load %arg5[%c1_191, %c19_192] : memref<3x36xf32, #tpu.memory_space<smem>>
    %536 = vector.broadcast %535 : f32 to vector<8x256xf32>
    %537 = arith.mulf %536, %494 : vector<8x256xf32>
    %538 = arith.addf %526, %537 : vector<8x256xf32>
    %c2_193 = arith.constant 2 : index
    %c19_194 = arith.constant 19 : index
    %539 = memref.load %arg5[%c2_193, %c19_194] : memref<3x36xf32, #tpu.memory_space<smem>>
    %540 = vector.broadcast %539 : f32 to vector<8x256xf32>
    %541 = arith.mulf %540, %494 : vector<8x256xf32>
    %542 = arith.addf %530, %541 : vector<8x256xf32>
    %c0_195 = arith.constant 0 : index
    %c20 = arith.constant 20 : index
    %543 = memref.load %arg5[%c0_195, %c20] : memref<3x36xf32, #tpu.memory_space<smem>>
    %544 = vector.broadcast %543 : f32 to vector<8x256xf32>
    %545 = arith.mulf %544, %498 : vector<8x256xf32>
    %546 = arith.addf %534, %545 : vector<8x256xf32>
    %c1_196 = arith.constant 1 : index
    %c20_197 = arith.constant 20 : index
    %547 = memref.load %arg5[%c1_196, %c20_197] : memref<3x36xf32, #tpu.memory_space<smem>>
    %548 = vector.broadcast %547 : f32 to vector<8x256xf32>
    %549 = arith.mulf %548, %498 : vector<8x256xf32>
    %550 = arith.addf %538, %549 : vector<8x256xf32>
    %c2_198 = arith.constant 2 : index
    %c20_199 = arith.constant 20 : index
    %551 = memref.load %arg5[%c2_198, %c20_199] : memref<3x36xf32, #tpu.memory_space<smem>>
    %552 = vector.broadcast %551 : f32 to vector<8x256xf32>
    %553 = arith.mulf %552, %498 : vector<8x256xf32>
    %554 = arith.addf %542, %553 : vector<8x256xf32>
    %c0_200 = arith.constant 0 : index
    %c21 = arith.constant 21 : index
    %555 = memref.load %arg5[%c0_200, %c21] : memref<3x36xf32, #tpu.memory_space<smem>>
    %556 = vector.broadcast %555 : f32 to vector<8x256xf32>
    %557 = arith.mulf %556, %502 : vector<8x256xf32>
    %558 = arith.addf %546, %557 : vector<8x256xf32>
    %c1_201 = arith.constant 1 : index
    %c21_202 = arith.constant 21 : index
    %559 = memref.load %arg5[%c1_201, %c21_202] : memref<3x36xf32, #tpu.memory_space<smem>>
    %560 = vector.broadcast %559 : f32 to vector<8x256xf32>
    %561 = arith.mulf %560, %502 : vector<8x256xf32>
    %562 = arith.addf %550, %561 : vector<8x256xf32>
    %c2_203 = arith.constant 2 : index
    %c21_204 = arith.constant 21 : index
    %563 = memref.load %arg5[%c2_203, %c21_204] : memref<3x36xf32, #tpu.memory_space<smem>>
    %564 = vector.broadcast %563 : f32 to vector<8x256xf32>
    %565 = arith.mulf %564, %502 : vector<8x256xf32>
    %566 = arith.addf %554, %565 : vector<8x256xf32>
    %c0_205 = arith.constant 0 : index
    %c22 = arith.constant 22 : index
    %567 = memref.load %arg5[%c0_205, %c22] : memref<3x36xf32, #tpu.memory_space<smem>>
    %568 = vector.broadcast %567 : f32 to vector<8x256xf32>
    %569 = arith.mulf %568, %157 : vector<8x256xf32>
    %570 = arith.addf %558, %569 : vector<8x256xf32>
    %c1_206 = arith.constant 1 : index
    %c22_207 = arith.constant 22 : index
    %571 = memref.load %arg5[%c1_206, %c22_207] : memref<3x36xf32, #tpu.memory_space<smem>>
    %572 = vector.broadcast %571 : f32 to vector<8x256xf32>
    %573 = arith.mulf %572, %157 : vector<8x256xf32>
    %574 = arith.addf %562, %573 : vector<8x256xf32>
    %c2_208 = arith.constant 2 : index
    %c22_209 = arith.constant 22 : index
    %575 = memref.load %arg5[%c2_208, %c22_209] : memref<3x36xf32, #tpu.memory_space<smem>>
    %576 = vector.broadcast %575 : f32 to vector<8x256xf32>
    %577 = arith.mulf %576, %157 : vector<8x256xf32>
    %578 = arith.addf %566, %577 : vector<8x256xf32>
    %c0_210 = arith.constant 0 : index
    %c23 = arith.constant 23 : index
    %579 = memref.load %arg5[%c0_210, %c23] : memref<3x36xf32, #tpu.memory_space<smem>>
    %580 = vector.broadcast %579 : f32 to vector<8x256xf32>
    %581 = arith.mulf %580, %506 : vector<8x256xf32>
    %582 = arith.addf %570, %581 : vector<8x256xf32>
    %c1_211 = arith.constant 1 : index
    %c23_212 = arith.constant 23 : index
    %583 = memref.load %arg5[%c1_211, %c23_212] : memref<3x36xf32, #tpu.memory_space<smem>>
    %584 = vector.broadcast %583 : f32 to vector<8x256xf32>
    %585 = arith.mulf %584, %506 : vector<8x256xf32>
    %586 = arith.addf %574, %585 : vector<8x256xf32>
    %c2_213 = arith.constant 2 : index
    %c23_214 = arith.constant 23 : index
    %587 = memref.load %arg5[%c2_213, %c23_214] : memref<3x36xf32, #tpu.memory_space<smem>>
    %588 = vector.broadcast %587 : f32 to vector<8x256xf32>
    %589 = arith.mulf %588, %506 : vector<8x256xf32>
    %590 = arith.addf %578, %589 : vector<8x256xf32>
    %c0_215 = arith.constant 0 : index
    %c24 = arith.constant 24 : index
    %591 = memref.load %arg5[%c0_215, %c24] : memref<3x36xf32, #tpu.memory_space<smem>>
    %592 = vector.broadcast %591 : f32 to vector<8x256xf32>
    %593 = arith.mulf %592, %510 : vector<8x256xf32>
    %594 = arith.addf %582, %593 : vector<8x256xf32>
    %c1_216 = arith.constant 1 : index
    %c24_217 = arith.constant 24 : index
    %595 = memref.load %arg5[%c1_216, %c24_217] : memref<3x36xf32, #tpu.memory_space<smem>>
    %596 = vector.broadcast %595 : f32 to vector<8x256xf32>
    %597 = arith.mulf %596, %510 : vector<8x256xf32>
    %598 = arith.addf %586, %597 : vector<8x256xf32>
    %c2_218 = arith.constant 2 : index
    %c24_219 = arith.constant 24 : index
    %599 = memref.load %arg5[%c2_218, %c24_219] : memref<3x36xf32, #tpu.memory_space<smem>>
    %600 = vector.broadcast %599 : f32 to vector<8x256xf32>
    %601 = arith.mulf %600, %510 : vector<8x256xf32>
    %602 = arith.addf %590, %601 : vector<8x256xf32>
    %c0_220 = arith.constant 0 : index
    %c25 = arith.constant 25 : index
    %603 = memref.load %arg5[%c0_220, %c25] : memref<3x36xf32, #tpu.memory_space<smem>>
    %604 = vector.broadcast %603 : f32 to vector<8x256xf32>
    %605 = arith.mulf %604, %514 : vector<8x256xf32>
    %606 = arith.addf %594, %605 : vector<8x256xf32>
    %c1_221 = arith.constant 1 : index
    %c25_222 = arith.constant 25 : index
    %607 = memref.load %arg5[%c1_221, %c25_222] : memref<3x36xf32, #tpu.memory_space<smem>>
    %608 = vector.broadcast %607 : f32 to vector<8x256xf32>
    %609 = arith.mulf %608, %514 : vector<8x256xf32>
    %610 = arith.addf %598, %609 : vector<8x256xf32>
    %c2_223 = arith.constant 2 : index
    %c25_224 = arith.constant 25 : index
    %611 = memref.load %arg5[%c2_223, %c25_224] : memref<3x36xf32, #tpu.memory_space<smem>>
    %612 = vector.broadcast %611 : f32 to vector<8x256xf32>
    %613 = arith.mulf %612, %514 : vector<8x256xf32>
    %614 = arith.addf %602, %613 : vector<8x256xf32>
    %c0_225 = arith.constant 0 : index
    %c26 = arith.constant 26 : index
    %615 = memref.load %arg5[%c0_225, %c26] : memref<3x36xf32, #tpu.memory_space<smem>>
    %616 = vector.broadcast %615 : f32 to vector<8x256xf32>
    %617 = arith.mulf %616, %518 : vector<8x256xf32>
    %618 = arith.addf %606, %617 : vector<8x256xf32>
    %c1_226 = arith.constant 1 : index
    %c26_227 = arith.constant 26 : index
    %619 = memref.load %arg5[%c1_226, %c26_227] : memref<3x36xf32, #tpu.memory_space<smem>>
    %620 = vector.broadcast %619 : f32 to vector<8x256xf32>
    %621 = arith.mulf %620, %518 : vector<8x256xf32>
    %622 = arith.addf %610, %621 : vector<8x256xf32>
    %c2_228 = arith.constant 2 : index
    %c26_229 = arith.constant 26 : index
    %623 = memref.load %arg5[%c2_228, %c26_229] : memref<3x36xf32, #tpu.memory_space<smem>>
    %624 = vector.broadcast %623 : f32 to vector<8x256xf32>
    %625 = arith.mulf %624, %518 : vector<8x256xf32>
    %626 = arith.addf %614, %625 : vector<8x256xf32>
    %627 = tpu.concatenate %4, %197, %4 in 1 : vector<8x17xf32>, vector<8x256xf32>, vector<8x17xf32> -> vector<8x290xf32>
    %628 = vector.extract_strided_slice %627 {offsets = [0, 0], sizes = [8, 256], strides = [1, 1]} : vector<8x290xf32> to vector<8x256xf32>
    %629 = vector.extract_strided_slice %3 {offsets = [0, 0], sizes = [1, 256], strides = [1, 1]} : vector<9x256xf32> to vector<1x256xf32>
    %630 = vector.broadcast %629 : vector<1x256xf32> to vector<8x256xf32>
    %631 = arith.mulf %628, %630 : vector<8x256xf32>
    %632 = vector.extract_strided_slice %627 {offsets = [0, 1], sizes = [8, 256], strides = [1, 1]} : vector<8x290xf32> to vector<8x256xf32>
    %633 = vector.extract_strided_slice %3 {offsets = [1, 0], sizes = [1, 256], strides = [1, 1]} : vector<9x256xf32> to vector<1x256xf32>
    %634 = vector.broadcast %633 : vector<1x256xf32> to vector<8x256xf32>
    %635 = arith.mulf %632, %634 : vector<8x256xf32>
    %636 = vector.extract_strided_slice %627 {offsets = [0, 2], sizes = [8, 256], strides = [1, 1]} : vector<8x290xf32> to vector<8x256xf32>
    %637 = vector.extract_strided_slice %3 {offsets = [2, 0], sizes = [1, 256], strides = [1, 1]} : vector<9x256xf32> to vector<1x256xf32>
    %638 = vector.broadcast %637 : vector<1x256xf32> to vector<8x256xf32>
    %639 = arith.mulf %636, %638 : vector<8x256xf32>
    %640 = vector.extract_strided_slice %627 {offsets = [0, 16], sizes = [8, 256], strides = [1, 1]} : vector<8x290xf32> to vector<8x256xf32>
    %641 = vector.extract_strided_slice %3 {offsets = [3, 0], sizes = [1, 256], strides = [1, 1]} : vector<9x256xf32> to vector<1x256xf32>
    %642 = vector.broadcast %641 : vector<1x256xf32> to vector<8x256xf32>
    %643 = arith.mulf %640, %642 : vector<8x256xf32>
    %644 = vector.extract_strided_slice %627 {offsets = [0, 18], sizes = [8, 256], strides = [1, 1]} : vector<8x290xf32> to vector<8x256xf32>
    %645 = vector.extract_strided_slice %3 {offsets = [5, 0], sizes = [1, 256], strides = [1, 1]} : vector<9x256xf32> to vector<1x256xf32>
    %646 = vector.broadcast %645 : vector<1x256xf32> to vector<8x256xf32>
    %647 = arith.mulf %644, %646 : vector<8x256xf32>
    %648 = vector.extract_strided_slice %627 {offsets = [0, 32], sizes = [8, 256], strides = [1, 1]} : vector<8x290xf32> to vector<8x256xf32>
    %649 = vector.extract_strided_slice %3 {offsets = [6, 0], sizes = [1, 256], strides = [1, 1]} : vector<9x256xf32> to vector<1x256xf32>
    %650 = vector.broadcast %649 : vector<1x256xf32> to vector<8x256xf32>
    %651 = arith.mulf %648, %650 : vector<8x256xf32>
    %652 = vector.extract_strided_slice %627 {offsets = [0, 33], sizes = [8, 256], strides = [1, 1]} : vector<8x290xf32> to vector<8x256xf32>
    %653 = vector.extract_strided_slice %3 {offsets = [7, 0], sizes = [1, 256], strides = [1, 1]} : vector<9x256xf32> to vector<1x256xf32>
    %654 = vector.broadcast %653 : vector<1x256xf32> to vector<8x256xf32>
    %655 = arith.mulf %652, %654 : vector<8x256xf32>
    %656 = vector.extract_strided_slice %627 {offsets = [0, 34], sizes = [8, 256], strides = [1, 1]} : vector<8x290xf32> to vector<8x256xf32>
    %657 = vector.extract_strided_slice %3 {offsets = [8, 0], sizes = [1, 256], strides = [1, 1]} : vector<9x256xf32> to vector<1x256xf32>
    %658 = vector.broadcast %657 : vector<1x256xf32> to vector<8x256xf32>
    %659 = arith.mulf %656, %658 : vector<8x256xf32>
    %c0_230 = arith.constant 0 : index
    %c27 = arith.constant 27 : index
    %660 = memref.load %arg5[%c0_230, %c27] : memref<3x36xf32, #tpu.memory_space<smem>>
    %661 = vector.broadcast %660 : f32 to vector<8x256xf32>
    %662 = arith.mulf %661, %631 : vector<8x256xf32>
    %663 = arith.addf %618, %662 : vector<8x256xf32>
    %c1_231 = arith.constant 1 : index
    %c27_232 = arith.constant 27 : index
    %664 = memref.load %arg5[%c1_231, %c27_232] : memref<3x36xf32, #tpu.memory_space<smem>>
    %665 = vector.broadcast %664 : f32 to vector<8x256xf32>
    %666 = arith.mulf %665, %631 : vector<8x256xf32>
    %667 = arith.addf %622, %666 : vector<8x256xf32>
    %c2_233 = arith.constant 2 : index
    %c27_234 = arith.constant 27 : index
    %668 = memref.load %arg5[%c2_233, %c27_234] : memref<3x36xf32, #tpu.memory_space<smem>>
    %669 = vector.broadcast %668 : f32 to vector<8x256xf32>
    %670 = arith.mulf %669, %631 : vector<8x256xf32>
    %671 = arith.addf %626, %670 : vector<8x256xf32>
    %c0_235 = arith.constant 0 : index
    %c28 = arith.constant 28 : index
    %672 = memref.load %arg5[%c0_235, %c28] : memref<3x36xf32, #tpu.memory_space<smem>>
    %673 = vector.broadcast %672 : f32 to vector<8x256xf32>
    %674 = arith.mulf %673, %635 : vector<8x256xf32>
    %675 = arith.addf %663, %674 : vector<8x256xf32>
    %c1_236 = arith.constant 1 : index
    %c28_237 = arith.constant 28 : index
    %676 = memref.load %arg5[%c1_236, %c28_237] : memref<3x36xf32, #tpu.memory_space<smem>>
    %677 = vector.broadcast %676 : f32 to vector<8x256xf32>
    %678 = arith.mulf %677, %635 : vector<8x256xf32>
    %679 = arith.addf %667, %678 : vector<8x256xf32>
    %c2_238 = arith.constant 2 : index
    %c28_239 = arith.constant 28 : index
    %680 = memref.load %arg5[%c2_238, %c28_239] : memref<3x36xf32, #tpu.memory_space<smem>>
    %681 = vector.broadcast %680 : f32 to vector<8x256xf32>
    %682 = arith.mulf %681, %635 : vector<8x256xf32>
    %683 = arith.addf %671, %682 : vector<8x256xf32>
    %c0_240 = arith.constant 0 : index
    %c29 = arith.constant 29 : index
    %684 = memref.load %arg5[%c0_240, %c29] : memref<3x36xf32, #tpu.memory_space<smem>>
    %685 = vector.broadcast %684 : f32 to vector<8x256xf32>
    %686 = arith.mulf %685, %639 : vector<8x256xf32>
    %687 = arith.addf %675, %686 : vector<8x256xf32>
    %c1_241 = arith.constant 1 : index
    %c29_242 = arith.constant 29 : index
    %688 = memref.load %arg5[%c1_241, %c29_242] : memref<3x36xf32, #tpu.memory_space<smem>>
    %689 = vector.broadcast %688 : f32 to vector<8x256xf32>
    %690 = arith.mulf %689, %639 : vector<8x256xf32>
    %691 = arith.addf %679, %690 : vector<8x256xf32>
    %c2_243 = arith.constant 2 : index
    %c29_244 = arith.constant 29 : index
    %692 = memref.load %arg5[%c2_243, %c29_244] : memref<3x36xf32, #tpu.memory_space<smem>>
    %693 = vector.broadcast %692 : f32 to vector<8x256xf32>
    %694 = arith.mulf %693, %639 : vector<8x256xf32>
    %695 = arith.addf %683, %694 : vector<8x256xf32>
    %c0_245 = arith.constant 0 : index
    %c30 = arith.constant 30 : index
    %696 = memref.load %arg5[%c0_245, %c30] : memref<3x36xf32, #tpu.memory_space<smem>>
    %697 = vector.broadcast %696 : f32 to vector<8x256xf32>
    %698 = arith.mulf %697, %643 : vector<8x256xf32>
    %699 = arith.addf %687, %698 : vector<8x256xf32>
    %c1_246 = arith.constant 1 : index
    %c30_247 = arith.constant 30 : index
    %700 = memref.load %arg5[%c1_246, %c30_247] : memref<3x36xf32, #tpu.memory_space<smem>>
    %701 = vector.broadcast %700 : f32 to vector<8x256xf32>
    %702 = arith.mulf %701, %643 : vector<8x256xf32>
    %703 = arith.addf %691, %702 : vector<8x256xf32>
    %c2_248 = arith.constant 2 : index
    %c30_249 = arith.constant 30 : index
    %704 = memref.load %arg5[%c2_248, %c30_249] : memref<3x36xf32, #tpu.memory_space<smem>>
    %705 = vector.broadcast %704 : f32 to vector<8x256xf32>
    %706 = arith.mulf %705, %643 : vector<8x256xf32>
    %707 = arith.addf %695, %706 : vector<8x256xf32>
    %c0_250 = arith.constant 0 : index
    %c31 = arith.constant 31 : index
    %708 = memref.load %arg5[%c0_250, %c31] : memref<3x36xf32, #tpu.memory_space<smem>>
    %709 = vector.broadcast %708 : f32 to vector<8x256xf32>
    %710 = arith.mulf %709, %197 : vector<8x256xf32>
    %711 = arith.addf %699, %710 : vector<8x256xf32>
    %c1_251 = arith.constant 1 : index
    %c31_252 = arith.constant 31 : index
    %712 = memref.load %arg5[%c1_251, %c31_252] : memref<3x36xf32, #tpu.memory_space<smem>>
    %713 = vector.broadcast %712 : f32 to vector<8x256xf32>
    %714 = arith.mulf %713, %197 : vector<8x256xf32>
    %715 = arith.addf %703, %714 : vector<8x256xf32>
    %c2_253 = arith.constant 2 : index
    %c31_254 = arith.constant 31 : index
    %716 = memref.load %arg5[%c2_253, %c31_254] : memref<3x36xf32, #tpu.memory_space<smem>>
    %717 = vector.broadcast %716 : f32 to vector<8x256xf32>
    %718 = arith.mulf %717, %197 : vector<8x256xf32>
    %719 = arith.addf %707, %718 : vector<8x256xf32>
    %c0_255 = arith.constant 0 : index
    %c32 = arith.constant 32 : index
    %720 = memref.load %arg5[%c0_255, %c32] : memref<3x36xf32, #tpu.memory_space<smem>>
    %721 = vector.broadcast %720 : f32 to vector<8x256xf32>
    %722 = arith.mulf %721, %647 : vector<8x256xf32>
    %723 = arith.addf %711, %722 : vector<8x256xf32>
    %c1_256 = arith.constant 1 : index
    %c32_257 = arith.constant 32 : index
    %724 = memref.load %arg5[%c1_256, %c32_257] : memref<3x36xf32, #tpu.memory_space<smem>>
    %725 = vector.broadcast %724 : f32 to vector<8x256xf32>
    %726 = arith.mulf %725, %647 : vector<8x256xf32>
    %727 = arith.addf %715, %726 : vector<8x256xf32>
    %c2_258 = arith.constant 2 : index
    %c32_259 = arith.constant 32 : index
    %728 = memref.load %arg5[%c2_258, %c32_259] : memref<3x36xf32, #tpu.memory_space<smem>>
    %729 = vector.broadcast %728 : f32 to vector<8x256xf32>
    %730 = arith.mulf %729, %647 : vector<8x256xf32>
    %731 = arith.addf %719, %730 : vector<8x256xf32>
    %c0_260 = arith.constant 0 : index
    %c33 = arith.constant 33 : index
    %732 = memref.load %arg5[%c0_260, %c33] : memref<3x36xf32, #tpu.memory_space<smem>>
    %733 = vector.broadcast %732 : f32 to vector<8x256xf32>
    %734 = arith.mulf %733, %651 : vector<8x256xf32>
    %735 = arith.addf %723, %734 : vector<8x256xf32>
    %c1_261 = arith.constant 1 : index
    %c33_262 = arith.constant 33 : index
    %736 = memref.load %arg5[%c1_261, %c33_262] : memref<3x36xf32, #tpu.memory_space<smem>>
    %737 = vector.broadcast %736 : f32 to vector<8x256xf32>
    %738 = arith.mulf %737, %651 : vector<8x256xf32>
    %739 = arith.addf %727, %738 : vector<8x256xf32>
    %c2_263 = arith.constant 2 : index
    %c33_264 = arith.constant 33 : index
    %740 = memref.load %arg5[%c2_263, %c33_264] : memref<3x36xf32, #tpu.memory_space<smem>>
    %741 = vector.broadcast %740 : f32 to vector<8x256xf32>
    %742 = arith.mulf %741, %651 : vector<8x256xf32>
    %743 = arith.addf %731, %742 : vector<8x256xf32>
    %c0_265 = arith.constant 0 : index
    %c34 = arith.constant 34 : index
    %744 = memref.load %arg5[%c0_265, %c34] : memref<3x36xf32, #tpu.memory_space<smem>>
    %745 = vector.broadcast %744 : f32 to vector<8x256xf32>
    %746 = arith.mulf %745, %655 : vector<8x256xf32>
    %747 = arith.addf %735, %746 : vector<8x256xf32>
    %c1_266 = arith.constant 1 : index
    %c34_267 = arith.constant 34 : index
    %748 = memref.load %arg5[%c1_266, %c34_267] : memref<3x36xf32, #tpu.memory_space<smem>>
    %749 = vector.broadcast %748 : f32 to vector<8x256xf32>
    %750 = arith.mulf %749, %655 : vector<8x256xf32>
    %751 = arith.addf %739, %750 : vector<8x256xf32>
    %c2_268 = arith.constant 2 : index
    %c34_269 = arith.constant 34 : index
    %752 = memref.load %arg5[%c2_268, %c34_269] : memref<3x36xf32, #tpu.memory_space<smem>>
    %753 = vector.broadcast %752 : f32 to vector<8x256xf32>
    %754 = arith.mulf %753, %655 : vector<8x256xf32>
    %755 = arith.addf %743, %754 : vector<8x256xf32>
    %c0_270 = arith.constant 0 : index
    %c35 = arith.constant 35 : index
    %756 = memref.load %arg5[%c0_270, %c35] : memref<3x36xf32, #tpu.memory_space<smem>>
    %757 = vector.broadcast %756 : f32 to vector<8x256xf32>
    %758 = arith.mulf %757, %659 : vector<8x256xf32>
    %759 = arith.addf %747, %758 : vector<8x256xf32>
    %c1_271 = arith.constant 1 : index
    %c35_272 = arith.constant 35 : index
    %760 = memref.load %arg5[%c1_271, %c35_272] : memref<3x36xf32, #tpu.memory_space<smem>>
    %761 = vector.broadcast %760 : f32 to vector<8x256xf32>
    %762 = arith.mulf %761, %659 : vector<8x256xf32>
    %763 = arith.addf %751, %762 : vector<8x256xf32>
    %c2_273 = arith.constant 2 : index
    %c35_274 = arith.constant 35 : index
    %764 = memref.load %arg5[%c2_273, %c35_274] : memref<3x36xf32, #tpu.memory_space<smem>>
    %765 = vector.broadcast %764 : f32 to vector<8x256xf32>
    %766 = arith.mulf %765, %659 : vector<8x256xf32>
    %767 = arith.addf %755, %766 : vector<8x256xf32>
    %768 = arith.negf %759 : vector<8x256xf32>
    %769 = math.exp %768 : vector<8x256xf32>
    %cst_275 = arith.constant 1.000000e+00 : f32
    %770 = vector.broadcast %cst_275 : f32 to vector<8x256xf32>
    %771 = arith.addf %770, %769 : vector<8x256xf32>
    %772 = arith.divf %770, %771 : vector<8x256xf32>
    %773 = arith.addf %772, %2 : vector<8x256xf32>
    %774 = arith.negf %763 : vector<8x256xf32>
    %775 = math.exp %774 : vector<8x256xf32>
    %cst_276 = arith.constant 1.000000e+00 : f32
    %776 = vector.broadcast %cst_276 : f32 to vector<8x256xf32>
    %777 = arith.addf %776, %775 : vector<8x256xf32>
    %778 = arith.divf %776, %777 : vector<8x256xf32>
    %779 = arith.addf %778, %2 : vector<8x256xf32>
    %780 = arith.negf %767 : vector<8x256xf32>
    %781 = math.exp %780 : vector<8x256xf32>
    %cst_277 = arith.constant 1.000000e+00 : f32
    %782 = vector.broadcast %cst_277 : f32 to vector<8x256xf32>
    %783 = arith.addf %782, %781 : vector<8x256xf32>
    %784 = arith.divf %782, %783 : vector<8x256xf32>
    %785 = arith.addf %784, %2 : vector<8x256xf32>
    %786 = tpu.concatenate %773, %779, %785 in 1 : vector<8x256xf32>, vector<8x256xf32>, vector<8x256xf32> -> vector<8x768xf32>
    %c0_278 = arith.constant 0 : index
    %c0_279 = arith.constant 0 : index
    %787 = vector.load %arg7[%c0_278, %c0_279] : memref<768x32xf32, #tpu.memory_space<vmem>>, vector<768x32xf32>
    %cst_280 = arith.constant dense<0.000000e+00> : vector<8x32xf32>
    %788 = tpu.matmul %786, %787, %cst_280 {dimension_numbers = #tpu.dot_dimension_numbers<[1], [0], [0], [1], [0, 0, 1, 1], [], []>} : vector<8x768xf32>, vector<768x32xf32>, vector<8x32xf32> -> vector<8x32xf32>
    %c0_281 = arith.constant 0 : index
    %c0_282 = arith.constant 0 : index
    %789 = vector.load %arg8[%c0_281, %c0_282] : memref<1x32xf32, #tpu.memory_space<vmem>>, vector<1x32xf32>
    %790 = vector.broadcast %789 : vector<1x32xf32> to vector<8x32xf32>
    %791 = arith.addf %788, %790 : vector<8x32xf32>
    %c0_283 = arith.constant 0 : index
    %c0_284 = arith.constant 0 : index
    %792 = vector.load %arg9[%c0_283, %c0_284] : memref<8x32xf32, #tpu.memory_space<vmem>>, vector<8x32xf32>
    tpu.vector_store %arg9[%c0_283, %c0_284], %791 {strides = array<i32>} : memref<8x32xf32, #tpu.memory_space<vmem>>, vector<8x32xf32>,
    return
  }
  func.func @transform_0(%arg0: i32) -> (i32, i32) {
    %c0_i32 = arith.constant 0 : i32
    %c0_i32_0 = arith.constant 0 : i32
    return %arg0, %c0_i32 : i32, i32
  }
  func.func @transform_1(%arg0: i32) -> (i32, i32) {
    %c0_i32 = arith.constant 0 : i32
    %c0_i32_0 = arith.constant 0 : i32
    %c0_i32_1 = arith.constant 0 : i32
    return %c0_i32, %c0_i32_0 : i32, i32
  }
  func.func @transform_2(%arg0: i32) -> (i32, i32) {
    %c0_i32 = arith.constant 0 : i32
    %c0_i32_0 = arith.constant 0 : i32
    %c0_i32_1 = arith.constant 0 : i32
    return %c0_i32, %c0_i32_0 : i32, i32
  }
  func.func @transform_3(%arg0: i32) -> (i32, i32) {
    %c0_i32 = arith.constant 0 : i32
    %c0_i32_0 = arith.constant 0 : i32
    %c0_i32_1 = arith.constant 0 : i32
    return %c0_i32, %c0_i32_0 : i32, i32
  }
  func.func @transform_4(%arg0: i32) -> (i32, i32) {
    %c0_i32 = arith.constant 0 : i32
    %c0_i32_0 = arith.constant 0 : i32
    %c0_i32_1 = arith.constant 0 : i32
    return %c0_i32, %c0_i32_0 : i32, i32
  }
  func.func @transform_5(%arg0: i32) -> (i32, i32) {
    %c0_i32 = arith.constant 0 : i32
    %c0_i32_0 = arith.constant 0 : i32
    %c0_i32_1 = arith.constant 0 : i32
    return %c0_i32, %c0_i32_0 : i32, i32
  }
  func.func @transform_6(%arg0: i32) -> (i32, i32) {
    %c0_i32 = arith.constant 0 : i32
    %c0_i32_0 = arith.constant 0 : i32
    %c0_i32_1 = arith.constant 0 : i32
    return %c0_i32, %c0_i32_0 : i32, i32
  }
  func.func @transform_7(%arg0: i32) -> (i32, i32) {
    %c0_i32 = arith.constant 0 : i32
    %c0_i32_0 = arith.constant 0 : i32
    %c0_i32_1 = arith.constant 0 : i32
    return %c0_i32, %c0_i32_0 : i32, i32
  }
  func.func @transform_8(%arg0: i32) -> (i32, i32) {
    %c0_i32 = arith.constant 0 : i32
    %c0_i32_0 = arith.constant 0 : i32
    return %arg0, %c0_i32 : i32, i32
  }
}

</mosaic_0001>

<llo_original>
// kernel: tpu_custom_call.1
$region0: #{tpu_custom_call.1}
  #allocation0 [shape = 'u32[]', space=smem, size = 0x4, offset = 0x4, fixed_abs, tag = 'smem constant byte address 0x4 - core index']
  #allocation1 [shape = 'u32[144,128]{1,0:T(1,128)}', space=vmem, size = 0x12000, scoped, tag = 'internal scratch']
  %s0 = inlined_call_operand.vmem [shape: f32[8,256], index: 0, kind: input, shape index: {}]
  %s1 = inlined_call_operand.vmem [shape: f32[9,256], index: 1, kind: input, shape index: {}]
  %s2 = inlined_call_operand.vmem [shape: f32[4,9], index: 2, kind: input, shape index: {}]
  %s3 = inlined_call_operand.vmem [shape: f32[1,4], index: 3, kind: input, shape index: {}]
  %s4 = inlined_call_operand.vmem [shape: f32[3,36], index: 4, kind: input, shape index: {}]
  %s5 = inlined_call_operand.vmem [shape: f32[1,3], index: 5, kind: input, shape index: {}]
  %s6 = inlined_call_operand.vmem [shape: f32[768,32], index: 6, kind: input, shape index: {}]
  %s7 = inlined_call_operand.vmem [shape: f32[1,32], index: 7, kind: input, shape index: {}]
  %s8 = inlined_call_operand.hbm [shape: f32[8,32], index: 8, kind: output, shape index: {}]
  %s9 = sld [smem:[#allocation0]]
  $region58: #{tpu_custom_call.1} parent=0
    _
  %s11 = ssub.s32 1, %s9
  %s12 = scalar_select 0, %s11, %s9
  $region1: #{tpu_custom_call.1} parent=0
    #allocation2 [shape = 'u8[2048]{0}', space=smem, size = 0x800, scoped, tag = 'input window, operand 2, single buffered']
    #allocation3 [shape = 's32[1]{0}', space=sflag, size = 0x4, scoped, tag = 'scoped memory for tpu_custom_call.1']
    #allocation4 [shape = 's32[1]{0}', space=sflag, size = 0x4, scoped, tag = 'scoped memory for tpu_custom_call.1']
    #allocation5 [shape = 'u8[512]{0}', space=smem, size = 0x200, scoped, tag = 'input window, operand 3, single buffered']
    #allocation6 [shape = 's32[1]{0}', space=sflag, size = 0x4, scoped, tag = 'scoped memory for tpu_custom_call.1']
    #allocation7 [shape = 'u8[2048]{0}', space=smem, size = 0x800, scoped, tag = 'input window, operand 4, single buffered']
    #allocation8 [shape = 'u8[512]{0}', space=smem, size = 0x200, scoped, tag = 'input window, operand 5, single buffered']
    #allocation9 [shape = 's32[1]{0}', space=sflag, size = 0x4, scoped, tag = 'scoped memory for tpu_custom_call.1']
    #allocation10 [shape = 'u8[4096]{0}', space=vmem, size = 0x1000, scoped, tag = 'output window, operand 0, single buffered']
    %13 = vsyncpa [#allocation4], 0
    %14 = vsyncpa [#allocation6], 0
    %15 = vsyncpa [#allocation9], 0
    %16 = vsyncpa [#allocation3], 0
    // Predicated region
    $region2: #{tpu_custom_call.1} parent=1 // pred_check
      _
    $region3: #{tpu_custom_call.1} parent=1 // pred_check_branch
      %18 = sbr.rel (0) target = $region5
    $region4: #{tpu_custom_call.1} parent=1 // pred_region
      _
    $region5: #{tpu_custom_call.1} parent=1 // pred_fallthru
      _
    // Predicated region
    $region6: #{tpu_custom_call.1} parent=1 // pred_check
      _
    $region7: #{tpu_custom_call.1} parent=1 // pred_check_branch
      %20 = sbr.rel (0) target = $region9
    $region8: #{tpu_custom_call.1} parent=1 // pred_region
      _
    $region9: #{tpu_custom_call.1} parent=1 // pred_fallthru
      _
    // Predicated region
    $region10: #{tpu_custom_call.1} parent=1 // pred_check
      _
    $region11: #{tpu_custom_call.1} parent=1 // pred_check_branch
      %22 = sbr.rel (0) target = $region13
    $region12: #{tpu_custom_call.1} parent=1 // pred_region
      %s24 = ssub.s32 64, 64
      %25 = vsyncadd [#allocation4], %s24
      %s27 = sshll.u32 %s2, 4
      %s28 = int_to_ptr.vmem [resolvable:$true] %s27
      %30 = dma.vmem_to_smem %s28, 64, [#allocation2], [#allocation4]
    $region13: #{tpu_custom_call.1} parent=1 // pred_fallthru
      _
    // Predicated region
    $region14: #{tpu_custom_call.1} parent=1 // pred_check
      _
    $region15: #{tpu_custom_call.1} parent=1 // pred_check_branch
      %32 = sbr.rel (0) target = $region17
    $region16: #{tpu_custom_call.1} parent=1 // pred_region
      %s34 = ssub.s32 16, 16
      %35 = vsyncadd [#allocation6], %s34
      %s37 = sshll.u32 %s3, 4
      %s38 = int_to_ptr.vmem [resolvable:$true] %s37
      %40 = dma.vmem_to_smem %s38, 16, [#allocation5], [#allocation6]
    $region17: #{tpu_custom_call.1} parent=1 // pred_fallthru
      _
    // Predicated region
    $region18: #{tpu_custom_call.1} parent=1 // pred_check
      _
    $region19: #{tpu_custom_call.1} parent=1 // pred_check_branch
      %42 = sbr.rel (0) target = $region21
    $region20: #{tpu_custom_call.1} parent=1 // pred_region
      %s44 = ssub.s32 64, 64
      %45 = vsyncadd [#allocation6], %s44
      %s47 = sshll.u32 %s4, 4
      %s48 = int_to_ptr.vmem [resolvable:$true] %s47
      %50 = dma.vmem_to_smem %s48, 64, [#allocation7], [#allocation6]
    $region21: #{tpu_custom_call.1} parent=1 // pred_fallthru
      _
    // Predicated region
    $region22: #{tpu_custom_call.1} parent=1 // pred_check
      _
    $region23: #{tpu_custom_call.1} parent=1 // pred_check_branch
      %52 = sbr.rel (0) target = $region25
    $region24: #{tpu_custom_call.1} parent=1 // pred_region
      %s54 = ssub.s32 16, 16
      %55 = vsyncadd [#allocation9], %s54
      %s57 = sshll.u32 %s5, 4
      %s58 = int_to_ptr.vmem [resolvable:$true] %s57
      %60 = dma.vmem_to_smem %s58, 16, [#allocation8], [#allocation9]
    $region25: #{tpu_custom_call.1} parent=1 // pred_fallthru
      _
    // Predicated region
    $region26: #{tpu_custom_call.1} parent=1 // pred_check
      _
    $region27: #{tpu_custom_call.1} parent=1 // pred_check_branch
      %62 = sbr.rel (0) target = $region29
    $region28: #{tpu_custom_call.1} parent=1 // pred_region
      _
    $region29: #{tpu_custom_call.1} parent=1 // pred_fallthru
      _
    // Predicated region
    $region30: #{tpu_custom_call.1} parent=1 // pred_check
      _
    $region31: #{tpu_custom_call.1} parent=1 // pred_check_branch
      %64 = sbr.rel (0) target = $region33
    $region32: #{tpu_custom_call.1} parent=1 // pred_region
      _
    $region33: #{tpu_custom_call.1} parent=1 // pred_fallthru
      _
    // Predicated region
    $region34: #{tpu_custom_call.1} parent=1 // pred_check
      _
    $region35: #{tpu_custom_call.1} parent=1 // pred_check_branch
      %66 = sbr.rel (0) target = $region37
    $region36: #{tpu_custom_call.1} parent=1 // pred_region
      %67 = dma.done [#allocation4], 64
    $region37: #{tpu_custom_call.1} parent=1 // pred_fallthru
      _
    // Predicated region
    $region38: #{tpu_custom_call.1} parent=1 // pred_check
      _
    $region39: #{tpu_custom_call.1} parent=1 // pred_check_branch
      %69 = sbr.rel (0) target = $region41
    $region40: #{tpu_custom_call.1} parent=1 // pred_region
      %70 = dma.done [#allocation6], 16
    $region41: #{tpu_custom_call.1} parent=1 // pred_fallthru
      _
    // Predicated region
    $region42: #{tpu_custom_call.1} parent=1 // pred_check
      _
    $region43: #{tpu_custom_call.1} parent=1 // pred_check_branch
      %72 = sbr.rel (0) target = $region45
    $region44: #{tpu_custom_call.1} parent=1 // pred_region
      %73 = dma.done [#allocation6], 64
    $region45: #{tpu_custom_call.1} parent=1 // pred_fallthru
      _
    // Predicated region
    $region46: #{tpu_custom_call.1} parent=1 // pred_check
      _
    $region47: #{tpu_custom_call.1} parent=1 // pred_check_branch
      %75 = sbr.rel (0) target = $region49
    $region48: #{tpu_custom_call.1} parent=1 // pred_region
      %76 = dma.done [#allocation9], 16
    $region49: #{tpu_custom_call.1} parent=1 // pred_fallthru
      _
    %77 = sfence
    %v78 = vld [vmem:[%s0] sm:$0xff]
    %v79 = vld [vmem:[%s0 + $0x8] sm:$0xff]
    %v80 = vmul.f32 %v78, 0.003921569
    %v81 = vmul.f32 %v79, 0.003921569
    %v82 = vld [vmem:[%s1] sm:$0xff]
    %v83 = vld [vmem:[%s1 + $0x8] sm:$0xff]
    %v84 = vld [vmem:[%s1 + $0x10] sm:$0x1]
    %v85 = vld [vmem:[%s1 + $0x18] sm:$0x1]
    %88 = vrot.lane.b32.xlu0 %v80, 17
    %v89 = vpop.permute.xlu0 %88
    %90 = vrot.lane.b32.xlu0 %v81, 17
    %v91 = vpop.permute.xlu0 %90
    %vm92 = vcmask 138240
    %v93 = vsel %vm92, %v89, %v91
    %v97 = vsel %vm92, 0.0, %v89
    %v98 = vsel %vm92, %v91, 0.0
    %v99 = vlaneseq
    %v100 = vshrl.u32 %v99, 7
    %v101 = vsub.s32 0, %v100
    %v102 = vrot.slane %v82, %v101
    %v103 = vlaneseq
    %v104 = vshrl.u32 %v103, 7
    %v105 = vsub.s32 0, %v104
    %v106 = vrot.slane %v83, %v105
    %v107 = vmul.f32 %v97, %v102
    %v108 = vmul.f32 %v93, %v106
    %v109 = vlaneseq
    %v110 = vshrl.u32 %v109, 7
    %v111 = vsub.s32 1, %v110
    %v112 = vrot.slane %v82, %v111
    %v113 = vlaneseq
    %v114 = vshrl.u32 %v113, 7
    %v115 = vsub.s32 1, %v114
    %v116 = vrot.slane %v83, %v115
    %119 = vrot.lane.b32.xlu0 %v112, 1
    %v120 = vpop.permute.xlu0 %119
    %121 = vrot.lane.b32.xlu0 %v116, 1
    %v122 = vpop.permute.xlu0 %121
    %vm123 = vcmask 7168
    %v124 = vsel %vm123, %v120, %v122
    %v128 = vmul.f32 %v97, %v120
    %v129 = vmul.f32 %v93, %v124
    %v130 = vmul.f32 %v98, %v122
    %v131 = vlaneseq
    %v132 = vshrl.u32 %v131, 7
    %v133 = vsub.s32 2, %v132
    %v134 = vrot.slane %v82, %v133
    %v135 = vlaneseq
    %v136 = vshrl.u32 %v135, 7
    %v137 = vsub.s32 2, %v136
    %v138 = vrot.slane %v83, %v137
    %141 = vrot.lane.b32.xlu0 %v134, 2
    %v142 = vpop.permute.xlu0 %141
    %143 = vrot.lane.b32.xlu0 %v138, 2
    %v144 = vpop.permute.xlu0 %143
    %vm145 = vcmask 15360
    %v146 = vsel %vm145, %v142, %v144
    %v150 = vmul.f32 %v97, %v142
    %v151 = vmul.f32 %v93, %v146
    %v152 = vmul.f32 %v98, %v144
    %v153 = vlaneseq
    %v154 = vshrl.u32 %v153, 7
    %v155 = vsub.s32 3, %v154
    %v156 = vrot.slane %v82, %v155
    %v157 = vlaneseq
    %v158 = vshrl.u32 %v157, 7
    %v159 = vsub.s32 3, %v158
    %v160 = vrot.slane %v83, %v159
    %163 = vrot.lane.b32.xlu0 %v156, 16
    %v164 = vpop.permute.xlu0 %163
    %165 = vrot.lane.b32.xlu0 %v160, 16
    %v166 = vpop.permute.xlu0 %165
    %vm167 = vcmask 130048
    %v168 = vsel %vm167, %v164, %v166
    %v172 = vmul.f32 %v97, %v164
    %v173 = vmul.f32 %v93, %v168
    %v174 = vmul.f32 %v98, %v166
    %v175 = vlaneseq
    %v176 = vshrl.u32 %v175, 7
    %v177 = vsub.s32 5, %v176
    %v178 = vrot.slane %v82, %v177
    %v179 = vlaneseq
    %v180 = vshrl.u32 %v179, 7
    %v181 = vsub.s32 5, %v180
    %v182 = vrot.slane %v83, %v181
    %185 = vrot.lane.b32.xlu0 %v178, 18
    %v186 = vpop.permute.xlu0 %185
    %187 = vrot.lane.b32.xlu0 %v182, 18
    %v188 = vpop.permute.xlu0 %187
    %vm189 = vcmask 146432
    %v190 = vsel %vm189, %v186, %v188
    %v194 = vmul.f32 %v97, %v186
    %v195 = vmul.f32 %v93, %v190
    %v196 = vmul.f32 %v98, %v188
    %v197 = vlaneseq
    %v198 = vshrl.u32 %v197, 7
    %v199 = vsub.s32 6, %v198
    %v200 = vrot.slane %v82, %v199
    %v201 = vlaneseq
    %v202 = vshrl.u32 %v201, 7
    %v203 = vsub.s32 6, %v202
    %v204 = vrot.slane %v83, %v203
    %207 = vrot.lane.b32.xlu0 %v200, 32
    %v208 = vpop.permute.xlu0 %207
    %209 = vrot.lane.b32.xlu0 %v204, 32
    %v210 = vpop.permute.xlu0 %209
    %vm211 = vcmask 261120
    %v212 = vsel %vm211, %v208, %v210
    %v216 = vmul.f32 %v97, %v208
    %v217 = vmul.f32 %v93, %v212
    %v218 = vmul.f32 %v98, %v210
    %v219 = vlaneseq
    %v220 = vshrl.u32 %v219, 7
    %v221 = vsub.s32 7, %v220
    %v222 = vrot.slane %v82, %v221
    %v223 = vlaneseq
    %v224 = vshrl.u32 %v223, 7
    %v225 = vsub.s32 7, %v224
    %v226 = vrot.slane %v83, %v225
    %229 = vrot.lane.b32.xlu0 %v222, 33
    %v230 = vpop.permute.xlu0 %229
    %231 = vrot.lane.b32.xlu0 %v226, 33
    %v232 = vpop.permute.xlu0 %231
    %vm233 = vcmask 269312
    %v234 = vsel %vm233, %v230, %v232
    %v238 = vmul.f32 %v97, %v230
    %v239 = vmul.f32 %v93, %v234
    %v240 = vmul.f32 %v98, %v232
    %v241 = vlaneseq
    %v242 = vshrl.u32 %v241, 7
    %v243 = vsub.s32 0, %v242
    %v244 = vrot.slane %v84, %v243
    %v245 = vlaneseq
    %v246 = vshrl.u32 %v245, 7
    %v247 = vsub.s32 0, %v246
    %v248 = vrot.slane %v85, %v247
    %251 = vrot.lane.b32.xlu0 %v244, 34
    %v252 = vpop.permute.xlu0 %251
    %253 = vrot.lane.b32.xlu0 %v248, 34
    %v254 = vpop.permute.xlu0 %253
    %vm255 = vcmask 277504
    %v256 = vsel %vm255, %v252, %v254
    %v260 = vmul.f32 %v97, %v252
    %v261 = vmul.f32 %v93, %v256
    %v262 = vmul.f32 %v98, %v254
    %s263 = sld [smem:[#allocation5]]
    %v264 = vstv %s263
    %s265 = sld [smem:[#allocation2]]
    %v266 = vstv %s265
    %v267 = vmul.f32 %v266, %v107
    %v268 = vmul.f32 %v266, %v108
    %v269 = vadd.f32 %v264, %v267
    %v270 = vadd.f32 %v264, %v268
    %s271 = sld [smem:[#allocation2 + $0x1]]
    %v272 = vstv %s271
    %v273 = vmul.f32 %v272, %v128
    %v274 = vmul.f32 %v272, %v129
    %v275 = vmul.f32 %v272, %v130
    %279 = vrot.lane.b32.xlu0 %v273, 127
    %v280 = vpop.permute.xlu0 %279
    %281 = vrot.lane.b32.xlu0 %v274, 127
    %v282 = vpop.permute.xlu0 %281
    %283 = vrot.lane.b32.xlu0 %v275, 127
    %v284 = vpop.permute.xlu0 %283
    %vm285 = vcmask 1039360
    %v286 = vsel %vm285, %v280, %v282
    %v287 = vsel %vm285, %v282, %v284
    %v290 = vadd.f32 %v269, %v286
    %v291 = vadd.f32 %v270, %v287
    %s292 = sld [smem:[#allocation2 + $0x2]]
    %v293 = vstv %s292
    %v294 = vmul.f32 %v293, %v150
    %v295 = vmul.f32 %v293, %v151
    %v296 = vmul.f32 %v293, %v152
    %300 = vrot.lane.b32.xlu0 %v294, 126
    %v301 = vpop.permute.xlu0 %300
    %302 = vrot.lane.b32.xlu0 %v295, 126
    %v303 = vpop.permute.xlu0 %302
    %304 = vrot.lane.b32.xlu0 %v296, 126
    %v305 = vpop.permute.xlu0 %304
    %vm306 = vcmask 1031168
    %v307 = vsel %vm306, %v301, %v303
    %v308 = vsel %vm306, %v303, %v305
    %v311 = vadd.f32 %v290, %v307
    %v312 = vadd.f32 %v291, %v308
    %s313 = sld [smem:[#allocation2 + $0x3]]
    %v314 = vstv %s313
    %v315 = vmul.f32 %v314, %v172
    %v316 = vmul.f32 %v314, %v173
    %v317 = vmul.f32 %v314, %v174
    %321 = vrot.lane.b32.xlu0 %v315, 112
    %v322 = vpop.permute.xlu0 %321
    %323 = vrot.lane.b32.xlu0 %v316, 112
    %v324 = vpop.permute.xlu0 %323
    %325 = vrot.lane.b32.xlu0 %v317, 112
    %v326 = vpop.permute.xlu0 %325
    %vm327 = vcmask 916480
    %v328 = vsel %vm327, %v322, %v324
    %v329 = vsel %vm327, %v324, %v326
    %v332 = vadd.f32 %v311, %v328
    %v333 = vadd.f32 %v312, %v329
    %s334 = sld [smem:[#allocation2 + $0x4]]
    %v335 = vstv %s334
    %v336 = vmul.f32 %v335, %v80
    %v337 = vmul.f32 %v335, %v81
    %v338 = vadd.f32 %v332, %v336
    %v339 = vadd.f32 %v333, %v337
    %s340 = sld [smem:[#allocation2 + $0x5]]
    %v341 = vstv %s340
    %v342 = vmul.f32 %v341, %v194
    %v343 = vmul.f32 %v341, %v195
    %v344 = vmul.f32 %v341, %v196
    %348 = vrot.lane.b32.xlu0 %v342, 110
    %v349 = vpop.permute.xlu0 %348
    %350 = vrot.lane.b32.xlu0 %v343, 110
    %v351 = vpop.permute.xlu0 %350
    %352 = vrot.lane.b32.xlu0 %v344, 110
    %v353 = vpop.permute.xlu0 %352
    %vm354 = vcmask 900096
    %v355 = vsel %vm354, %v349, %v351
    %v356 = vsel %vm354, %v351, %v353
    %v359 = vadd.f32 %v338, %v355
    %v360 = vadd.f32 %v339, %v356
    %s361 = sld [smem:[#allocation2 + $0x6]]
    %v362 = vstv %s361
    %v363 = vmul.f32 %v362, %v216
    %v364 = vmul.f32 %v362, %v217
    %v365 = vmul.f32 %v362, %v218
    %369 = vrot.lane.b32.xlu0 %v363, 96
    %v370 = vpop.permute.xlu0 %369
    %371 = vrot.lane.b32.xlu0 %v364, 96
    %v372 = vpop.permute.xlu0 %371
    %373 = vrot.lane.b32.xlu0 %v365, 96
    %v374 = vpop.permute.xlu0 %373
    %vm375 = vcmask 785408
    %v376 = vsel %vm375, %v370, %v372
    %v377 = vsel %vm375, %v372, %v374
    %v380 = vadd.f32 %v359, %v376
    %v381 = vadd.f32 %v360, %v377
    %s382 = sld [smem:[#allocation2 + $0x7]]
    %v383 = vstv %s382
    %v384 = vmul.f32 %v383, %v238
    %v385 = vmul.f32 %v383, %v239
    %v386 = vmul.f32 %v383, %v240
    %390 = vrot.lane.b32.xlu0 %v384, 95
    %v391 = vpop.permute.xlu0 %390
    %392 = vrot.lane.b32.xlu0 %v385, 95
    %v393 = vpop.permute.xlu0 %392
    %394 = vrot.lane.b32.xlu0 %v386, 95
    %v395 = vpop.permute.xlu0 %394
    %vm396 = vcmask 777216
    %v397 = vsel %vm396, %v391, %v393
    %v398 = vsel %vm396, %v393, %v395
    %v401 = vadd.f32 %v380, %v397
    %v402 = vadd.f32 %v381, %v398
    %s403 = sld [smem:[#allocation2 + $0x8]]
    %v404 = vstv %s403
    %v405 = vmul.f32 %v404, %v260
    %v406 = vmul.f32 %v404, %v261
    %v407 = vmul.f32 %v404, %v262
    %411 = vrot.lane.b32.xlu0 %v405, 94
    %v412 = vpop.permute.xlu0 %411
    %413 = vrot.lane.b32.xlu0 %v406, 94
    %v414 = vpop.permute.xlu0 %413
    %415 = vrot.lane.b32.xlu0 %v407, 94
    %v416 = vpop.permute.xlu0 %415
    %vm417 = vcmask 769024
    %v418 = vsel %vm417, %v412, %v414
    %v419 = vsel %vm417, %v414, %v416
    %v422 = vadd.f32 %v401, %v418
    %v423 = vadd.f32 %v402, %v419
    %v424 = vmax.f32 %v422, 0.0
    %v425 = vmax.f32 %v423, 0.0
    %s426 = sld [smem:[#allocation5 + $0x1]]
    %v427 = vstv %s426
    %s428 = sld [smem:[#allocation2 + $0x80]]
    %v429 = vstv %s428
    %v430 = vmul.f32 %v429, %v107
    %v431 = vmul.f32 %v429, %v108
    %v432 = vadd.f32 %v427, %v430
    %v433 = vadd.f32 %v427, %v431
    %s434 = sld [smem:[#allocation2 + $0x81]]
    %v435 = vstv %s434
    %v436 = vmul.f32 %v435, %v128
    %v437 = vmul.f32 %v435, %v129
    %v438 = vmul.f32 %v435, %v130
    %442 = vrot.lane.b32.xlu0 %v436, 127
    %v443 = vpop.permute.xlu0 %442
    %444 = vrot.lane.b32.xlu0 %v437, 127
    %v445 = vpop.permute.xlu0 %444
    %446 = vrot.lane.b32.xlu0 %v438, 127
    %v447 = vpop.permute.xlu0 %446
    %v448 = vsel %vm285, %v443, %v445
    %v449 = vsel %vm285, %v445, %v447
    %v452 = vadd.f32 %v432, %v448
    %v453 = vadd.f32 %v433, %v449
    %s454 = sld [smem:[#allocation2 + $0x82]]
    %v455 = vstv %s454
    %v456 = vmul.f32 %v455, %v150
    %v457 = vmul.f32 %v455, %v151
    %v458 = vmul.f32 %v455, %v152
    %462 = vrot.lane.b32.xlu0 %v456, 126
    %v463 = vpop.permute.xlu0 %462
    %464 = vrot.lane.b32.xlu0 %v457, 126
    %v465 = vpop.permute.xlu0 %464
    %466 = vrot.lane.b32.xlu0 %v458, 126
    %v467 = vpop.permute.xlu0 %466
    %v468 = vsel %vm306, %v463, %v465
    %v469 = vsel %vm306, %v465, %v467
    %v472 = vadd.f32 %v452, %v468
    %v473 = vadd.f32 %v453, %v469
    %s474 = sld [smem:[#allocation2 + $0x83]]
    %v475 = vstv %s474
    %v476 = vmul.f32 %v475, %v172
    %v477 = vmul.f32 %v475, %v173
    %v478 = vmul.f32 %v475, %v174
    %482 = vrot.lane.b32.xlu0 %v476, 112
    %v483 = vpop.permute.xlu0 %482
    %484 = vrot.lane.b32.xlu0 %v477, 112
    %v485 = vpop.permute.xlu0 %484
    %486 = vrot.lane.b32.xlu0 %v478, 112
    %v487 = vpop.permute.xlu0 %486
    %v488 = vsel %vm327, %v483, %v485
    %v489 = vsel %vm327, %v485, %v487
    %v492 = vadd.f32 %v472, %v488
    %v493 = vadd.f32 %v473, %v489
    %s494 = sld [smem:[#allocation2 + $0x84]]
    %v495 = vstv %s494
    %v496 = vmul.f32 %v495, %v80
    %v497 = vmul.f32 %v495, %v81
    %v498 = vadd.f32 %v492, %v496
    %v499 = vadd.f32 %v493, %v497
    %s500 = sld [smem:[#allocation2 + $0x85]]
    %v501 = vstv %s500
    %v502 = vmul.f32 %v501, %v194
    %v503 = vmul.f32 %v501, %v195
    %v504 = vmul.f32 %v501, %v196
    %508 = vrot.lane.b32.xlu0 %v502, 110
    %v509 = vpop.permute.xlu0 %508
    %510 = vrot.lane.b32.xlu0 %v503, 110
    %v511 = vpop.permute.xlu0 %510
    %512 = vrot.lane.b32.xlu0 %v504, 110
    %v513 = vpop.permute.xlu0 %512
    %v514 = vsel %vm354, %v509, %v511
    %v515 = vsel %vm354, %v511, %v513
    %v518 = vadd.f32 %v498, %v514
    %v519 = vadd.f32 %v499, %v515
    %s520 = sld [smem:[#allocation2 + $0x86]]
    %v521 = vstv %s520
    %v522 = vmul.f32 %v521, %v216
    %v523 = vmul.f32 %v521, %v217
    %v524 = vmul.f32 %v521, %v218
    %528 = vrot.lane.b32.xlu0 %v522, 96
    %v529 = vpop.permute.xlu0 %528
    %530 = vrot.lane.b32.xlu0 %v523, 96
    %v531 = vpop.permute.xlu0 %530
    %532 = vrot.lane.b32.xlu0 %v524, 96
    %v533 = vpop.permute.xlu0 %532
    %v534 = vsel %vm375, %v529, %v531
    %v535 = vsel %vm375, %v531, %v533
    %v538 = vadd.f32 %v518, %v534
    %v539 = vadd.f32 %v519, %v535
    %s540 = sld [smem:[#allocation2 + $0x87]]
    %v541 = vstv %s540
    %v542 = vmul.f32 %v541, %v238
    %v543 = vmul.f32 %v541, %v239
    %v544 = vmul.f32 %v541, %v240
    %548 = vrot.lane.b32.xlu0 %v542, 95
    %v549 = vpop.permute.xlu0 %548
    %550 = vrot.lane.b32.xlu0 %v543, 95
    %v551 = vpop.permute.xlu0 %550
    %552 = vrot.lane.b32.xlu0 %v544, 95
    %v553 = vpop.permute.xlu0 %552
    %v554 = vsel %vm396, %v549, %v551
    %v555 = vsel %vm396, %v551, %v553
    %v558 = vadd.f32 %v538, %v554
    %v559 = vadd.f32 %v539, %v555
    %s560 = sld [smem:[#allocation2 + $0x88]]
    %v561 = vstv %s560
    %v562 = vmul.f32 %v561, %v260
    %v563 = vmul.f32 %v561, %v261
    %v564 = vmul.f32 %v561, %v262
    %568 = vrot.lane.b32.xlu0 %v562, 94
    %v569 = vpop.permute.xlu0 %568
    %570 = vrot.lane.b32.xlu0 %v563, 94
    %v571 = vpop.permute.xlu0 %570
    %572 = vrot.lane.b32.xlu0 %v564, 94
    %v573 = vpop.permute.xlu0 %572
    %v574 = vsel %vm417, %v569, %v571
    %v575 = vsel %vm417, %v571, %v573
    %v578 = vadd.f32 %v558, %v574
    %v579 = vadd.f32 %v559, %v575
    %v580 = vmax.f32 %v578, 0.0
    %v581 = vmax.f32 %v579, 0.0
    %s582 = sld [smem:[#allocation5 + $0x2]]
    %v583 = vstv %s582
    %s584 = sld [smem:[#allocation2 + $0x100]]
    %v585 = vstv %s584
    %v586 = vmul.f32 %v585, %v107
    %v587 = vmul.f32 %v585, %v108
    %v588 = vadd.f32 %v583, %v586
    %v589 = vadd.f32 %v583, %v587
    %s590 = sld [smem:[#allocation2 + $0x101]]
    %v591 = vstv %s590
    %v592 = vmul.f32 %v591, %v128
    %v593 = vmul.f32 %v591, %v129
    %v594 = vmul.f32 %v591, %v130
    %598 = vrot.lane.b32.xlu0 %v592, 127
    %v599 = vpop.permute.xlu0 %598
    %600 = vrot.lane.b32.xlu0 %v593, 127
    %v601 = vpop.permute.xlu0 %600
    %602 = vrot.lane.b32.xlu0 %v594, 127
    %v603 = vpop.permute.xlu0 %602
    %v604 = vsel %vm285, %v599, %v601
    %v605 = vsel %vm285, %v601, %v603
    %v608 = vadd.f32 %v588, %v604
    %v609 = vadd.f32 %v589, %v605
    %s610 = sld [smem:[#allocation2 + $0x102]]
    %v611 = vstv %s610
    %v612 = vmul.f32 %v611, %v150
    %v613 = vmul.f32 %v611, %v151
    %v614 = vmul.f32 %v611, %v152
    %618 = vrot.lane.b32.xlu0 %v612, 126
    %v619 = vpop.permute.xlu0 %618
    %620 = vrot.lane.b32.xlu0 %v613, 126
    %v621 = vpop.permute.xlu0 %620
    %622 = vrot.lane.b32.xlu0 %v614, 126
    %v623 = vpop.permute.xlu0 %622
    %v624 = vsel %vm306, %v619, %v621
    %v625 = vsel %vm306, %v621, %v623
    %v628 = vadd.f32 %v608, %v624
    %v629 = vadd.f32 %v609, %v625
    %s630 = sld [smem:[#allocation2 + $0x103]]
    %v631 = vstv %s630
    %v632 = vmul.f32 %v631, %v172
    %v633 = vmul.f32 %v631, %v173
    %v634 = vmul.f32 %v631, %v174
    %638 = vrot.lane.b32.xlu0 %v632, 112
    %v639 = vpop.permute.xlu0 %638
    %640 = vrot.lane.b32.xlu0 %v633, 112
    %v641 = vpop.permute.xlu0 %640
    %642 = vrot.lane.b32.xlu0 %v634, 112
    %v643 = vpop.permute.xlu0 %642
    %v644 = vsel %vm327, %v639, %v641
    %v645 = vsel %vm327, %v641, %v643
    %v648 = vadd.f32 %v628, %v644
    %v649 = vadd.f32 %v629, %v645
    %s650 = sld [smem:[#allocation2 + $0x104]]
    %v651 = vstv %s650
    %v652 = vmul.f32 %v651, %v80
    %v653 = vmul.f32 %v651, %v81
    %v654 = vadd.f32 %v648, %v652
    %v655 = vadd.f32 %v649, %v653
    %s656 = sld [smem:[#allocation2 + $0x105]]
    %v657 = vstv %s656
    %v658 = vmul.f32 %v657, %v194
    %v659 = vmul.f32 %v657, %v195
    %v660 = vmul.f32 %v657, %v196
    %664 = vrot.lane.b32.xlu0 %v658, 110
    %v665 = vpop.permute.xlu0 %664
    %666 = vrot.lane.b32.xlu0 %v659, 110
    %v667 = vpop.permute.xlu0 %666
    %668 = vrot.lane.b32.xlu0 %v660, 110
    %v669 = vpop.permute.xlu0 %668
    %v670 = vsel %vm354, %v665, %v667
    %v671 = vsel %vm354, %v667, %v669
    %v674 = vadd.f32 %v654, %v670
    %v675 = vadd.f32 %v655, %v671
    %s676 = sld [smem:[#allocation2 + $0x106]]
    %v677 = vstv %s676
    %v678 = vmul.f32 %v677, %v216
    %v679 = vmul.f32 %v677, %v217
    %v680 = vmul.f32 %v677, %v218
    %684 = vrot.lane.b32.xlu0 %v678, 96
    %v685 = vpop.permute.xlu0 %684
    %686 = vrot.lane.b32.xlu0 %v679, 96
    %v687 = vpop.permute.xlu0 %686
    %688 = vrot.lane.b32.xlu0 %v680, 96
    %v689 = vpop.permute.xlu0 %688
    %v690 = vsel %vm375, %v685, %v687
    %v691 = vsel %vm375, %v687, %v689
    %v694 = vadd.f32 %v674, %v690
    %v695 = vadd.f32 %v675, %v691
    %s696 = sld [smem:[#allocation2 + $0x107]]
    %v697 = vstv %s696
    %v698 = vmul.f32 %v697, %v238
    %v699 = vmul.f32 %v697, %v239
    %v700 = vmul.f32 %v697, %v240
    %704 = vrot.lane.b32.xlu0 %v698, 95
    %v705 = vpop.permute.xlu0 %704
    %706 = vrot.lane.b32.xlu0 %v699, 95
    %v707 = vpop.permute.xlu0 %706
    %708 = vrot.lane.b32.xlu0 %v700, 95
    %v709 = vpop.permute.xlu0 %708
    %v710 = vsel %vm396, %v705, %v707
    %v711 = vsel %vm396, %v707, %v709
    %v714 = vadd.f32 %v694, %v710
    %v715 = vadd.f32 %v695, %v711
    %s716 = sld [smem:[#allocation2 + $0x108]]
    %v717 = vstv %s716
    %v718 = vmul.f32 %v717, %v260
    %v719 = vmul.f32 %v717, %v261
    %v720 = vmul.f32 %v717, %v262
    %724 = vrot.lane.b32.xlu0 %v718, 94
    %v725 = vpop.permute.xlu0 %724
    %726 = vrot.lane.b32.xlu0 %v719, 94
    %v727 = vpop.permute.xlu0 %726
    %728 = vrot.lane.b32.xlu0 %v720, 94
    %v729 = vpop.permute.xlu0 %728
    %v730 = vsel %vm417, %v725, %v727
    %v731 = vsel %vm417, %v727, %v729
    %v734 = vadd.f32 %v714, %v730
    %v735 = vadd.f32 %v715, %v731
    %v736 = vmax.f32 %v734, 0.0
    %v737 = vmax.f32 %v735, 0.0
    %s738 = sld [smem:[#allocation5 + $0x3]]
    %v739 = vstv %s738
    %s740 = sld [smem:[#allocation2 + $0x180]]
    %v741 = vstv %s740
    %v742 = vmul.f32 %v741, %v107
    %v743 = vmul.f32 %v741, %v108
    %v744 = vadd.f32 %v739, %v742
    %v745 = vadd.f32 %v739, %v743
    %s746 = sld [smem:[#allocation2 + $0x181]]
    %v747 = vstv %s746
    %v748 = vmul.f32 %v747, %v128
    %v749 = vmul.f32 %v747, %v129
    %v750 = vmul.f32 %v747, %v130
    %754 = vrot.lane.b32.xlu0 %v748, 127
    %v755 = vpop.permute.xlu0 %754
    %756 = vrot.lane.b32.xlu0 %v749, 127
    %v757 = vpop.permute.xlu0 %756
    %758 = vrot.lane.b32.xlu0 %v750, 127
    %v759 = vpop.permute.xlu0 %758
    %v760 = vsel %vm285, %v755, %v757
    %v761 = vsel %vm285, %v757, %v759
    %v764 = vadd.f32 %v744, %v760
    %v765 = vadd.f32 %v745, %v761
    %s766 = sld [smem:[#allocation2 + $0x182]]
    %v767 = vstv %s766
    %v768 = vmul.f32 %v767, %v150
    %v769 = vmul.f32 %v767, %v151
    %v770 = vmul.f32 %v767, %v152
    %774 = vrot.lane.b32.xlu0 %v768, 126
    %v775 = vpop.permute.xlu0 %774
    %776 = vrot.lane.b32.xlu0 %v769, 126
    %v777 = vpop.permute.xlu0 %776
    %778 = vrot.lane.b32.xlu0 %v770, 126
    %v779 = vpop.permute.xlu0 %778
    %v780 = vsel %vm306, %v775, %v777
    %v781 = vsel %vm306, %v777, %v779
    %v784 = vadd.f32 %v764, %v780
    %v785 = vadd.f32 %v765, %v781
    %s786 = sld [smem:[#allocation2 + $0x183]]
    %v787 = vstv %s786
    %v788 = vmul.f32 %v787, %v172
    %v789 = vmul.f32 %v787, %v173
    %v790 = vmul.f32 %v787, %v174
    %794 = vrot.lane.b32.xlu0 %v788, 112
    %v795 = vpop.permute.xlu0 %794
    %796 = vrot.lane.b32.xlu0 %v789, 112
    %v797 = vpop.permute.xlu0 %796
    %798 = vrot.lane.b32.xlu0 %v790, 112
    %v799 = vpop.permute.xlu0 %798
    %v800 = vsel %vm327, %v795, %v797
    %v801 = vsel %vm327, %v797, %v799
    %v804 = vadd.f32 %v784, %v800
    %v805 = vadd.f32 %v785, %v801
    %s806 = sld [smem:[#allocation2 + $0x184]]
    %v807 = vstv %s806
    %v808 = vmul.f32 %v807, %v80
    %v809 = vmul.f32 %v807, %v81
    %v810 = vadd.f32 %v804, %v808
    %v811 = vadd.f32 %v805, %v809
    %s812 = sld [smem:[#allocation2 + $0x185]]
    %v813 = vstv %s812
    %v814 = vmul.f32 %v813, %v194
    %v815 = vmul.f32 %v813, %v195
    %v816 = vmul.f32 %v813, %v196
    %820 = vrot.lane.b32.xlu0 %v814, 110
    %v821 = vpop.permute.xlu0 %820
    %822 = vrot.lane.b32.xlu0 %v815, 110
    %v823 = vpop.permute.xlu0 %822
    %824 = vrot.lane.b32.xlu0 %v816, 110
    %v825 = vpop.permute.xlu0 %824
    %v826 = vsel %vm354, %v821, %v823
    %v827 = vsel %vm354, %v823, %v825
    %v830 = vadd.f32 %v810, %v826
    %v831 = vadd.f32 %v811, %v827
    %s832 = sld [smem:[#allocation2 + $0x186]]
    %v833 = vstv %s832
    %v834 = vmul.f32 %v833, %v216
    %v835 = vmul.f32 %v833, %v217
    %v836 = vmul.f32 %v833, %v218
    %840 = vrot.lane.b32.xlu0 %v834, 96
    %v841 = vpop.permute.xlu0 %840
    %842 = vrot.lane.b32.xlu0 %v835, 96
    %v843 = vpop.permute.xlu0 %842
    %844 = vrot.lane.b32.xlu0 %v836, 96
    %v845 = vpop.permute.xlu0 %844
    %v846 = vsel %vm375, %v841, %v843
    %v847 = vsel %vm375, %v843, %v845
    %v850 = vadd.f32 %v830, %v846
    %v851 = vadd.f32 %v831, %v847
    %s852 = sld [smem:[#allocation2 + $0x187]]
    %v853 = vstv %s852
    %v854 = vmul.f32 %v853, %v238
    %v855 = vmul.f32 %v853, %v239
    %v856 = vmul.f32 %v853, %v240
    %860 = vrot.lane.b32.xlu0 %v854, 95
    %v861 = vpop.permute.xlu0 %860
    %862 = vrot.lane.b32.xlu0 %v855, 95
    %v863 = vpop.permute.xlu0 %862
    %864 = vrot.lane.b32.xlu0 %v856, 95
    %v865 = vpop.permute.xlu0 %864
    %v866 = vsel %vm396, %v861, %v863
    %v867 = vsel %vm396, %v863, %v865
    %v870 = vadd.f32 %v850, %v866
    %v871 = vadd.f32 %v851, %v867
    %s872 = sld [smem:[#allocation2 + $0x188]]
    %v873 = vstv %s872
    %v874 = vmul.f32 %v873, %v260
    %v875 = vmul.f32 %v873, %v261
    %v876 = vmul.f32 %v873, %v262
    %880 = vrot.lane.b32.xlu0 %v874, 94
    %v881 = vpop.permute.xlu0 %880
    %882 = vrot.lane.b32.xlu0 %v875, 94
    %v883 = vpop.permute.xlu0 %882
    %884 = vrot.lane.b32.xlu0 %v876, 94
    %v885 = vpop.permute.xlu0 %884
    %v886 = vsel %vm417, %v881, %v883
    %v887 = vsel %vm417, %v883, %v885
    %v890 = vadd.f32 %v870, %v886
    %v891 = vadd.f32 %v871, %v887
    %v892 = vmax.f32 %v890, 0.0
    %v893 = vmax.f32 %v891, 0.0
    %s894 = sld [smem:[#allocation8]]
    %v895 = vstv %s894
    %s896 = sld [smem:[#allocation8 + $0x1]]
    %v897 = vstv %s896
    %s898 = sld [smem:[#allocation8 + $0x2]]
    %v899 = vstv %s898
    %902 = vrot.lane.b32.xlu0 %v424, 17
    %v903 = vpop.permute.xlu0 %902
    %904 = vrot.lane.b32.xlu0 %v425, 17
    %v905 = vpop.permute.xlu0 %904
    %v906 = vsel %vm92, %v903, %v905
    %v910 = vsel %vm92, 0.0, %v903
    %v911 = vsel %vm92, %v905, 0.0
    %v912 = vmul.f32 %v910, %v102
    %v913 = vmul.f32 %v906, %v106
    %v914 = vmul.f32 %v910, %v120
    %v915 = vmul.f32 %v906, %v124
    %v916 = vmul.f32 %v911, %v122
    %v917 = vmul.f32 %v910, %v142
    %v918 = vmul.f32 %v906, %v146
    %v919 = vmul.f32 %v911, %v144
    %v920 = vmul.f32 %v910, %v164
    %v921 = vmul.f32 %v906, %v168
    %v922 = vmul.f32 %v911, %v166
    %v923 = vmul.f32 %v910, %v186
    %v924 = vmul.f32 %v906, %v190
    %v925 = vmul.f32 %v911, %v188
    %v926 = vmul.f32 %v910, %v208
    %v927 = vmul.f32 %v906, %v212
    %v928 = vmul.f32 %v911, %v210
    %v929 = vmul.f32 %v910, %v230
    %v930 = vmul.f32 %v906, %v234
    %v931 = vmul.f32 %v911, %v232
    %v932 = vmul.f32 %v910, %v252
    %v933 = vmul.f32 %v906, %v256
    %v934 = vmul.f32 %v911, %v254
    %s935 = sld [smem:[#allocation7]]
    %v936 = vstv %s935
    %v937 = vmul.f32 %v936, %v912
    %v938 = vmul.f32 %v936, %v913
    %v939 = vadd.f32 %v895, %v937
    %v940 = vadd.f32 %v895, %v938
    %s941 = sld [smem:[#allocation7 + $0x80]]
    %v942 = vstv %s941
    %v943 = vmul.f32 %v942, %v912
    %v944 = vmul.f32 %v942, %v913
    %v945 = vadd.f32 %v897, %v943
    %v946 = vadd.f32 %v897, %v944
    %s947 = sld [smem:[#allocation7 + $0x100]]
    %v948 = vstv %s947
    %v949 = vmul.f32 %v948, %v912
    %v950 = vmul.f32 %v948, %v913
    %v951 = vadd.f32 %v899, %v949
    %v952 = vadd.f32 %v899, %v950
    %s953 = sld [smem:[#allocation7 + $0x1]]
    %v954 = vstv %s953
    %v955 = vmul.f32 %v954, %v914
    %v956 = vmul.f32 %v954, %v915
    %v957 = vmul.f32 %v954, %v916
    %961 = vrot.lane.b32.xlu0 %v955, 127
    %v962 = vpop.permute.xlu0 %961
    %963 = vrot.lane.b32.xlu0 %v956, 127
    %v964 = vpop.permute.xlu0 %963
    %965 = vrot.lane.b32.xlu0 %v957, 127
    %v966 = vpop.permute.xlu0 %965
    %v967 = vsel %vm285, %v962, %v964
    %v968 = vsel %vm285, %v964, %v966
    %v971 = vadd.f32 %v939, %v967
    %v972 = vadd.f32 %v940, %v968
    %s973 = sld [smem:[#allocation7 + $0x81]]
    %v974 = vstv %s973
    %v975 = vmul.f32 %v974, %v914
    %v976 = vmul.f32 %v974, %v915
    %v977 = vmul.f32 %v974, %v916
    %981 = vrot.lane.b32.xlu0 %v975, 127
    %v982 = vpop.permute.xlu0 %981
    %983 = vrot.lane.b32.xlu0 %v976, 127
    %v984 = vpop.permute.xlu0 %983
    %985 = vrot.lane.b32.xlu0 %v977, 127
    %v986 = vpop.permute.xlu0 %985
    %v987 = vsel %vm285, %v982, %v984
    %v988 = vsel %vm285, %v984, %v986
    %v991 = vadd.f32 %v945, %v987
    %v992 = vadd.f32 %v946, %v988
    %s993 = sld [smem:[#allocation7 + $0x101]]
    %v994 = vstv %s993
    %v995 = vmul.f32 %v994, %v914
    %v996 = vmul.f32 %v994, %v915
    %v997 = vmul.f32 %v994, %v916
    %1001 = vrot.lane.b32.xlu0 %v995, 127
    %v1002 = vpop.permute.xlu0 %1001
    %1003 = vrot.lane.b32.xlu0 %v996, 127
    %v1004 = vpop.permute.xlu0 %1003
    %1005 = vrot.lane.b32.xlu0 %v997, 127
    %v1006 = vpop.permute.xlu0 %1005
    %v1007 = vsel %vm285, %v1002, %v1004
    %v1008 = vsel %vm285, %v1004, %v1006
    %v1011 = vadd.f32 %v951, %v1007
    %v1012 = vadd.f32 %v952, %v1008
    %s1013 = sld [smem:[#allocation7 + $0x2]]
    %v1014 = vstv %s1013
    %v1015 = vmul.f32 %v1014, %v917
    %v1016 = vmul.f32 %v1014, %v918
    %v1017 = vmul.f32 %v1014, %v919
    %1021 = vrot.lane.b32.xlu0 %v1015, 126
    %v1022 = vpop.permute.xlu0 %1021
    %1023 = vrot.lane.b32.xlu0 %v1016, 126
    %v1024 = vpop.permute.xlu0 %1023
    %1025 = vrot.lane.b32.xlu0 %v1017, 126
    %v1026 = vpop.permute.xlu0 %1025
    %v1027 = vsel %vm306, %v1022, %v1024
    %v1028 = vsel %vm306, %v1024, %v1026
    %v1031 = vadd.f32 %v971, %v1027
    %v1032 = vadd.f32 %v972, %v1028
    %s1033 = sld [smem:[#allocation7 + $0x82]]
    %v1034 = vstv %s1033
    %v1035 = vmul.f32 %v1034, %v917
    %v1036 = vmul.f32 %v1034, %v918
    %v1037 = vmul.f32 %v1034, %v919
    %1041 = vrot.lane.b32.xlu0 %v1035, 126
    %v1042 = vpop.permute.xlu0 %1041
    %1043 = vrot.lane.b32.xlu0 %v1036, 126
    %v1044 = vpop.permute.xlu0 %1043
    %1045 = vrot.lane.b32.xlu0 %v1037, 126
    %v1046 = vpop.permute.xlu0 %1045
    %v1047 = vsel %vm306, %v1042, %v1044
    %v1048 = vsel %vm306, %v1044, %v1046
    %v1051 = vadd.f32 %v991, %v1047
    %v1052 = vadd.f32 %v992, %v1048
    %s1053 = sld [smem:[#allocation7 + $0x102]]
    %v1054 = vstv %s1053
    %v1055 = vmul.f32 %v1054, %v917
    %v1056 = vmul.f32 %v1054, %v918
    %v1057 = vmul.f32 %v1054, %v919
    %1061 = vrot.lane.b32.xlu0 %v1055, 126
    %v1062 = vpop.permute.xlu0 %1061
    %1063 = vrot.lane.b32.xlu0 %v1056, 126
    %v1064 = vpop.permute.xlu0 %1063
    %1065 = vrot.lane.b32.xlu0 %v1057, 126
    %v1066 = vpop.permute.xlu0 %1065
    %v1067 = vsel %vm306, %v1062, %v1064
    %v1068 = vsel %vm306, %v1064, %v1066
    %v1071 = vadd.f32 %v1011, %v1067
    %v1072 = vadd.f32 %v1012, %v1068
    %s1073 = sld [smem:[#allocation7 + $0x3]]
    %v1074 = vstv %s1073
    %v1075 = vmul.f32 %v1074, %v920
    %v1076 = vmul.f32 %v1074, %v921
    %v1077 = vmul.f32 %v1074, %v922
    %1081 = vrot.lane.b32.xlu0 %v1075, 112
    %v1082 = vpop.permute.xlu0 %1081
    %1083 = vrot.lane.b32.xlu0 %v1076, 112
    %v1084 = vpop.permute.xlu0 %1083
    %1085 = vrot.lane.b32.xlu0 %v1077, 112
    %v1086 = vpop.permute.xlu0 %1085
    %v1087 = vsel %vm327, %v1082, %v1084
    %v1088 = vsel %vm327, %v1084, %v1086
    %v1091 = vadd.f32 %v1031, %v1087
    %v1092 = vadd.f32 %v1032, %v1088
    %s1093 = sld [smem:[#allocation7 + $0x83]]
    %v1094 = vstv %s1093
    %v1095 = vmul.f32 %v1094, %v920
    %v1096 = vmul.f32 %v1094, %v921
    %v1097 = vmul.f32 %v1094, %v922
    %1101 = vrot.lane.b32.xlu0 %v1095, 112
    %v1102 = vpop.permute.xlu0 %1101
    %1103 = vrot.lane.b32.xlu0 %v1096, 112
    %v1104 = vpop.permute.xlu0 %1103
    %1105 = vrot.lane.b32.xlu0 %v1097, 112
    %v1106 = vpop.permute.xlu0 %1105
    %v1107 = vsel %vm327, %v1102, %v1104
    %v1108 = vsel %vm327, %v1104, %v1106
    %v1111 = vadd.f32 %v1051, %v1107
    %v1112 = vadd.f32 %v1052, %v1108
    %s1113 = sld [smem:[#allocation7 + $0x103]]
    %v1114 = vstv %s1113
    %v1115 = vmul.f32 %v1114, %v920
    %v1116 = vmul.f32 %v1114, %v921
    %v1117 = vmul.f32 %v1114, %v922
    %1121 = vrot.lane.b32.xlu0 %v1115, 112
    %v1122 = vpop.permute.xlu0 %1121
    %1123 = vrot.lane.b32.xlu0 %v1116, 112
    %v1124 = vpop.permute.xlu0 %1123
    %1125 = vrot.lane.b32.xlu0 %v1117, 112
    %v1126 = vpop.permute.xlu0 %1125
    %v1127 = vsel %vm327, %v1122, %v1124
    %v1128 = vsel %vm327, %v1124, %v1126
    %v1131 = vadd.f32 %v1071, %v1127
    %v1132 = vadd.f32 %v1072, %v1128
    %s1133 = sld [smem:[#allocation7 + $0x4]]
    %v1134 = vstv %s1133
    %v1135 = vmul.f32 %v1134, %v424
    %v1136 = vmul.f32 %v1134, %v425
    %v1137 = vadd.f32 %v1091, %v1135
    %v1138 = vadd.f32 %v1092, %v1136
    %s1139 = sld [smem:[#allocation7 + $0x84]]
    %v1140 = vstv %s1139
    %v1141 = vmul.f32 %v1140, %v424
    %v1142 = vmul.f32 %v1140, %v425
    %v1143 = vadd.f32 %v1111, %v1141
    %v1144 = vadd.f32 %v1112, %v1142
    %s1145 = sld [smem:[#allocation7 + $0x104]]
    %v1146 = vstv %s1145
    %v1147 = vmul.f32 %v1146, %v424
    %v1148 = vmul.f32 %v1146, %v425
    %v1149 = vadd.f32 %v1131, %v1147
    %v1150 = vadd.f32 %v1132, %v1148
    %s1151 = sld [smem:[#allocation7 + $0x5]]
    %v1152 = vstv %s1151
    %v1153 = vmul.f32 %v1152, %v923
    %v1154 = vmul.f32 %v1152, %v924
    %v1155 = vmul.f32 %v1152, %v925
    %1159 = vrot.lane.b32.xlu0 %v1153, 110
    %v1160 = vpop.permute.xlu0 %1159
    %1161 = vrot.lane.b32.xlu0 %v1154, 110
    %v1162 = vpop.permute.xlu0 %1161
    %1163 = vrot.lane.b32.xlu0 %v1155, 110
    %v1164 = vpop.permute.xlu0 %1163
    %v1165 = vsel %vm354, %v1160, %v1162
    %v1166 = vsel %vm354, %v1162, %v1164
    %v1169 = vadd.f32 %v1137, %v1165
    %v1170 = vadd.f32 %v1138, %v1166
    %s1171 = sld [smem:[#allocation7 + $0x85]]
    %v1172 = vstv %s1171
    %v1173 = vmul.f32 %v1172, %v923
    %v1174 = vmul.f32 %v1172, %v924
    %v1175 = vmul.f32 %v1172, %v925
    %1179 = vrot.lane.b32.xlu0 %v1173, 110
    %v1180 = vpop.permute.xlu0 %1179
    %1181 = vrot.lane.b32.xlu0 %v1174, 110
    %v1182 = vpop.permute.xlu0 %1181
    %1183 = vrot.lane.b32.xlu0 %v1175, 110
    %v1184 = vpop.permute.xlu0 %1183
    %v1185 = vsel %vm354, %v1180, %v1182
    %v1186 = vsel %vm354, %v1182, %v1184
    %v1189 = vadd.f32 %v1143, %v1185
    %v1190 = vadd.f32 %v1144, %v1186
    %s1191 = sld [smem:[#allocation7 + $0x105]]
    %v1192 = vstv %s1191
    %v1193 = vmul.f32 %v1192, %v923
    %v1194 = vmul.f32 %v1192, %v924
    %v1195 = vmul.f32 %v1192, %v925
    %1199 = vrot.lane.b32.xlu0 %v1193, 110
    %v1200 = vpop.permute.xlu0 %1199
    %1201 = vrot.lane.b32.xlu0 %v1194, 110
    %v1202 = vpop.permute.xlu0 %1201
    %1203 = vrot.lane.b32.xlu0 %v1195, 110
    %v1204 = vpop.permute.xlu0 %1203
    %v1205 = vsel %vm354, %v1200, %v1202
    %v1206 = vsel %vm354, %v1202, %v1204
    %v1209 = vadd.f32 %v1149, %v1205
    %v1210 = vadd.f32 %v1150, %v1206
    %s1211 = sld [smem:[#allocation7 + $0x6]]
    %v1212 = vstv %s1211
    %v1213 = vmul.f32 %v1212, %v926
    %v1214 = vmul.f32 %v1212, %v927
    %v1215 = vmul.f32 %v1212, %v928
    %1219 = vrot.lane.b32.xlu0 %v1213, 96
    %v1220 = vpop.permute.xlu0 %1219
    %1221 = vrot.lane.b32.xlu0 %v1214, 96
    %v1222 = vpop.permute.xlu0 %1221
    %1223 = vrot.lane.b32.xlu0 %v1215, 96
    %v1224 = vpop.permute.xlu0 %1223
    %v1225 = vsel %vm375, %v1220, %v1222
    %v1226 = vsel %vm375, %v1222, %v1224
    %v1229 = vadd.f32 %v1169, %v1225
    %v1230 = vadd.f32 %v1170, %v1226
    %s1231 = sld [smem:[#allocation7 + $0x86]]
    %v1232 = vstv %s1231
    %v1233 = vmul.f32 %v1232, %v926
    %v1234 = vmul.f32 %v1232, %v927
    %v1235 = vmul.f32 %v1232, %v928
    %1239 = vrot.lane.b32.xlu0 %v1233, 96
    %v1240 = vpop.permute.xlu0 %1239
    %1241 = vrot.lane.b32.xlu0 %v1234, 96
    %v1242 = vpop.permute.xlu0 %1241
    %1243 = vrot.lane.b32.xlu0 %v1235, 96
    %v1244 = vpop.permute.xlu0 %1243
    %v1245 = vsel %vm375, %v1240, %v1242
    %v1246 = vsel %vm375, %v1242, %v1244
    %v1249 = vadd.f32 %v1189, %v1245
    %v1250 = vadd.f32 %v1190, %v1246
    %s1251 = sld [smem:[#allocation7 + $0x106]]
    %v1252 = vstv %s1251
    %v1253 = vmul.f32 %v1252, %v926
    %v1254 = vmul.f32 %v1252, %v927
    %v1255 = vmul.f32 %v1252, %v928
    %1259 = vrot.lane.b32.xlu0 %v1253, 96
    %v1260 = vpop.permute.xlu0 %1259
    %1261 = vrot.lane.b32.xlu0 %v1254, 96
    %v1262 = vpop.permute.xlu0 %1261
    %1263 = vrot.lane.b32.xlu0 %v1255, 96
    %v1264 = vpop.permute.xlu0 %1263
    %v1265 = vsel %vm375, %v1260, %v1262
    %v1266 = vsel %vm375, %v1262, %v1264
    %v1269 = vadd.f32 %v1209, %v1265
    %v1270 = vadd.f32 %v1210, %v1266
    %s1271 = sld [smem:[#allocation7 + $0x7]]
    %v1272 = vstv %s1271
    %v1273 = vmul.f32 %v1272, %v929
    %v1274 = vmul.f32 %v1272, %v930
    %v1275 = vmul.f32 %v1272, %v931
    %1279 = vrot.lane.b32.xlu0 %v1273, 95
    %v1280 = vpop.permute.xlu0 %1279
    %1281 = vrot.lane.b32.xlu0 %v1274, 95
    %v1282 = vpop.permute.xlu0 %1281
    %1283 = vrot.lane.b32.xlu0 %v1275, 95
    %v1284 = vpop.permute.xlu0 %1283
    %v1285 = vsel %vm396, %v1280, %v1282
    %v1286 = vsel %vm396, %v1282, %v1284
    %v1289 = vadd.f32 %v1229, %v1285
    %v1290 = vadd.f32 %v1230, %v1286
    %s1291 = sld [smem:[#allocation7 + $0x87]]
    %v1292 = vstv %s1291
    %v1293 = vmul.f32 %v1292, %v929
    %v1294 = vmul.f32 %v1292, %v930
    %v1295 = vmul.f32 %v1292, %v931
    %1299 = vrot.lane.b32.xlu0 %v1293, 95
    %v1300 = vpop.permute.xlu0 %1299
    %1301 = vrot.lane.b32.xlu0 %v1294, 95
    %v1302 = vpop.permute.xlu0 %1301
    %1303 = vrot.lane.b32.xlu0 %v1295, 95
    %v1304 = vpop.permute.xlu0 %1303
    %v1305 = vsel %vm396, %v1300, %v1302
    %v1306 = vsel %vm396, %v1302, %v1304
    %v1309 = vadd.f32 %v1249, %v1305
    %v1310 = vadd.f32 %v1250, %v1306
    %s1311 = sld [smem:[#allocation7 + $0x107]]
    %v1312 = vstv %s1311
    %v1313 = vmul.f32 %v1312, %v929
    %v1314 = vmul.f32 %v1312, %v930
    %v1315 = vmul.f32 %v1312, %v931
    %1319 = vrot.lane.b32.xlu0 %v1313, 95
    %v1320 = vpop.permute.xlu0 %1319
    %1321 = vrot.lane.b32.xlu0 %v1314, 95
    %v1322 = vpop.permute.xlu0 %1321
    %1323 = vrot.lane.b32.xlu0 %v1315, 95
    %v1324 = vpop.permute.xlu0 %1323
    %v1325 = vsel %vm396, %v1320, %v1322
    %v1326 = vsel %vm396, %v1322, %v1324
    %v1329 = vadd.f32 %v1269, %v1325
    %v1330 = vadd.f32 %v1270, %v1326
    %s1331 = sld [smem:[#allocation7 + $0x8]]
    %v1332 = vstv %s1331
    %v1333 = vmul.f32 %v1332, %v932
    %v1334 = vmul.f32 %v1332, %v933
    %v1335 = vmul.f32 %v1332, %v934
    %1339 = vrot.lane.b32.xlu0 %v1333, 94
    %v1340 = vpop.permute.xlu0 %1339
    %1341 = vrot.lane.b32.xlu0 %v1334, 94
    %v1342 = vpop.permute.xlu0 %1341
    %1343 = vrot.lane.b32.xlu0 %v1335, 94
    %v1344 = vpop.permute.xlu0 %1343
    %v1345 = vsel %vm417, %v1340, %v1342
    %v1346 = vsel %vm417, %v1342, %v1344
    %v1349 = vadd.f32 %v1289, %v1345
    %v1350 = vadd.f32 %v1290, %v1346
    %s1351 = sld [smem:[#allocation7 + $0x88]]
    %v1352 = vstv %s1351
    %v1353 = vmul.f32 %v1352, %v932
    %v1354 = vmul.f32 %v1352, %v933
    %v1355 = vmul.f32 %v1352, %v934
    %1359 = vrot.lane.b32.xlu0 %v1353, 94
    %v1360 = vpop.permute.xlu0 %1359
    %1361 = vrot.lane.b32.xlu0 %v1354, 94
    %v1362 = vpop.permute.xlu0 %1361
    %1363 = vrot.lane.b32.xlu0 %v1355, 94
    %v1364 = vpop.permute.xlu0 %1363
    %v1365 = vsel %vm417, %v1360, %v1362
    %v1366 = vsel %vm417, %v1362, %v1364
    %v1369 = vadd.f32 %v1309, %v1365
    %v1370 = vadd.f32 %v1310, %v1366
    %s1371 = sld [smem:[#allocation7 + $0x108]]
    %v1372 = vstv %s1371
    %v1373 = vmul.f32 %v1372, %v932
    %v1374 = vmul.f32 %v1372, %v933
    %v1375 = vmul.f32 %v1372, %v934
    %1379 = vrot.lane.b32.xlu0 %v1373, 94
    %v1380 = vpop.permute.xlu0 %1379
    %1381 = vrot.lane.b32.xlu0 %v1374, 94
    %v1382 = vpop.permute.xlu0 %1381
    %1383 = vrot.lane.b32.xlu0 %v1375, 94
    %v1384 = vpop.permute.xlu0 %1383
    %v1385 = vsel %vm417, %v1380, %v1382
    %v1386 = vsel %vm417, %v1382, %v1384
    %v1389 = vadd.f32 %v1329, %v1385
    %v1390 = vadd.f32 %v1330, %v1386
    %1393 = vrot.lane.b32.xlu0 %v580, 17
    %v1394 = vpop.permute.xlu0 %1393
    %1395 = vrot.lane.b32.xlu0 %v581, 17
    %v1396 = vpop.permute.xlu0 %1395
    %v1397 = vsel %vm92, %v1394, %v1396
    %v1401 = vsel %vm92, 0.0, %v1394
    %v1402 = vsel %vm92, %v1396, 0.0
    %v1403 = vmul.f32 %v1401, %v102
    %v1404 = vmul.f32 %v1397, %v106
    %v1405 = vmul.f32 %v1401, %v120
    %v1406 = vmul.f32 %v1397, %v124
    %v1407 = vmul.f32 %v1402, %v122
    %v1408 = vmul.f32 %v1401, %v142
    %v1409 = vmul.f32 %v1397, %v146
    %v1410 = vmul.f32 %v1402, %v144
    %v1411 = vmul.f32 %v1401, %v164
    %v1412 = vmul.f32 %v1397, %v168
    %v1413 = vmul.f32 %v1402, %v166
    %v1414 = vmul.f32 %v1401, %v186
    %v1415 = vmul.f32 %v1397, %v190
    %v1416 = vmul.f32 %v1402, %v188
    %v1417 = vmul.f32 %v1401, %v208
    %v1418 = vmul.f32 %v1397, %v212
    %v1419 = vmul.f32 %v1402, %v210
    %v1420 = vmul.f32 %v1401, %v230
    %v1421 = vmul.f32 %v1397, %v234
    %v1422 = vmul.f32 %v1402, %v232
    %v1423 = vmul.f32 %v1401, %v252
    %v1424 = vmul.f32 %v1397, %v256
    %v1425 = vmul.f32 %v1402, %v254
    %s1426 = sld [smem:[#allocation7 + $0x9]]
    %v1427 = vstv %s1426
    %v1428 = vmul.f32 %v1427, %v1403
    %v1429 = vmul.f32 %v1427, %v1404
    %v1430 = vadd.f32 %v1349, %v1428
    %v1431 = vadd.f32 %v1350, %v1429
    %s1432 = sld [smem:[#allocation7 + $0x89]]
    %v1433 = vstv %s1432
    %v1434 = vmul.f32 %v1433, %v1403
    %v1435 = vmul.f32 %v1433, %v1404
    %v1436 = vadd.f32 %v1369, %v1434
    %v1437 = vadd.f32 %v1370, %v1435
    %s1438 = sld [smem:[#allocation7 + $0x109]]
    %v1439 = vstv %s1438
    %v1440 = vmul.f32 %v1439, %v1403
    %v1441 = vmul.f32 %v1439, %v1404
    %v1442 = vadd.f32 %v1389, %v1440
    %v1443 = vadd.f32 %v1390, %v1441
    %s1444 = sld [smem:[#allocation7 + $0xa]]
    %v1445 = vstv %s1444
    %v1446 = vmul.f32 %v1445, %v1405
    %v1447 = vmul.f32 %v1445, %v1406
    %v1448 = vmul.f32 %v1445, %v1407
    %1452 = vrot.lane.b32.xlu0 %v1446, 127
    %v1453 = vpop.permute.xlu0 %1452
    %1454 = vrot.lane.b32.xlu0 %v1447, 127
    %v1455 = vpop.permute.xlu0 %1454
    %1456 = vrot.lane.b32.xlu0 %v1448, 127
    %v1457 = vpop.permute.xlu0 %1456
    %v1458 = vsel %vm285, %v1453, %v1455
    %v1459 = vsel %vm285, %v1455, %v1457
    %v1462 = vadd.f32 %v1430, %v1458
    %v1463 = vadd.f32 %v1431, %v1459
    %s1464 = sld [smem:[#allocation7 + $0x8a]]
    %v1465 = vstv %s1464
    %v1466 = vmul.f32 %v1465, %v1405
    %v1467 = vmul.f32 %v1465, %v1406
    %v1468 = vmul.f32 %v1465, %v1407
    %1472 = vrot.lane.b32.xlu0 %v1466, 127
    %v1473 = vpop.permute.xlu0 %1472
    %1474 = vrot.lane.b32.xlu0 %v1467, 127
    %v1475 = vpop.permute.xlu0 %1474
    %1476 = vrot.lane.b32.xlu0 %v1468, 127
    %v1477 = vpop.permute.xlu0 %1476
    %v1478 = vsel %vm285, %v1473, %v1475
    %v1479 = vsel %vm285, %v1475, %v1477
    %v1482 = vadd.f32 %v1436, %v1478
    %v1483 = vadd.f32 %v1437, %v1479
    %s1484 = sld [smem:[#allocation7 + $0x10a]]
    %v1485 = vstv %s1484
    %v1486 = vmul.f32 %v1485, %v1405
    %v1487 = vmul.f32 %v1485, %v1406
    %v1488 = vmul.f32 %v1485, %v1407
    %1492 = vrot.lane.b32.xlu0 %v1486, 127
    %v1493 = vpop.permute.xlu0 %1492
    %1494 = vrot.lane.b32.xlu0 %v1487, 127
    %v1495 = vpop.permute.xlu0 %1494
    %1496 = vrot.lane.b32.xlu0 %v1488, 127
    %v1497 = vpop.permute.xlu0 %1496
    %v1498 = vsel %vm285, %v1493, %v1495
    %v1499 = vsel %vm285, %v1495, %v1497
    %v1502 = vadd.f32 %v1442, %v1498
    %v1503 = vadd.f32 %v1443, %v1499
    %s1504 = sld [smem:[#allocation7 + $0xb]]
    %v1505 = vstv %s1504
    %v1506 = vmul.f32 %v1505, %v1408
    %v1507 = vmul.f32 %v1505, %v1409
    %v1508 = vmul.f32 %v1505, %v1410
    %1512 = vrot.lane.b32.xlu0 %v1506, 126
    %v1513 = vpop.permute.xlu0 %1512
    %1514 = vrot.lane.b32.xlu0 %v1507, 126
    %v1515 = vpop.permute.xlu0 %1514
    %1516 = vrot.lane.b32.xlu0 %v1508, 126
    %v1517 = vpop.permute.xlu0 %1516
    %v1518 = vsel %vm306, %v1513, %v1515
    %v1519 = vsel %vm306, %v1515, %v1517
    %v1522 = vadd.f32 %v1462, %v1518
    %v1523 = vadd.f32 %v1463, %v1519
    %s1524 = sld [smem:[#allocation7 + $0x8b]]
    %v1525 = vstv %s1524
    %v1526 = vmul.f32 %v1525, %v1408
    %v1527 = vmul.f32 %v1525, %v1409
    %v1528 = vmul.f32 %v1525, %v1410
    %1532 = vrot.lane.b32.xlu0 %v1526, 126
    %v1533 = vpop.permute.xlu0 %1532
    %1534 = vrot.lane.b32.xlu0 %v1527, 126
    %v1535 = vpop.permute.xlu0 %1534
    %1536 = vrot.lane.b32.xlu0 %v1528, 126
    %v1537 = vpop.permute.xlu0 %1536
    %v1538 = vsel %vm306, %v1533, %v1535
    %v1539 = vsel %vm306, %v1535, %v1537
    %v1542 = vadd.f32 %v1482, %v1538
    %v1543 = vadd.f32 %v1483, %v1539
    %s1544 = sld [smem:[#allocation7 + $0x10b]]
    %v1545 = vstv %s1544
    %v1546 = vmul.f32 %v1545, %v1408
    %v1547 = vmul.f32 %v1545, %v1409
    %v1548 = vmul.f32 %v1545, %v1410
    %1552 = vrot.lane.b32.xlu0 %v1546, 126
    %v1553 = vpop.permute.xlu0 %1552
    %1554 = vrot.lane.b32.xlu0 %v1547, 126
    %v1555 = vpop.permute.xlu0 %1554
    %1556 = vrot.lane.b32.xlu0 %v1548, 126
    %v1557 = vpop.permute.xlu0 %1556
    %v1558 = vsel %vm306, %v1553, %v1555
    %v1559 = vsel %vm306, %v1555, %v1557
    %v1562 = vadd.f32 %v1502, %v1558
    %v1563 = vadd.f32 %v1503, %v1559
    %s1564 = sld [smem:[#allocation7 + $0xc]]
    %v1565 = vstv %s1564
    %v1566 = vmul.f32 %v1565, %v1411
    %v1567 = vmul.f32 %v1565, %v1412
    %v1568 = vmul.f32 %v1565, %v1413
    %1572 = vrot.lane.b32.xlu0 %v1566, 112
    %v1573 = vpop.permute.xlu0 %1572
    %1574 = vrot.lane.b32.xlu0 %v1567, 112
    %v1575 = vpop.permute.xlu0 %1574
    %1576 = vrot.lane.b32.xlu0 %v1568, 112
    %v1577 = vpop.permute.xlu0 %1576
    %v1578 = vsel %vm327, %v1573, %v1575
    %v1579 = vsel %vm327, %v1575, %v1577
    %v1582 = vadd.f32 %v1522, %v1578
    %v1583 = vadd.f32 %v1523, %v1579
    %s1584 = sld [smem:[#allocation7 + $0x8c]]
    %v1585 = vstv %s1584
    %v1586 = vmul.f32 %v1585, %v1411
    %v1587 = vmul.f32 %v1585, %v1412
    %v1588 = vmul.f32 %v1585, %v1413
    %1592 = vrot.lane.b32.xlu0 %v1586, 112
    %v1593 = vpop.permute.xlu0 %1592
    %1594 = vrot.lane.b32.xlu0 %v1587, 112
    %v1595 = vpop.permute.xlu0 %1594
    %1596 = vrot.lane.b32.xlu0 %v1588, 112
    %v1597 = vpop.permute.xlu0 %1596
    %v1598 = vsel %vm327, %v1593, %v1595
    %v1599 = vsel %vm327, %v1595, %v1597
    %v1602 = vadd.f32 %v1542, %v1598
    %v1603 = vadd.f32 %v1543, %v1599
    %s1604 = sld [smem:[#allocation7 + $0x10c]]
    %v1605 = vstv %s1604
    %v1606 = vmul.f32 %v1605, %v1411
    %v1607 = vmul.f32 %v1605, %v1412
    %v1608 = vmul.f32 %v1605, %v1413
    %1612 = vrot.lane.b32.xlu0 %v1606, 112
    %v1613 = vpop.permute.xlu0 %1612
    %1614 = vrot.lane.b32.xlu0 %v1607, 112
    %v1615 = vpop.permute.xlu0 %1614
    %1616 = vrot.lane.b32.xlu0 %v1608, 112
    %v1617 = vpop.permute.xlu0 %1616
    %v1618 = vsel %vm327, %v1613, %v1615
    %v1619 = vsel %vm327, %v1615, %v1617
    %v1622 = vadd.f32 %v1562, %v1618
    %v1623 = vadd.f32 %v1563, %v1619
    %s1624 = sld [smem:[#allocation7 + $0xd]]
    %v1625 = vstv %s1624
    %v1626 = vmul.f32 %v1625, %v580
    %v1627 = vmul.f32 %v1625, %v581
    %v1628 = vadd.f32 %v1582, %v1626
    %v1629 = vadd.f32 %v1583, %v1627
    %s1630 = sld [smem:[#allocation7 + $0x8d]]
    %v1631 = vstv %s1630
    %v1632 = vmul.f32 %v1631, %v580
    %v1633 = vmul.f32 %v1631, %v581
    %v1634 = vadd.f32 %v1602, %v1632
    %v1635 = vadd.f32 %v1603, %v1633
    %s1636 = sld [smem:[#allocation7 + $0x10d]]
    %v1637 = vstv %s1636
    %v1638 = vmul.f32 %v1637, %v580
    %v1639 = vmul.f32 %v1637, %v581
    %v1640 = vadd.f32 %v1622, %v1638
    %v1641 = vadd.f32 %v1623, %v1639
    %s1642 = sld [smem:[#allocation7 + $0xe]]
    %v1643 = vstv %s1642
    %v1644 = vmul.f32 %v1643, %v1414
    %v1645 = vmul.f32 %v1643, %v1415
    %v1646 = vmul.f32 %v1643, %v1416
    %1650 = vrot.lane.b32.xlu0 %v1644, 110
    %v1651 = vpop.permute.xlu0 %1650
    %1652 = vrot.lane.b32.xlu0 %v1645, 110
    %v1653 = vpop.permute.xlu0 %1652
    %1654 = vrot.lane.b32.xlu0 %v1646, 110
    %v1655 = vpop.permute.xlu0 %1654
    %v1656 = vsel %vm354, %v1651, %v1653
    %v1657 = vsel %vm354, %v1653, %v1655
    %v1660 = vadd.f32 %v1628, %v1656
    %v1661 = vadd.f32 %v1629, %v1657
    %s1662 = sld [smem:[#allocation7 + $0x8e]]
    %v1663 = vstv %s1662
    %v1664 = vmul.f32 %v1663, %v1414
    %v1665 = vmul.f32 %v1663, %v1415
    %v1666 = vmul.f32 %v1663, %v1416
    %1670 = vrot.lane.b32.xlu0 %v1664, 110
    %v1671 = vpop.permute.xlu0 %1670
    %1672 = vrot.lane.b32.xlu0 %v1665, 110
    %v1673 = vpop.permute.xlu0 %1672
    %1674 = vrot.lane.b32.xlu0 %v1666, 110
    %v1675 = vpop.permute.xlu0 %1674
    %v1676 = vsel %vm354, %v1671, %v1673
    %v1677 = vsel %vm354, %v1673, %v1675
    %v1680 = vadd.f32 %v1634, %v1676
    %v1681 = vadd.f32 %v1635, %v1677
    %s1682 = sld [smem:[#allocation7 + $0x10e]]
    %v1683 = vstv %s1682
    %v1684 = vmul.f32 %v1683, %v1414
    %v1685 = vmul.f32 %v1683, %v1415
    %v1686 = vmul.f32 %v1683, %v1416
    %1690 = vrot.lane.b32.xlu0 %v1684, 110
    %v1691 = vpop.permute.xlu0 %1690
    %1692 = vrot.lane.b32.xlu0 %v1685, 110
    %v1693 = vpop.permute.xlu0 %1692
    %1694 = vrot.lane.b32.xlu0 %v1686, 110
    %v1695 = vpop.permute.xlu0 %1694
    %v1696 = vsel %vm354, %v1691, %v1693
    %v1697 = vsel %vm354, %v1693, %v1695
    %v1700 = vadd.f32 %v1640, %v1696
    %v1701 = vadd.f32 %v1641, %v1697
    %s1702 = sld [smem:[#allocation7 + $0xf]]
    %v1703 = vstv %s1702
    %v1704 = vmul.f32 %v1703, %v1417
    %v1705 = vmul.f32 %v1703, %v1418
    %v1706 = vmul.f32 %v1703, %v1419
    %1710 = vrot.lane.b32.xlu0 %v1704, 96
    %v1711 = vpop.permute.xlu0 %1710
    %1712 = vrot.lane.b32.xlu0 %v1705, 96
    %v1713 = vpop.permute.xlu0 %1712
    %1714 = vrot.lane.b32.xlu0 %v1706, 96
    %v1715 = vpop.permute.xlu0 %1714
    %v1716 = vsel %vm375, %v1711, %v1713
    %v1717 = vsel %vm375, %v1713, %v1715
    %v1720 = vadd.f32 %v1660, %v1716
    %v1721 = vadd.f32 %v1661, %v1717
    %s1722 = sld [smem:[#allocation7 + $0x8f]]
    %v1723 = vstv %s1722
    %v1724 = vmul.f32 %v1723, %v1417
    %v1725 = vmul.f32 %v1723, %v1418
    %v1726 = vmul.f32 %v1723, %v1419
    %1730 = vrot.lane.b32.xlu0 %v1724, 96
    %v1731 = vpop.permute.xlu0 %1730
    %1732 = vrot.lane.b32.xlu0 %v1725, 96
    %v1733 = vpop.permute.xlu0 %1732
    %1734 = vrot.lane.b32.xlu0 %v1726, 96
    %v1735 = vpop.permute.xlu0 %1734
    %v1736 = vsel %vm375, %v1731, %v1733
    %v1737 = vsel %vm375, %v1733, %v1735
    %v1740 = vadd.f32 %v1680, %v1736
    %v1741 = vadd.f32 %v1681, %v1737
    %s1742 = sld [smem:[#allocation7 + $0x10f]]
    %v1743 = vstv %s1742
    %v1744 = vmul.f32 %v1743, %v1417
    %v1745 = vmul.f32 %v1743, %v1418
    %v1746 = vmul.f32 %v1743, %v1419
    %1750 = vrot.lane.b32.xlu0 %v1744, 96
    %v1751 = vpop.permute.xlu0 %1750
    %1752 = vrot.lane.b32.xlu0 %v1745, 96
    %v1753 = vpop.permute.xlu0 %1752
    %1754 = vrot.lane.b32.xlu0 %v1746, 96
    %v1755 = vpop.permute.xlu0 %1754
    %v1756 = vsel %vm375, %v1751, %v1753
    %v1757 = vsel %vm375, %v1753, %v1755
    %v1760 = vadd.f32 %v1700, %v1756
    %v1761 = vadd.f32 %v1701, %v1757
    %s1762 = sld [smem:[#allocation7 + $0x10]]
    %v1763 = vstv %s1762
    %v1764 = vmul.f32 %v1763, %v1420
    %v1765 = vmul.f32 %v1763, %v1421
    %v1766 = vmul.f32 %v1763, %v1422
    %1770 = vrot.lane.b32.xlu0 %v1764, 95
    %v1771 = vpop.permute.xlu0 %1770
    %1772 = vrot.lane.b32.xlu0 %v1765, 95
    %v1773 = vpop.permute.xlu0 %1772
    %1774 = vrot.lane.b32.xlu0 %v1766, 95
    %v1775 = vpop.permute.xlu0 %1774
    %v1776 = vsel %vm396, %v1771, %v1773
    %v1777 = vsel %vm396, %v1773, %v1775
    %v1780 = vadd.f32 %v1720, %v1776
    %v1781 = vadd.f32 %v1721, %v1777
    %s1782 = sld [smem:[#allocation7 + $0x90]]
    %v1783 = vstv %s1782
    %v1784 = vmul.f32 %v1783, %v1420
    %v1785 = vmul.f32 %v1783, %v1421
    %v1786 = vmul.f32 %v1783, %v1422
    %1790 = vrot.lane.b32.xlu0 %v1784, 95
    %v1791 = vpop.permute.xlu0 %1790
    %1792 = vrot.lane.b32.xlu0 %v1785, 95
    %v1793 = vpop.permute.xlu0 %1792
    %1794 = vrot.lane.b32.xlu0 %v1786, 95
    %v1795 = vpop.permute.xlu0 %1794
    %v1796 = vsel %vm396, %v1791, %v1793
    %v1797 = vsel %vm396, %v1793, %v1795
    %v1800 = vadd.f32 %v1740, %v1796
    %v1801 = vadd.f32 %v1741, %v1797
    %s1802 = sld [smem:[#allocation7 + $0x110]]
    %v1803 = vstv %s1802
    %v1804 = vmul.f32 %v1803, %v1420
    %v1805 = vmul.f32 %v1803, %v1421
    %v1806 = vmul.f32 %v1803, %v1422
    %1810 = vrot.lane.b32.xlu0 %v1804, 95
    %v1811 = vpop.permute.xlu0 %1810
    %1812 = vrot.lane.b32.xlu0 %v1805, 95
    %v1813 = vpop.permute.xlu0 %1812
    %1814 = vrot.lane.b32.xlu0 %v1806, 95
    %v1815 = vpop.permute.xlu0 %1814
    %v1816 = vsel %vm396, %v1811, %v1813
    %v1817 = vsel %vm396, %v1813, %v1815
    %v1820 = vadd.f32 %v1760, %v1816
    %v1821 = vadd.f32 %v1761, %v1817
    %s1822 = sld [smem:[#allocation7 + $0x11]]
    %v1823 = vstv %s1822
    %v1824 = vmul.f32 %v1823, %v1423
    %v1825 = vmul.f32 %v1823, %v1424
    %v1826 = vmul.f32 %v1823, %v1425
    %1830 = vrot.lane.b32.xlu0 %v1824, 94
    %v1831 = vpop.permute.xlu0 %1830
    %1832 = vrot.lane.b32.xlu0 %v1825, 94
    %v1833 = vpop.permute.xlu0 %1832
    %1834 = vrot.lane.b32.xlu0 %v1826, 94
    %v1835 = vpop.permute.xlu0 %1834
    %v1836 = vsel %vm417, %v1831, %v1833
    %v1837 = vsel %vm417, %v1833, %v1835
    %v1840 = vadd.f32 %v1780, %v1836
    %v1841 = vadd.f32 %v1781, %v1837
    %s1842 = sld [smem:[#allocation7 + $0x91]]
    %v1843 = vstv %s1842
    %v1844 = vmul.f32 %v1843, %v1423
    %v1845 = vmul.f32 %v1843, %v1424
    %v1846 = vmul.f32 %v1843, %v1425
    %1850 = vrot.lane.b32.xlu0 %v1844, 94
    %v1851 = vpop.permute.xlu0 %1850
    %1852 = vrot.lane.b32.xlu0 %v1845, 94
    %v1853 = vpop.permute.xlu0 %1852
    %1854 = vrot.lane.b32.xlu0 %v1846, 94
    %v1855 = vpop.permute.xlu0 %1854
    %v1856 = vsel %vm417, %v1851, %v1853
    %v1857 = vsel %vm417, %v1853, %v1855
    %v1860 = vadd.f32 %v1800, %v1856
    %v1861 = vadd.f32 %v1801, %v1857
    %s1862 = sld [smem:[#allocation7 + $0x111]]
    %v1863 = vstv %s1862
    %v1864 = vmul.f32 %v1863, %v1423
    %v1865 = vmul.f32 %v1863, %v1424
    %v1866 = vmul.f32 %v1863, %v1425
    %1870 = vrot.lane.b32.xlu0 %v1864, 94
    %v1871 = vpop.permute.xlu0 %1870
    %1872 = vrot.lane.b32.xlu0 %v1865, 94
    %v1873 = vpop.permute.xlu0 %1872
    %1874 = vrot.lane.b32.xlu0 %v1866, 94
    %v1875 = vpop.permute.xlu0 %1874
    %v1876 = vsel %vm417, %v1871, %v1873
    %v1877 = vsel %vm417, %v1873, %v1875
    %v1880 = vadd.f32 %v1820, %v1876
    %v1881 = vadd.f32 %v1821, %v1877
    %1884 = vrot.lane.b32.xlu0 %v736, 17
    %v1885 = vpop.permute.xlu0 %1884
    %1886 = vrot.lane.b32.xlu0 %v737, 17
    %v1887 = vpop.permute.xlu0 %1886
    %v1888 = vsel %vm92, %v1885, %v1887
    %v1892 = vsel %vm92, 0.0, %v1885
    %v1893 = vsel %vm92, %v1887, 0.0
    %v1894 = vmul.f32 %v1892, %v102
    %v1895 = vmul.f32 %v1888, %v106
    %v1896 = vmul.f32 %v1892, %v120
    %v1897 = vmul.f32 %v1888, %v124
    %v1898 = vmul.f32 %v1893, %v122
    %v1899 = vmul.f32 %v1892, %v142
    %v1900 = vmul.f32 %v1888, %v146
    %v1901 = vmul.f32 %v1893, %v144
    %v1902 = vmul.f32 %v1892, %v164
    %v1903 = vmul.f32 %v1888, %v168
    %v1904 = vmul.f32 %v1893, %v166
    %v1905 = vmul.f32 %v1892, %v186
    %v1906 = vmul.f32 %v1888, %v190
    %v1907 = vmul.f32 %v1893, %v188
    %v1908 = vmul.f32 %v1892, %v208
    %v1909 = vmul.f32 %v1888, %v212
    %v1910 = vmul.f32 %v1893, %v210
    %v1911 = vmul.f32 %v1892, %v230
    %v1912 = vmul.f32 %v1888, %v234
    %v1913 = vmul.f32 %v1893, %v232
    %v1914 = vmul.f32 %v1892, %v252
    %v1915 = vmul.f32 %v1888, %v256
    %v1916 = vmul.f32 %v1893, %v254
    %s1917 = sld [smem:[#allocation7 + $0x12]]
    %v1918 = vstv %s1917
    %v1919 = vmul.f32 %v1918, %v1894
    %v1920 = vmul.f32 %v1918, %v1895
    %v1921 = vadd.f32 %v1840, %v1919
    %v1922 = vadd.f32 %v1841, %v1920
    %s1923 = sld [smem:[#allocation7 + $0x92]]
    %v1924 = vstv %s1923
    %v1925 = vmul.f32 %v1924, %v1894
    %v1926 = vmul.f32 %v1924, %v1895
    %v1927 = vadd.f32 %v1860, %v1925
    %v1928 = vadd.f32 %v1861, %v1926
    %s1929 = sld [smem:[#allocation7 + $0x112]]
    %v1930 = vstv %s1929
    %v1931 = vmul.f32 %v1930, %v1894
    %v1932 = vmul.f32 %v1930, %v1895
    %v1933 = vadd.f32 %v1880, %v1931
    %v1934 = vadd.f32 %v1881, %v1932
    %s1935 = sld [smem:[#allocation7 + $0x13]]
    %v1936 = vstv %s1935
    %v1937 = vmul.f32 %v1936, %v1896
    %v1938 = vmul.f32 %v1936, %v1897
    %v1939 = vmul.f32 %v1936, %v1898
    %1943 = vrot.lane.b32.xlu0 %v1937, 127
    %v1944 = vpop.permute.xlu0 %1943
    %1945 = vrot.lane.b32.xlu0 %v1938, 127
    %v1946 = vpop.permute.xlu0 %1945
    %1947 = vrot.lane.b32.xlu0 %v1939, 127
    %v1948 = vpop.permute.xlu0 %1947
    %v1949 = vsel %vm285, %v1944, %v1946
    %v1950 = vsel %vm285, %v1946, %v1948
    %v1953 = vadd.f32 %v1921, %v1949
    %v1954 = vadd.f32 %v1922, %v1950
    %s1955 = sld [smem:[#allocation7 + $0x93]]
    %v1956 = vstv %s1955
    %v1957 = vmul.f32 %v1956, %v1896
    %v1958 = vmul.f32 %v1956, %v1897
    %v1959 = vmul.f32 %v1956, %v1898
    %1963 = vrot.lane.b32.xlu0 %v1957, 127
    %v1964 = vpop.permute.xlu0 %1963
    %1965 = vrot.lane.b32.xlu0 %v1958, 127
    %v1966 = vpop.permute.xlu0 %1965
    %1967 = vrot.lane.b32.xlu0 %v1959, 127
    %v1968 = vpop.permute.xlu0 %1967
    %v1969 = vsel %vm285, %v1964, %v1966
    %v1970 = vsel %vm285, %v1966, %v1968
    %v1973 = vadd.f32 %v1927, %v1969
    %v1974 = vadd.f32 %v1928, %v1970
    %s1975 = sld [smem:[#allocation7 + $0x113]]
    %v1976 = vstv %s1975
    %v1977 = vmul.f32 %v1976, %v1896
    %v1978 = vmul.f32 %v1976, %v1897
    %v1979 = vmul.f32 %v1976, %v1898
    %1983 = vrot.lane.b32.xlu0 %v1977, 127
    %v1984 = vpop.permute.xlu0 %1983
    %1985 = vrot.lane.b32.xlu0 %v1978, 127
    %v1986 = vpop.permute.xlu0 %1985
    %1987 = vrot.lane.b32.xlu0 %v1979, 127
    %v1988 = vpop.permute.xlu0 %1987
    %v1989 = vsel %vm285, %v1984, %v1986
    %v1990 = vsel %vm285, %v1986, %v1988
    %v1993 = vadd.f32 %v1933, %v1989
    %v1994 = vadd.f32 %v1934, %v1990
    %s1995 = sld [smem:[#allocation7 + $0x14]]
    %v1996 = vstv %s1995
    %v1997 = vmul.f32 %v1996, %v1899
    %v1998 = vmul.f32 %v1996, %v1900
    %v1999 = vmul.f32 %v1996, %v1901
    %2003 = vrot.lane.b32.xlu0 %v1997, 126
    %v2004 = vpop.permute.xlu0 %2003
    %2005 = vrot.lane.b32.xlu0 %v1998, 126
    %v2006 = vpop.permute.xlu0 %2005
    %2007 = vrot.lane.b32.xlu0 %v1999, 126
    %v2008 = vpop.permute.xlu0 %2007
    %v2009 = vsel %vm306, %v2004, %v2006
    %v2010 = vsel %vm306, %v2006, %v2008
    %v2013 = vadd.f32 %v1953, %v2009
    %v2014 = vadd.f32 %v1954, %v2010
    %s2015 = sld [smem:[#allocation7 + $0x94]]
    %v2016 = vstv %s2015
    %v2017 = vmul.f32 %v2016, %v1899
    %v2018 = vmul.f32 %v2016, %v1900
    %v2019 = vmul.f32 %v2016, %v1901
    %2023 = vrot.lane.b32.xlu0 %v2017, 126
    %v2024 = vpop.permute.xlu0 %2023
    %2025 = vrot.lane.b32.xlu0 %v2018, 126
    %v2026 = vpop.permute.xlu0 %2025
    %2027 = vrot.lane.b32.xlu0 %v2019, 126
    %v2028 = vpop.permute.xlu0 %2027
    %v2029 = vsel %vm306, %v2024, %v2026
    %v2030 = vsel %vm306, %v2026, %v2028
    %v2033 = vadd.f32 %v1973, %v2029
    %v2034 = vadd.f32 %v1974, %v2030
    %s2035 = sld [smem:[#allocation7 + $0x114]]
    %v2036 = vstv %s2035
    %v2037 = vmul.f32 %v2036, %v1899
    %v2038 = vmul.f32 %v2036, %v1900
    %v2039 = vmul.f32 %v2036, %v1901
    %2043 = vrot.lane.b32.xlu0 %v2037, 126
    %v2044 = vpop.permute.xlu0 %2043
    %2045 = vrot.lane.b32.xlu0 %v2038, 126
    %v2046 = vpop.permute.xlu0 %2045
    %2047 = vrot.lane.b32.xlu0 %v2039, 126
    %v2048 = vpop.permute.xlu0 %2047
    %v2049 = vsel %vm306, %v2044, %v2046
    %v2050 = vsel %vm306, %v2046, %v2048
    %v2053 = vadd.f32 %v1993, %v2049
    %v2054 = vadd.f32 %v1994, %v2050
    %s2055 = sld [smem:[#allocation7 + $0x15]]
    %v2056 = vstv %s2055
    %v2057 = vmul.f32 %v2056, %v1902
    %v2058 = vmul.f32 %v2056, %v1903
    %v2059 = vmul.f32 %v2056, %v1904
    %2063 = vrot.lane.b32.xlu0 %v2057, 112
    %v2064 = vpop.permute.xlu0 %2063
    %2065 = vrot.lane.b32.xlu0 %v2058, 112
    %v2066 = vpop.permute.xlu0 %2065
    %2067 = vrot.lane.b32.xlu0 %v2059, 112
    %v2068 = vpop.permute.xlu0 %2067
    %v2069 = vsel %vm327, %v2064, %v2066
    %v2070 = vsel %vm327, %v2066, %v2068
    %v2073 = vadd.f32 %v2013, %v2069
    %v2074 = vadd.f32 %v2014, %v2070
    %s2075 = sld [smem:[#allocation7 + $0x95]]
    %v2076 = vstv %s2075
    %v2077 = vmul.f32 %v2076, %v1902
    %v2078 = vmul.f32 %v2076, %v1903
    %v2079 = vmul.f32 %v2076, %v1904
    %2083 = vrot.lane.b32.xlu0 %v2077, 112
    %v2084 = vpop.permute.xlu0 %2083
    %2085 = vrot.lane.b32.xlu0 %v2078, 112
    %v2086 = vpop.permute.xlu0 %2085
    %2087 = vrot.lane.b32.xlu0 %v2079, 112
    %v2088 = vpop.permute.xlu0 %2087
    %v2089 = vsel %vm327, %v2084, %v2086
    %v2090 = vsel %vm327, %v2086, %v2088
    %v2093 = vadd.f32 %v2033, %v2089
    %v2094 = vadd.f32 %v2034, %v2090
    %s2095 = sld [smem:[#allocation7 + $0x115]]
    %v2096 = vstv %s2095
    %v2097 = vmul.f32 %v2096, %v1902
    %v2098 = vmul.f32 %v2096, %v1903
    %v2099 = vmul.f32 %v2096, %v1904
    %2103 = vrot.lane.b32.xlu0 %v2097, 112
    %v2104 = vpop.permute.xlu0 %2103
    %2105 = vrot.lane.b32.xlu0 %v2098, 112
    %v2106 = vpop.permute.xlu0 %2105
    %2107 = vrot.lane.b32.xlu0 %v2099, 112
    %v2108 = vpop.permute.xlu0 %2107
    %v2109 = vsel %vm327, %v2104, %v2106
    %v2110 = vsel %vm327, %v2106, %v2108
    %v2113 = vadd.f32 %v2053, %v2109
    %v2114 = vadd.f32 %v2054, %v2110
    %s2115 = sld [smem:[#allocation7 + $0x16]]
    %v2116 = vstv %s2115
    %v2117 = vmul.f32 %v2116, %v736
    %v2118 = vmul.f32 %v2116, %v737
    %v2119 = vadd.f32 %v2073, %v2117
    %v2120 = vadd.f32 %v2074, %v2118
    %s2121 = sld [smem:[#allocation7 + $0x96]]
    %v2122 = vstv %s2121
    %v2123 = vmul.f32 %v2122, %v736
    %v2124 = vmul.f32 %v2122, %v737
    %v2125 = vadd.f32 %v2093, %v2123
    %v2126 = vadd.f32 %v2094, %v2124
    %s2127 = sld [smem:[#allocation7 + $0x116]]
    %v2128 = vstv %s2127
    %v2129 = vmul.f32 %v2128, %v736
    %v2130 = vmul.f32 %v2128, %v737
    %v2131 = vadd.f32 %v2113, %v2129
    %v2132 = vadd.f32 %v2114, %v2130
    %s2133 = sld [smem:[#allocation7 + $0x17]]
    %v2134 = vstv %s2133
    %v2135 = vmul.f32 %v2134, %v1905
    %v2136 = vmul.f32 %v2134, %v1906
    %v2137 = vmul.f32 %v2134, %v1907
    %2141 = vrot.lane.b32.xlu0 %v2135, 110
    %v2142 = vpop.permute.xlu0 %2141
    %2143 = vrot.lane.b32.xlu0 %v2136, 110
    %v2144 = vpop.permute.xlu0 %2143
    %2145 = vrot.lane.b32.xlu0 %v2137, 110
    %v2146 = vpop.permute.xlu0 %2145
    %v2147 = vsel %vm354, %v2142, %v2144
    %v2148 = vsel %vm354, %v2144, %v2146
    %v2151 = vadd.f32 %v2119, %v2147
    %v2152 = vadd.f32 %v2120, %v2148
    %s2153 = sld [smem:[#allocation7 + $0x97]]
    %v2154 = vstv %s2153
    %v2155 = vmul.f32 %v2154, %v1905
    %v2156 = vmul.f32 %v2154, %v1906
    %v2157 = vmul.f32 %v2154, %v1907
    %2161 = vrot.lane.b32.xlu0 %v2155, 110
    %v2162 = vpop.permute.xlu0 %2161
    %2163 = vrot.lane.b32.xlu0 %v2156, 110
    %v2164 = vpop.permute.xlu0 %2163
    %2165 = vrot.lane.b32.xlu0 %v2157, 110
    %v2166 = vpop.permute.xlu0 %2165
    %v2167 = vsel %vm354, %v2162, %v2164
    %v2168 = vsel %vm354, %v2164, %v2166
    %v2171 = vadd.f32 %v2125, %v2167
    %v2172 = vadd.f32 %v2126, %v2168
    %s2173 = sld [smem:[#allocation7 + $0x117]]
    %v2174 = vstv %s2173
    %v2175 = vmul.f32 %v2174, %v1905
    %v2176 = vmul.f32 %v2174, %v1906
    %v2177 = vmul.f32 %v2174, %v1907
    %2181 = vrot.lane.b32.xlu0 %v2175, 110
    %v2182 = vpop.permute.xlu0 %2181
    %2183 = vrot.lane.b32.xlu0 %v2176, 110
    %v2184 = vpop.permute.xlu0 %2183
    %2185 = vrot.lane.b32.xlu0 %v2177, 110
    %v2186 = vpop.permute.xlu0 %2185
    %v2187 = vsel %vm354, %v2182, %v2184
    %v2188 = vsel %vm354, %v2184, %v2186
    %v2191 = vadd.f32 %v2131, %v2187
    %v2192 = vadd.f32 %v2132, %v2188
    %s2193 = sld [smem:[#allocation7 + $0x18]]
    %v2194 = vstv %s2193
    %v2195 = vmul.f32 %v2194, %v1908
    %v2196 = vmul.f32 %v2194, %v1909
    %v2197 = vmul.f32 %v2194, %v1910
    %2201 = vrot.lane.b32.xlu0 %v2195, 96
    %v2202 = vpop.permute.xlu0 %2201
    %2203 = vrot.lane.b32.xlu0 %v2196, 96
    %v2204 = vpop.permute.xlu0 %2203
    %2205 = vrot.lane.b32.xlu0 %v2197, 96
    %v2206 = vpop.permute.xlu0 %2205
    %v2207 = vsel %vm375, %v2202, %v2204
    %v2208 = vsel %vm375, %v2204, %v2206
    %v2211 = vadd.f32 %v2151, %v2207
    %v2212 = vadd.f32 %v2152, %v2208
    %s2213 = sld [smem:[#allocation7 + $0x98]]
    %v2214 = vstv %s2213
    %v2215 = vmul.f32 %v2214, %v1908
    %v2216 = vmul.f32 %v2214, %v1909
    %v2217 = vmul.f32 %v2214, %v1910
    %2221 = vrot.lane.b32.xlu0 %v2215, 96
    %v2222 = vpop.permute.xlu0 %2221
    %2223 = vrot.lane.b32.xlu0 %v2216, 96
    %v2224 = vpop.permute.xlu0 %2223
    %2225 = vrot.lane.b32.xlu0 %v2217, 96
    %v2226 = vpop.permute.xlu0 %2225
    %v2227 = vsel %vm375, %v2222, %v2224
    %v2228 = vsel %vm375, %v2224, %v2226
    %v2231 = vadd.f32 %v2171, %v2227
    %v2232 = vadd.f32 %v2172, %v2228
    %s2233 = sld [smem:[#allocation7 + $0x118]]
    %v2234 = vstv %s2233
    %v2235 = vmul.f32 %v2234, %v1908
    %v2236 = vmul.f32 %v2234, %v1909
    %v2237 = vmul.f32 %v2234, %v1910
    %2241 = vrot.lane.b32.xlu0 %v2235, 96
    %v2242 = vpop.permute.xlu0 %2241
    %2243 = vrot.lane.b32.xlu0 %v2236, 96
    %v2244 = vpop.permute.xlu0 %2243
    %2245 = vrot.lane.b32.xlu0 %v2237, 96
    %v2246 = vpop.permute.xlu0 %2245
    %v2247 = vsel %vm375, %v2242, %v2244
    %v2248 = vsel %vm375, %v2244, %v2246
    %v2251 = vadd.f32 %v2191, %v2247
    %v2252 = vadd.f32 %v2192, %v2248
    %s2253 = sld [smem:[#allocation7 + $0x19]]
    %v2254 = vstv %s2253
    %v2255 = vmul.f32 %v2254, %v1911
    %v2256 = vmul.f32 %v2254, %v1912
    %v2257 = vmul.f32 %v2254, %v1913
    %2261 = vrot.lane.b32.xlu0 %v2255, 95
    %v2262 = vpop.permute.xlu0 %2261
    %2263 = vrot.lane.b32.xlu0 %v2256, 95
    %v2264 = vpop.permute.xlu0 %2263
    %2265 = vrot.lane.b32.xlu0 %v2257, 95
    %v2266 = vpop.permute.xlu0 %2265
    %v2267 = vsel %vm396, %v2262, %v2264
    %v2268 = vsel %vm396, %v2264, %v2266
    %v2271 = vadd.f32 %v2211, %v2267
    %v2272 = vadd.f32 %v2212, %v2268
    %s2273 = sld [smem:[#allocation7 + $0x99]]
    %v2274 = vstv %s2273
    %v2275 = vmul.f32 %v2274, %v1911
    %v2276 = vmul.f32 %v2274, %v1912
    %v2277 = vmul.f32 %v2274, %v1913
    %2281 = vrot.lane.b32.xlu0 %v2275, 95
    %v2282 = vpop.permute.xlu0 %2281
    %2283 = vrot.lane.b32.xlu0 %v2276, 95
    %v2284 = vpop.permute.xlu0 %2283
    %2285 = vrot.lane.b32.xlu0 %v2277, 95
    %v2286 = vpop.permute.xlu0 %2285
    %v2287 = vsel %vm396, %v2282, %v2284
    %v2288 = vsel %vm396, %v2284, %v2286
    %v2291 = vadd.f32 %v2231, %v2287
    %v2292 = vadd.f32 %v2232, %v2288
    %s2293 = sld [smem:[#allocation7 + $0x119]]
    %v2294 = vstv %s2293
    %v2295 = vmul.f32 %v2294, %v1911
    %v2296 = vmul.f32 %v2294, %v1912
    %v2297 = vmul.f32 %v2294, %v1913
    %2301 = vrot.lane.b32.xlu0 %v2295, 95
    %v2302 = vpop.permute.xlu0 %2301
    %2303 = vrot.lane.b32.xlu0 %v2296, 95
    %v2304 = vpop.permute.xlu0 %2303
    %2305 = vrot.lane.b32.xlu0 %v2297, 95
    %v2306 = vpop.permute.xlu0 %2305
    %v2307 = vsel %vm396, %v2302, %v2304
    %v2308 = vsel %vm396, %v2304, %v2306
    %v2311 = vadd.f32 %v2251, %v2307
    %v2312 = vadd.f32 %v2252, %v2308
    %s2313 = sld [smem:[#allocation7 + $0x1a]]
    %v2314 = vstv %s2313
    %v2315 = vmul.f32 %v2314, %v1914
    %v2316 = vmul.f32 %v2314, %v1915
    %v2317 = vmul.f32 %v2314, %v1916
    %2321 = vrot.lane.b32.xlu0 %v2315, 94
    %v2322 = vpop.permute.xlu0 %2321
    %2323 = vrot.lane.b32.xlu0 %v2316, 94
    %v2324 = vpop.permute.xlu0 %2323
    %2325 = vrot.lane.b32.xlu0 %v2317, 94
    %v2326 = vpop.permute.xlu0 %2325
    %v2327 = vsel %vm417, %v2322, %v2324
    %v2328 = vsel %vm417, %v2324, %v2326
    %v2331 = vadd.f32 %v2271, %v2327
    %v2332 = vadd.f32 %v2272, %v2328
    %s2333 = sld [smem:[#allocation7 + $0x9a]]
    %v2334 = vstv %s2333
    %v2335 = vmul.f32 %v2334, %v1914
    %v2336 = vmul.f32 %v2334, %v1915
    %v2337 = vmul.f32 %v2334, %v1916
    %2341 = vrot.lane.b32.xlu0 %v2335, 94
    %v2342 = vpop.permute.xlu0 %2341
    %2343 = vrot.lane.b32.xlu0 %v2336, 94
    %v2344 = vpop.permute.xlu0 %2343
    %2345 = vrot.lane.b32.xlu0 %v2337, 94
    %v2346 = vpop.permute.xlu0 %2345
    %v2347 = vsel %vm417, %v2342, %v2344
    %v2348 = vsel %vm417, %v2344, %v2346
    %v2351 = vadd.f32 %v2291, %v2347
    %v2352 = vadd.f32 %v2292, %v2348
    %s2353 = sld [smem:[#allocation7 + $0x11a]]
    %v2354 = vstv %s2353
    %v2355 = vmul.f32 %v2354, %v1914
    %v2356 = vmul.f32 %v2354, %v1915
    %v2357 = vmul.f32 %v2354, %v1916
    %2361 = vrot.lane.b32.xlu0 %v2355, 94
    %v2362 = vpop.permute.xlu0 %2361
    %2363 = vrot.lane.b32.xlu0 %v2356, 94
    %v2364 = vpop.permute.xlu0 %2363
    %2365 = vrot.lane.b32.xlu0 %v2357, 94
    %v2366 = vpop.permute.xlu0 %2365
    %v2367 = vsel %vm417, %v2362, %v2364
    %v2368 = vsel %vm417, %v2364, %v2366
    %v2371 = vadd.f32 %v2311, %v2367
    %v2372 = vadd.f32 %v2312, %v2368
    %2375 = vrot.lane.b32.xlu0 %v892, 17
    %v2376 = vpop.permute.xlu0 %2375
    %2377 = vrot.lane.b32.xlu0 %v893, 17
    %v2378 = vpop.permute.xlu0 %2377
    %v2379 = vsel %vm92, %v2376, %v2378
    %v2383 = vsel %vm92, 0.0, %v2376
    %v2384 = vsel %vm92, %v2378, 0.0
    %v2385 = vmul.f32 %v2383, %v102
    %v2386 = vmul.f32 %v2379, %v106
    %v2387 = vmul.f32 %v2383, %v120
    %v2388 = vmul.f32 %v2379, %v124
    %v2389 = vmul.f32 %v2384, %v122
    %v2390 = vmul.f32 %v2383, %v142
    %v2391 = vmul.f32 %v2379, %v146
    %v2392 = vmul.f32 %v2384, %v144
    %v2393 = vmul.f32 %v2383, %v164
    %v2394 = vmul.f32 %v2379, %v168
    %v2395 = vmul.f32 %v2384, %v166
    %v2396 = vmul.f32 %v2383, %v186
    %v2397 = vmul.f32 %v2379, %v190
    %v2398 = vmul.f32 %v2384, %v188
    %v2399 = vmul.f32 %v2383, %v208
    %v2400 = vmul.f32 %v2379, %v212
    %v2401 = vmul.f32 %v2384, %v210
    %v2402 = vmul.f32 %v2383, %v230
    %v2403 = vmul.f32 %v2379, %v234
    %v2404 = vmul.f32 %v2384, %v232
    %v2405 = vmul.f32 %v2383, %v252
    %v2406 = vmul.f32 %v2379, %v256
    %v2407 = vmul.f32 %v2384, %v254
    %s2408 = sld [smem:[#allocation7 + $0x1b]]
    %v2409 = vstv %s2408
    %v2410 = vmul.f32 %v2409, %v2385
    %v2411 = vmul.f32 %v2409, %v2386
    %v2412 = vadd.f32 %v2331, %v2410
    %v2413 = vadd.f32 %v2332, %v2411
    %s2414 = sld [smem:[#allocation7 + $0x9b]]
    %v2415 = vstv %s2414
    %v2416 = vmul.f32 %v2415, %v2385
    %v2417 = vmul.f32 %v2415, %v2386
    %v2418 = vadd.f32 %v2351, %v2416
    %v2419 = vadd.f32 %v2352, %v2417
    %s2420 = sld [smem:[#allocation7 + $0x11b]]
    %v2421 = vstv %s2420
    %v2422 = vmul.f32 %v2421, %v2385
    %v2423 = vmul.f32 %v2421, %v2386
    %v2424 = vadd.f32 %v2371, %v2422
    %v2425 = vadd.f32 %v2372, %v2423
    %s2426 = sld [smem:[#allocation7 + $0x1c]]
    %v2427 = vstv %s2426
    %v2428 = vmul.f32 %v2427, %v2387
    %v2429 = vmul.f32 %v2427, %v2388
    %v2430 = vmul.f32 %v2427, %v2389
    %2434 = vrot.lane.b32.xlu0 %v2428, 127
    %v2435 = vpop.permute.xlu0 %2434
    %2436 = vrot.lane.b32.xlu0 %v2429, 127
    %v2437 = vpop.permute.xlu0 %2436
    %2438 = vrot.lane.b32.xlu0 %v2430, 127
    %v2439 = vpop.permute.xlu0 %2438
    %v2440 = vsel %vm285, %v2435, %v2437
    %v2441 = vsel %vm285, %v2437, %v2439
    %v2444 = vadd.f32 %v2412, %v2440
    %v2445 = vadd.f32 %v2413, %v2441
    %s2446 = sld [smem:[#allocation7 + $0x9c]]
    %v2447 = vstv %s2446
    %v2448 = vmul.f32 %v2447, %v2387
    %v2449 = vmul.f32 %v2447, %v2388
    %v2450 = vmul.f32 %v2447, %v2389
    %2454 = vrot.lane.b32.xlu0 %v2448, 127
    %v2455 = vpop.permute.xlu0 %2454
    %2456 = vrot.lane.b32.xlu0 %v2449, 127
    %v2457 = vpop.permute.xlu0 %2456
    %2458 = vrot.lane.b32.xlu0 %v2450, 127
    %v2459 = vpop.permute.xlu0 %2458
    %v2460 = vsel %vm285, %v2455, %v2457
    %v2461 = vsel %vm285, %v2457, %v2459
    %v2464 = vadd.f32 %v2418, %v2460
    %v2465 = vadd.f32 %v2419, %v2461
    %s2466 = sld [smem:[#allocation7 + $0x11c]]
    %v2467 = vstv %s2466
    %v2468 = vmul.f32 %v2467, %v2387
    %v2469 = vmul.f32 %v2467, %v2388
    %v2470 = vmul.f32 %v2467, %v2389
    %2474 = vrot.lane.b32.xlu0 %v2468, 127
    %v2475 = vpop.permute.xlu0 %2474
    %2476 = vrot.lane.b32.xlu0 %v2469, 127
    %v2477 = vpop.permute.xlu0 %2476
    %2478 = vrot.lane.b32.xlu0 %v2470, 127
    %v2479 = vpop.permute.xlu0 %2478
    %v2480 = vsel %vm285, %v2475, %v2477
    %v2481 = vsel %vm285, %v2477, %v2479
    %v2484 = vadd.f32 %v2424, %v2480
    %v2485 = vadd.f32 %v2425, %v2481
    %s2486 = sld [smem:[#allocation7 + $0x1d]]
    %v2487 = vstv %s2486
    %v2488 = vmul.f32 %v2487, %v2390
    %v2489 = vmul.f32 %v2487, %v2391
    %v2490 = vmul.f32 %v2487, %v2392
    %2494 = vrot.lane.b32.xlu0 %v2488, 126
    %v2495 = vpop.permute.xlu0 %2494
    %2496 = vrot.lane.b32.xlu0 %v2489, 126
    %v2497 = vpop.permute.xlu0 %2496
    %2498 = vrot.lane.b32.xlu0 %v2490, 126
    %v2499 = vpop.permute.xlu0 %2498
    %v2500 = vsel %vm306, %v2495, %v2497
    %v2501 = vsel %vm306, %v2497, %v2499
    %v2504 = vadd.f32 %v2444, %v2500
    %v2505 = vadd.f32 %v2445, %v2501
    %s2506 = sld [smem:[#allocation7 + $0x9d]]
    %v2507 = vstv %s2506
    %v2508 = vmul.f32 %v2507, %v2390
    %v2509 = vmul.f32 %v2507, %v2391
    %v2510 = vmul.f32 %v2507, %v2392
    %2514 = vrot.lane.b32.xlu0 %v2508, 126
    %v2515 = vpop.permute.xlu0 %2514
    %2516 = vrot.lane.b32.xlu0 %v2509, 126
    %v2517 = vpop.permute.xlu0 %2516
    %2518 = vrot.lane.b32.xlu0 %v2510, 126
    %v2519 = vpop.permute.xlu0 %2518
    %v2520 = vsel %vm306, %v2515, %v2517
    %v2521 = vsel %vm306, %v2517, %v2519
    %v2524 = vadd.f32 %v2464, %v2520
    %v2525 = vadd.f32 %v2465, %v2521
    %s2526 = sld [smem:[#allocation7 + $0x11d]]
    %v2527 = vstv %s2526
    %v2528 = vmul.f32 %v2527, %v2390
    %v2529 = vmul.f32 %v2527, %v2391
    %v2530 = vmul.f32 %v2527, %v2392
    %2534 = vrot.lane.b32.xlu0 %v2528, 126
    %v2535 = vpop.permute.xlu0 %2534
    %2536 = vrot.lane.b32.xlu0 %v2529, 126
    %v2537 = vpop.permute.xlu0 %2536
    %2538 = vrot.lane.b32.xlu0 %v2530, 126
    %v2539 = vpop.permute.xlu0 %2538
    %v2540 = vsel %vm306, %v2535, %v2537
    %v2541 = vsel %vm306, %v2537, %v2539
    %v2544 = vadd.f32 %v2484, %v2540
    %v2545 = vadd.f32 %v2485, %v2541
    %s2546 = sld [smem:[#allocation7 + $0x1e]]
    %v2547 = vstv %s2546
    %v2548 = vmul.f32 %v2547, %v2393
    %v2549 = vmul.f32 %v2547, %v2394
    %v2550 = vmul.f32 %v2547, %v2395
    %2554 = vrot.lane.b32.xlu0 %v2548, 112
    %v2555 = vpop.permute.xlu0 %2554
    %2556 = vrot.lane.b32.xlu0 %v2549, 112
    %v2557 = vpop.permute.xlu0 %2556
    %2558 = vrot.lane.b32.xlu0 %v2550, 112
    %v2559 = vpop.permute.xlu0 %2558
    %v2560 = vsel %vm327, %v2555, %v2557
    %v2561 = vsel %vm327, %v2557, %v2559
    %v2564 = vadd.f32 %v2504, %v2560
    %v2565 = vadd.f32 %v2505, %v2561
    %s2566 = sld [smem:[#allocation7 + $0x9e]]
    %v2567 = vstv %s2566
    %v2568 = vmul.f32 %v2567, %v2393
    %v2569 = vmul.f32 %v2567, %v2394
    %v2570 = vmul.f32 %v2567, %v2395
    %2574 = vrot.lane.b32.xlu0 %v2568, 112
    %v2575 = vpop.permute.xlu0 %2574
    %2576 = vrot.lane.b32.xlu0 %v2569, 112
    %v2577 = vpop.permute.xlu0 %2576
    %2578 = vrot.lane.b32.xlu0 %v2570, 112
    %v2579 = vpop.permute.xlu0 %2578
    %v2580 = vsel %vm327, %v2575, %v2577
    %v2581 = vsel %vm327, %v2577, %v2579
    %v2584 = vadd.f32 %v2524, %v2580
    %v2585 = vadd.f32 %v2525, %v2581
    %s2586 = sld [smem:[#allocation7 + $0x11e]]
    %v2587 = vstv %s2586
    %v2588 = vmul.f32 %v2587, %v2393
    %v2589 = vmul.f32 %v2587, %v2394
    %v2590 = vmul.f32 %v2587, %v2395
    %2594 = vrot.lane.b32.xlu0 %v2588, 112
    %v2595 = vpop.permute.xlu0 %2594
    %2596 = vrot.lane.b32.xlu0 %v2589, 112
    %v2597 = vpop.permute.xlu0 %2596
    %2598 = vrot.lane.b32.xlu0 %v2590, 112
    %v2599 = vpop.permute.xlu0 %2598
    %v2600 = vsel %vm327, %v2595, %v2597
    %v2601 = vsel %vm327, %v2597, %v2599
    %v2604 = vadd.f32 %v2544, %v2600
    %v2605 = vadd.f32 %v2545, %v2601
    %s2606 = sld [smem:[#allocation7 + $0x1f]]
    %v2607 = vstv %s2606
    %v2608 = vmul.f32 %v2607, %v892
    %v2609 = vmul.f32 %v2607, %v893
    %v2610 = vadd.f32 %v2564, %v2608
    %v2611 = vadd.f32 %v2565, %v2609
    %s2612 = sld [smem:[#allocation7 + $0x9f]]
    %v2613 = vstv %s2612
    %v2614 = vmul.f32 %v2613, %v892
    %v2615 = vmul.f32 %v2613, %v893
    %v2616 = vadd.f32 %v2584, %v2614
    %v2617 = vadd.f32 %v2585, %v2615
    %s2618 = sld [smem:[#allocation7 + $0x11f]]
    %v2619 = vstv %s2618
    %v2620 = vmul.f32 %v2619, %v892
    %v2621 = vmul.f32 %v2619, %v893
    %v2622 = vadd.f32 %v2604, %v2620
    %v2623 = vadd.f32 %v2605, %v2621
    %s2624 = sld [smem:[#allocation7 + $0x20]]
    %v2625 = vstv %s2624
    %v2626 = vmul.f32 %v2625, %v2396
    %v2627 = vmul.f32 %v2625, %v2397
    %v2628 = vmul.f32 %v2625, %v2398
    %2632 = vrot.lane.b32.xlu0 %v2626, 110
    %v2633 = vpop.permute.xlu0 %2632
    %2634 = vrot.lane.b32.xlu0 %v2627, 110
    %v2635 = vpop.permute.xlu0 %2634
    %2636 = vrot.lane.b32.xlu0 %v2628, 110
    %v2637 = vpop.permute.xlu0 %2636
    %v2638 = vsel %vm354, %v2633, %v2635
    %v2639 = vsel %vm354, %v2635, %v2637
    %v2642 = vadd.f32 %v2610, %v2638
    %v2643 = vadd.f32 %v2611, %v2639
    %s2644 = sld [smem:[#allocation7 + $0xa0]]
    %v2645 = vstv %s2644
    %v2646 = vmul.f32 %v2645, %v2396
    %v2647 = vmul.f32 %v2645, %v2397
    %v2648 = vmul.f32 %v2645, %v2398
    %2652 = vrot.lane.b32.xlu0 %v2646, 110
    %v2653 = vpop.permute.xlu0 %2652
    %2654 = vrot.lane.b32.xlu0 %v2647, 110
    %v2655 = vpop.permute.xlu0 %2654
    %2656 = vrot.lane.b32.xlu0 %v2648, 110
    %v2657 = vpop.permute.xlu0 %2656
    %v2658 = vsel %vm354, %v2653, %v2655
    %v2659 = vsel %vm354, %v2655, %v2657
    %v2662 = vadd.f32 %v2616, %v2658
    %v2663 = vadd.f32 %v2617, %v2659
    %s2664 = sld [smem:[#allocation7 + $0x120]]
    %v2665 = vstv %s2664
    %v2666 = vmul.f32 %v2665, %v2396
    %v2667 = vmul.f32 %v2665, %v2397
    %v2668 = vmul.f32 %v2665, %v2398
    %2672 = vrot.lane.b32.xlu0 %v2666, 110
    %v2673 = vpop.permute.xlu0 %2672
    %2674 = vrot.lane.b32.xlu0 %v2667, 110
    %v2675 = vpop.permute.xlu0 %2674
    %2676 = vrot.lane.b32.xlu0 %v2668, 110
    %v2677 = vpop.permute.xlu0 %2676
    %v2678 = vsel %vm354, %v2673, %v2675
    %v2679 = vsel %vm354, %v2675, %v2677
    %v2682 = vadd.f32 %v2622, %v2678
    %v2683 = vadd.f32 %v2623, %v2679
    %s2684 = sld [smem:[#allocation7 + $0x21]]
    %v2685 = vstv %s2684
    %v2686 = vmul.f32 %v2685, %v2399
    %v2687 = vmul.f32 %v2685, %v2400
    %v2688 = vmul.f32 %v2685, %v2401
    %2692 = vrot.lane.b32.xlu0 %v2686, 96
    %v2693 = vpop.permute.xlu0 %2692
    %2694 = vrot.lane.b32.xlu0 %v2687, 96
    %v2695 = vpop.permute.xlu0 %2694
    %2696 = vrot.lane.b32.xlu0 %v2688, 96
    %v2697 = vpop.permute.xlu0 %2696
    %v2698 = vsel %vm375, %v2693, %v2695
    %v2699 = vsel %vm375, %v2695, %v2697
    %v2702 = vadd.f32 %v2642, %v2698
    %v2703 = vadd.f32 %v2643, %v2699
    %s2704 = sld [smem:[#allocation7 + $0xa1]]
    %v2705 = vstv %s2704
    %v2706 = vmul.f32 %v2705, %v2399
    %v2707 = vmul.f32 %v2705, %v2400
    %v2708 = vmul.f32 %v2705, %v2401
    %2712 = vrot.lane.b32.xlu0 %v2706, 96
    %v2713 = vpop.permute.xlu0 %2712
    %2714 = vrot.lane.b32.xlu0 %v2707, 96
    %v2715 = vpop.permute.xlu0 %2714
    %2716 = vrot.lane.b32.xlu0 %v2708, 96
    %v2717 = vpop.permute.xlu0 %2716
    %v2718 = vsel %vm375, %v2713, %v2715
    %v2719 = vsel %vm375, %v2715, %v2717
    %v2722 = vadd.f32 %v2662, %v2718
    %v2723 = vadd.f32 %v2663, %v2719
    %s2724 = sld [smem:[#allocation7 + $0x121]]
    %v2725 = vstv %s2724
    %v2726 = vmul.f32 %v2725, %v2399
    %v2727 = vmul.f32 %v2725, %v2400
    %v2728 = vmul.f32 %v2725, %v2401
    %2732 = vrot.lane.b32.xlu0 %v2726, 96
    %v2733 = vpop.permute.xlu0 %2732
    %2734 = vrot.lane.b32.xlu0 %v2727, 96
    %v2735 = vpop.permute.xlu0 %2734
    %2736 = vrot.lane.b32.xlu0 %v2728, 96
    %v2737 = vpop.permute.xlu0 %2736
    %v2738 = vsel %vm375, %v2733, %v2735
    %v2739 = vsel %vm375, %v2735, %v2737
    %v2742 = vadd.f32 %v2682, %v2738
    %v2743 = vadd.f32 %v2683, %v2739
    %s2744 = sld [smem:[#allocation7 + $0x22]]
    %v2745 = vstv %s2744
    %v2746 = vmul.f32 %v2745, %v2402
    %v2747 = vmul.f32 %v2745, %v2403
    %v2748 = vmul.f32 %v2745, %v2404
    %2752 = vrot.lane.b32.xlu0 %v2746, 95
    %v2753 = vpop.permute.xlu0 %2752
    %2754 = vrot.lane.b32.xlu0 %v2747, 95
    %v2755 = vpop.permute.xlu0 %2754
    %2756 = vrot.lane.b32.xlu0 %v2748, 95
    %v2757 = vpop.permute.xlu0 %2756
    %v2758 = vsel %vm396, %v2753, %v2755
    %v2759 = vsel %vm396, %v2755, %v2757
    %v2762 = vadd.f32 %v2702, %v2758
    %v2763 = vadd.f32 %v2703, %v2759
    %s2764 = sld [smem:[#allocation7 + $0xa2]]
    %v2765 = vstv %s2764
    %v2766 = vmul.f32 %v2765, %v2402
    %v2767 = vmul.f32 %v2765, %v2403
    %v2768 = vmul.f32 %v2765, %v2404
    %2772 = vrot.lane.b32.xlu0 %v2766, 95
    %v2773 = vpop.permute.xlu0 %2772
    %2774 = vrot.lane.b32.xlu0 %v2767, 95
    %v2775 = vpop.permute.xlu0 %2774
    %2776 = vrot.lane.b32.xlu0 %v2768, 95
    %v2777 = vpop.permute.xlu0 %2776
    %v2778 = vsel %vm396, %v2773, %v2775
    %v2779 = vsel %vm396, %v2775, %v2777
    %v2782 = vadd.f32 %v2722, %v2778
    %v2783 = vadd.f32 %v2723, %v2779
    %s2784 = sld [smem:[#allocation7 + $0x122]]
    %v2785 = vstv %s2784
    %v2786 = vmul.f32 %v2785, %v2402
    %v2787 = vmul.f32 %v2785, %v2403
    %v2788 = vmul.f32 %v2785, %v2404
    %2792 = vrot.lane.b32.xlu0 %v2786, 95
    %v2793 = vpop.permute.xlu0 %2792
    %2794 = vrot.lane.b32.xlu0 %v2787, 95
    %v2795 = vpop.permute.xlu0 %2794
    %2796 = vrot.lane.b32.xlu0 %v2788, 95
    %v2797 = vpop.permute.xlu0 %2796
    %v2798 = vsel %vm396, %v2793, %v2795
    %v2799 = vsel %vm396, %v2795, %v2797
    %v2802 = vadd.f32 %v2742, %v2798
    %v2803 = vadd.f32 %v2743, %v2799
    %s2804 = sld [smem:[#allocation7 + $0x23]]
    %v2805 = vstv %s2804
    %v2806 = vmul.f32 %v2805, %v2405
    %v2807 = vmul.f32 %v2805, %v2406
    %v2808 = vmul.f32 %v2805, %v2407
    %2812 = vrot.lane.b32.xlu0 %v2806, 94
    %v2813 = vpop.permute.xlu0 %2812
    %2814 = vrot.lane.b32.xlu0 %v2807, 94
    %v2815 = vpop.permute.xlu0 %2814
    %2816 = vrot.lane.b32.xlu0 %v2808, 94
    %v2817 = vpop.permute.xlu0 %2816
    %v2818 = vsel %vm417, %v2813, %v2815
    %v2819 = vsel %vm417, %v2815, %v2817
    %v2822 = vadd.f32 %v2762, %v2818
    %v2823 = vadd.f32 %v2763, %v2819
    %s2824 = sld [smem:[#allocation7 + $0xa3]]
    %v2825 = vstv %s2824
    %v2826 = vmul.f32 %v2825, %v2405
    %v2827 = vmul.f32 %v2825, %v2406
    %v2828 = vmul.f32 %v2825, %v2407
    %2832 = vrot.lane.b32.xlu0 %v2826, 94
    %v2833 = vpop.permute.xlu0 %2832
    %2834 = vrot.lane.b32.xlu0 %v2827, 94
    %v2835 = vpop.permute.xlu0 %2834
    %2836 = vrot.lane.b32.xlu0 %v2828, 94
    %v2837 = vpop.permute.xlu0 %2836
    %v2838 = vsel %vm417, %v2833, %v2835
    %v2839 = vsel %vm417, %v2835, %v2837
    %v2842 = vadd.f32 %v2782, %v2838
    %v2843 = vadd.f32 %v2783, %v2839
    %s2844 = sld [smem:[#allocation7 + $0x123]]
    %v2845 = vstv %s2844
    %v2846 = vmul.f32 %v2845, %v2405
    %v2847 = vmul.f32 %v2845, %v2406
    %v2848 = vmul.f32 %v2845, %v2407
    %2852 = vrot.lane.b32.xlu0 %v2846, 94
    %v2853 = vpop.permute.xlu0 %2852
    %2854 = vrot.lane.b32.xlu0 %v2847, 94
    %v2855 = vpop.permute.xlu0 %2854
    %2856 = vrot.lane.b32.xlu0 %v2848, 94
    %v2857 = vpop.permute.xlu0 %2856
    %v2858 = vsel %vm417, %v2853, %v2855
    %v2859 = vsel %vm417, %v2855, %v2857
    %v2862 = vadd.f32 %v2802, %v2858
    %v2863 = vadd.f32 %v2803, %v2859
    %v2864 = vxor.u32 %v2822, 2147483648
    %v2865 = vxor.u32 %v2823, 2147483648
    %v2866 = vmul.f32 %v2864, 1.442695
    %v2867 = vpow.pop %v2866
    %v2868 = vmul.f32 %v2865, 1.442695
    %v2869 = vpow.pop %v2868
    %v2870 = vadd.f32 %v2867, 1.0
    %v2871 = vadd.f32 %v2869, 1.0
    %v2872 = vrcp.pop %v2870
    %v2873 = vmul.f32 1.0, %v2872
    %v2874 = vrcp.pop %v2871
    %v2875 = vmul.f32 1.0, %v2874
    %v2876 = vadd.f32 %v2873, %v80
    %v2877 = vadd.f32 %v2875, %v81
    %v2878 = vxor.u32 %v2842, 2147483648
    %v2879 = vxor.u32 %v2843, 2147483648
    %v2880 = vmul.f32 %v2878, 1.442695
    %v2881 = vpow.pop %v2880
    %v2882 = vmul.f32 %v2879, 1.442695
    %v2883 = vpow.pop %v2882
    %v2884 = vadd.f32 %v2881, 1.0
    %v2885 = vadd.f32 %v2883, 1.0
    %v2886 = vrcp.pop %v2884
    %v2887 = vmul.f32 1.0, %v2886
    %v2888 = vrcp.pop %v2885
    %v2889 = vmul.f32 1.0, %v2888
    %v2890 = vadd.f32 %v2887, %v80
    %v2891 = vadd.f32 %v2889, %v81
    %v2892 = vxor.u32 %v2862, 2147483648
    %v2893 = vxor.u32 %v2863, 2147483648
    %v2894 = vmul.f32 %v2892, 1.442695
    %v2895 = vpow.pop %v2894
    %v2896 = vmul.f32 %v2893, 1.442695
    %v2897 = vpow.pop %v2896
    %v2898 = vadd.f32 %v2895, 1.0
    %v2899 = vadd.f32 %v2897, 1.0
    %v2900 = vrcp.pop %v2898
    %v2901 = vmul.f32 1.0, %v2900
    %v2902 = vrcp.pop %v2899
    %v2903 = vmul.f32 1.0, %v2902
    %v2904 = vadd.f32 %v2901, %v80
    %v2905 = vadd.f32 %v2903, %v81
    %v2906 = vld [vmem:[%s6] sm:$0xff]
    %v2907 = vld [vmem:[%s6 + $0x8] sm:$0xff]
    %v2908 = vld [vmem:[%s6 + $0x10] sm:$0xff]
    %v2909 = vld [vmem:[%s6 + $0x18] sm:$0xff]
    %v2910 = vld [vmem:[%s6 + $0x20] sm:$0xff]
    %v2911 = vld [vmem:[%s6 + $0x28] sm:$0xff]
    %v2912 = vld [vmem:[%s6 + $0x30] sm:$0xff]
    %v2913 = vld [vmem:[%s6 + $0x38] sm:$0xff]
    %v2914 = vld [vmem:[%s6 + $0x40] sm:$0xff]
    %v2915 = vld [vmem:[%s6 + $0x48] sm:$0xff]
    %v2916 = vld [vmem:[%s6 + $0x50] sm:$0xff]
    %v2917 = vld [vmem:[%s6 + $0x58] sm:$0xff]
    %v2918 = vld [vmem:[%s6 + $0x60] sm:$0xff]
    %v2919 = vld [vmem:[%s6 + $0x68] sm:$0xff]
    %v2920 = vld [vmem:[%s6 + $0x70] sm:$0xff]
    %v2921 = vld [vmem:[%s6 + $0x78] sm:$0xff]
    %v2922 = vld [vmem:[%s6 + $0x80] sm:$0xff]
    %v2923 = vld [vmem:[%s6 + $0x88] sm:$0xff]
    %v2924 = vld [vmem:[%s6 + $0x90] sm:$0xff]
    %v2925 = vld [vmem:[%s6 + $0x98] sm:$0xff]
    %v2926 = vld [vmem:[%s6 + $0xa0] sm:$0xff]
    %v2927 = vld [vmem:[%s6 + $0xa8] sm:$0xff]
    %v2928 = vld [vmem:[%s6 + $0xb0] sm:$0xff]
    %v2929 = vld [vmem:[%s6 + $0xb8] sm:$0xff]
    %v2930 = vld [vmem:[%s6 + $0xc0] sm:$0xff]
    %v2931 = vld [vmem:[%s6 + $0xc8] sm:$0xff]
    %v2932 = vld [vmem:[%s6 + $0xd0] sm:$0xff]
    %v2933 = vld [vmem:[%s6 + $0xd8] sm:$0xff]
    %v2934 = vld [vmem:[%s6 + $0xe0] sm:$0xff]
    %v2935 = vld [vmem:[%s6 + $0xe8] sm:$0xff]
    %v2936 = vld [vmem:[%s6 + $0xf0] sm:$0xff]
    %v2937 = vld [vmem:[%s6 + $0xf8] sm:$0xff]
    %v2938 = vld [vmem:[%s6 + $0x100] sm:$0xff]
    %v2939 = vld [vmem:[%s6 + $0x108] sm:$0xff]
    %v2940 = vld [vmem:[%s6 + $0x110] sm:$0xff]
    %v2941 = vld [vmem:[%s6 + $0x118] sm:$0xff]
    %v2942 = vld [vmem:[%s6 + $0x120] sm:$0xff]
    %v2943 = vld [vmem:[%s6 + $0x128] sm:$0xff]
    %v2944 = vld [vmem:[%s6 + $0x130] sm:$0xff]
    %v2945 = vld [vmem:[%s6 + $0x138] sm:$0xff]
    %v2946 = vld [vmem:[%s6 + $0x140] sm:$0xff]
    %v2947 = vld [vmem:[%s6 + $0x148] sm:$0xff]
    %v2948 = vld [vmem:[%s6 + $0x150] sm:$0xff]
    %v2949 = vld [vmem:[%s6 + $0x158] sm:$0xff]
    %v2950 = vld [vmem:[%s6 + $0x160] sm:$0xff]
    %v2951 = vld [vmem:[%s6 + $0x168] sm:$0xff]
    %v2952 = vld [vmem:[%s6 + $0x170] sm:$0xff]
    %v2953 = vld [vmem:[%s6 + $0x178] sm:$0xff]
    %v2954 = vld [vmem:[%s6 + $0x180] sm:$0xff]
    %v2955 = vld [vmem:[%s6 + $0x188] sm:$0xff]
    %v2956 = vld [vmem:[%s6 + $0x190] sm:$0xff]
    %v2957 = vld [vmem:[%s6 + $0x198] sm:$0xff]
    %v2958 = vld [vmem:[%s6 + $0x1a0] sm:$0xff]
    %v2959 = vld [vmem:[%s6 + $0x1a8] sm:$0xff]
    %v2960 = vld [vmem:[%s6 + $0x1b0] sm:$0xff]
    %v2961 = vld [vmem:[%s6 + $0x1b8] sm:$0xff]
    %v2962 = vld [vmem:[%s6 + $0x1c0] sm:$0xff]
    %v2963 = vld [vmem:[%s6 + $0x1c8] sm:$0xff]
    %v2964 = vld [vmem:[%s6 + $0x1d0] sm:$0xff]
    %v2965 = vld [vmem:[%s6 + $0x1d8] sm:$0xff]
    %v2966 = vld [vmem:[%s6 + $0x1e0] sm:$0xff]
    %v2967 = vld [vmem:[%s6 + $0x1e8] sm:$0xff]
    %v2968 = vld [vmem:[%s6 + $0x1f0] sm:$0xff]
    %v2969 = vld [vmem:[%s6 + $0x1f8] sm:$0xff]
    %v2970 = vld [vmem:[%s6 + $0x200] sm:$0xff]
    %v2971 = vld [vmem:[%s6 + $0x208] sm:$0xff]
    %v2972 = vld [vmem:[%s6 + $0x210] sm:$0xff]
    %v2973 = vld [vmem:[%s6 + $0x218] sm:$0xff]
    %v2974 = vld [vmem:[%s6 + $0x220] sm:$0xff]
    %v2975 = vld [vmem:[%s6 + $0x228] sm:$0xff]
    %v2976 = vld [vmem:[%s6 + $0x230] sm:$0xff]
    %v2977 = vld [vmem:[%s6 + $0x238] sm:$0xff]
    %v2978 = vld [vmem:[%s6 + $0x240] sm:$0xff]
    %v2979 = vld [vmem:[%s6 + $0x248] sm:$0xff]
    %v2980 = vld [vmem:[%s6 + $0x250] sm:$0xff]
    %v2981 = vld [vmem:[%s6 + $0x258] sm:$0xff]
    %v2982 = vld [vmem:[%s6 + $0x260] sm:$0xff]
    %v2983 = vld [vmem:[%s6 + $0x268] sm:$0xff]
    %v2984 = vld [vmem:[%s6 + $0x270] sm:$0xff]
    %v2985 = vld [vmem:[%s6 + $0x278] sm:$0xff]
    %v2986 = vld [vmem:[%s6 + $0x280] sm:$0xff]
    %v2987 = vld [vmem:[%s6 + $0x288] sm:$0xff]
    %v2988 = vld [vmem:[%s6 + $0x290] sm:$0xff]
    %v2989 = vld [vmem:[%s6 + $0x298] sm:$0xff]
    %v2990 = vld [vmem:[%s6 + $0x2a0] sm:$0xff]
    %v2991 = vld [vmem:[%s6 + $0x2a8] sm:$0xff]
    %v2992 = vld [vmem:[%s6 + $0x2b0] sm:$0xff]
    %v2993 = vld [vmem:[%s6 + $0x2b8] sm:$0xff]
    %v2994 = vld [vmem:[%s6 + $0x2c0] sm:$0xff]
    %v2995 = vld [vmem:[%s6 + $0x2c8] sm:$0xff]
    %v2996 = vld [vmem:[%s6 + $0x2d0] sm:$0xff]
    %v2997 = vld [vmem:[%s6 + $0x2d8] sm:$0xff]
    %v2998 = vld [vmem:[%s6 + $0x2e0] sm:$0xff]
    %v2999 = vld [vmem:[%s6 + $0x2e8] sm:$0xff]
    %v3000 = vld [vmem:[%s6 + $0x2f0] sm:$0xff]
    %v3001 = vld [vmem:[%s6 + $0x2f8] sm:$0xff]
    %v3002 = vld [vmem:[%s7] sm:$0x1]
    %v3004 = vlaneseq
    %v3005 = vshrl.u32 %v3004, 7
    %v3006 = vsub.s32 0, %v3005
    %v3007 = vrot.slane %v3002, %v3006
    %3009 = vmatprep.subr.mxu0 0.0
    %3010 = vmatpush1.msra.mxu0 %v2906
    %3011 = vmatprep.subr.mxu0 0.0
    %3012 = vmatpush1.msra.mxu0 %v2907
    %3013 = vmatprep.subr.mxu0 0.0
    %3014 = vmatpush1.msra.mxu0 %v2908
    %3015 = vmatprep.subr.mxu0 0.0
    %3016 = vmatpush1.msra.mxu0 %v2909
    %3017 = vmatprep.subr.mxu0 0.0
    %3018 = vmatpush1.msra.mxu0 %v2910
    %3019 = vmatprep.subr.mxu0 0.0
    %3020 = vmatpush1.msra.mxu0 %v2911
    %3021 = vmatprep.subr.mxu0 0.0
    %3022 = vmatpush1.msra.mxu0 %v2912
    %3023 = vmatprep.subr.mxu0 0.0
    %3024 = vmatpush1.msra.mxu0 %v2913
    %3025 = vmatprep.subr.mxu0 0.0
    %3026 = vmatpush1.msra.mxu0 %v2914
    %3027 = vmatprep.subr.mxu0 0.0
    %3028 = vmatpush1.msra.mxu0 %v2915
    %3029 = vmatprep.subr.mxu0 0.0
    %3030 = vmatpush1.msra.mxu0 %v2916
    %3031 = vmatprep.subr.mxu0 0.0
    %3032 = vmatpush1.msra.mxu0 %v2917
    %3033 = vmatprep.subr.mxu0 0.0
    %3034 = vmatpush1.msra.mxu0 %v2918
    %3035 = vmatprep.subr.mxu0 0.0
    %3036 = vmatpush1.msra.mxu0 %v2919
    %3037 = vmatprep.subr.mxu0 0.0
    %3038 = vmatpush1.msra.mxu0 %v2920
    %3039 = vmatprep.subr.mxu0 0.0
    %3040 = vmatpush1.msra.mxu0 %v2921
    %3041 = vmatprep.subr.mxu0 0.0
    %3042 = vmatpush1.msra.mxu0 %v2922
    %3043 = vmatprep.subr.mxu0 0.0
    %3044 = vmatpush1.msra.mxu0 %v2923
    %3045 = vmatprep.subr.mxu0 0.0
    %3046 = vmatpush1.msra.mxu0 %v2924
    %3047 = vmatprep.subr.mxu0 0.0
    %3048 = vmatpush1.msra.mxu0 %v2925
    %3049 = vmatprep.subr.mxu0 0.0
    %3050 = vmatpush1.msra.mxu0 %v2926
    %3051 = vmatprep.subr.mxu0 0.0
    %3052 = vmatpush1.msra.mxu0 %v2927
    %3053 = vmatprep.subr.mxu0 0.0
    %3054 = vmatpush1.msra.mxu0 %v2928
    %3055 = vmatprep.subr.mxu0 0.0
    %3056 = vmatpush1.msra.mxu0 %v2929
    %3057 = vmatprep.subr.mxu0 0.0
    %3058 = vmatpush1.msra.mxu0 %v2930
    %3059 = vmatprep.subr.mxu0 0.0
    %3060 = vmatpush1.msra.mxu0 %v2931
    %3061 = vmatprep.subr.mxu0 0.0
    %3062 = vmatpush1.msra.mxu0 %v2932
    %3063 = vmatprep.subr.mxu0 0.0
    %3064 = vmatpush1.msra.mxu0 %v2933
    %3065 = vmatprep.subr.mxu0 0.0
    %3066 = vmatpush1.msra.mxu0 %v2934
    %3067 = vmatprep.subr.mxu0 0.0
    %3068 = vmatpush1.msra.mxu0 %v2935
    %3069 = vmatprep.subr.mxu0 0.0
    %3070 = vmatpush1.msra.mxu0 %v2936
    %3071 = vmatprep.subr.mxu0 0.0
    %3072 = vmatpush1.msra.mxu0 %v2937
    %3073 = vmatprep.mubr.f32.mxu0 %v2877
    %3074 = vmatmul.mubr.f32.gmra.mrb[0].mxu0 %v2876
    %v3075 = vpop.f32.mrb[0].mxu0
    %v3076 = vadd.f32 %v3007, %v3075
    %v3077 = vpop.f32.mrb[0].mxu0
    %3078 = vdwg.mxu0
    %3079 = vmatprep.subr.mxu0 0.0
    %3080 = vmatpush1.msra.mxu0 %v2938
    %3081 = vmatprep.subr.mxu0 0.0
    %3082 = vmatpush1.msra.mxu0 %v2939
    %3083 = vmatprep.subr.mxu0 0.0
    %3084 = vmatpush1.msra.mxu0 %v2940
    %3085 = vmatprep.subr.mxu0 0.0
    %3086 = vmatpush1.msra.mxu0 %v2941
    %3087 = vmatprep.subr.mxu0 0.0
    %3088 = vmatpush1.msra.mxu0 %v2942
    %3089 = vmatprep.subr.mxu0 0.0
    %3090 = vmatpush1.msra.mxu0 %v2943
    %3091 = vmatprep.subr.mxu0 0.0
    %3092 = vmatpush1.msra.mxu0 %v2944
    %3093 = vmatprep.subr.mxu0 0.0
    %3094 = vmatpush1.msra.mxu0 %v2945
    %3095 = vmatprep.subr.mxu0 0.0
    %3096 = vmatpush1.msra.mxu0 %v2946
    %3097 = vmatprep.subr.mxu0 0.0
    %3098 = vmatpush1.msra.mxu0 %v2947
    %3099 = vmatprep.subr.mxu0 0.0
    %3100 = vmatpush1.msra.mxu0 %v2948
    %3101 = vmatprep.subr.mxu0 0.0
    %3102 = vmatpush1.msra.mxu0 %v2949
    %3103 = vmatprep.subr.mxu0 0.0
    %3104 = vmatpush1.msra.mxu0 %v2950
    %3105 = vmatprep.subr.mxu0 0.0
    %3106 = vmatpush1.msra.mxu0 %v2951
    %3107 = vmatprep.subr.mxu0 0.0
    %3108 = vmatpush1.msra.mxu0 %v2952
    %3109 = vmatprep.subr.mxu0 0.0
    %3110 = vmatpush1.msra.mxu0 %v2953
    %3111 = vmatprep.subr.mxu0 0.0
    %3112 = vmatpush1.msra.mxu0 %v2954
    %3113 = vmatprep.subr.mxu0 0.0
    %3114 = vmatpush1.msra.mxu0 %v2955
    %3115 = vmatprep.subr.mxu0 0.0
    %3116 = vmatpush1.msra.mxu0 %v2956
    %3117 = vmatprep.subr.mxu0 0.0
    %3118 = vmatpush1.msra.mxu0 %v2957
    %3119 = vmatprep.subr.mxu0 0.0
    %3120 = vmatpush1.msra.mxu0 %v2958
    %3121 = vmatprep.subr.mxu0 0.0
    %3122 = vmatpush1.msra.mxu0 %v2959
    %3123 = vmatprep.subr.mxu0 0.0
    %3124 = vmatpush1.msra.mxu0 %v2960
    %3125 = vmatprep.subr.mxu0 0.0
    %3126 = vmatpush1.msra.mxu0 %v2961
    %3127 = vmatprep.subr.mxu0 0.0
    %3128 = vmatpush1.msra.mxu0 %v2962
    %3129 = vmatprep.subr.mxu0 0.0
    %3130 = vmatpush1.msra.mxu0 %v2963
    %3131 = vmatprep.subr.mxu0 0.0
    %3132 = vmatpush1.msra.mxu0 %v2964
    %3133 = vmatprep.subr.mxu0 0.0
    %3134 = vmatpush1.msra.mxu0 %v2965
    %3135 = vmatprep.subr.mxu0 0.0
    %3136 = vmatpush1.msra.mxu0 %v2966
    %3137 = vmatprep.subr.mxu0 0.0
    %3138 = vmatpush1.msra.mxu0 %v2967
    %3139 = vmatprep.subr.mxu0 0.0
    %3140 = vmatpush1.msra.mxu0 %v2968
    %3141 = vmatprep.subr.mxu0 0.0
    %3142 = vmatpush1.msra.mxu0 %v2969
    %3143 = vmatprep.mubr.f32.mxu0 %v2891
    %3144 = vmatmul.mubr.f32.gmra.mrb[0].mxu0 %v2890
    %v3145 = vpop.f32.mrb[0].mxu0
    %v3146 = vadd.f32 %v3076, %v3145
    %v3147 = vpop.f32.mrb[0].mxu0
    %3148 = vdwg.mxu0
    %3149 = vmatprep.subr.mxu0 0.0
    %3150 = vmatpush1.msra.mxu0 %v2970
    %3151 = vmatprep.subr.mxu0 0.0
    %3152 = vmatpush1.msra.mxu0 %v2971
    %3153 = vmatprep.subr.mxu0 0.0
    %3154 = vmatpush1.msra.mxu0 %v2972
    %3155 = vmatprep.subr.mxu0 0.0
    %3156 = vmatpush1.msra.mxu0 %v2973
    %3157 = vmatprep.subr.mxu0 0.0
    %3158 = vmatpush1.msra.mxu0 %v2974
    %3159 = vmatprep.subr.mxu0 0.0
    %3160 = vmatpush1.msra.mxu0 %v2975
    %3161 = vmatprep.subr.mxu0 0.0
    %3162 = vmatpush1.msra.mxu0 %v2976
    %3163 = vmatprep.subr.mxu0 0.0
    %3164 = vmatpush1.msra.mxu0 %v2977
    %3165 = vmatprep.subr.mxu0 0.0
    %3166 = vmatpush1.msra.mxu0 %v2978
    %3167 = vmatprep.subr.mxu0 0.0
    %3168 = vmatpush1.msra.mxu0 %v2979
    %3169 = vmatprep.subr.mxu0 0.0
    %3170 = vmatpush1.msra.mxu0 %v2980
    %3171 = vmatprep.subr.mxu0 0.0
    %3172 = vmatpush1.msra.mxu0 %v2981
    %3173 = vmatprep.subr.mxu0 0.0
    %3174 = vmatpush1.msra.mxu0 %v2982
    %3175 = vmatprep.subr.mxu0 0.0
    %3176 = vmatpush1.msra.mxu0 %v2983
    %3177 = vmatprep.subr.mxu0 0.0
    %3178 = vmatpush1.msra.mxu0 %v2984
    %3179 = vmatprep.subr.mxu0 0.0
    %3180 = vmatpush1.msra.mxu0 %v2985
    %3181 = vmatprep.subr.mxu0 0.0
    %3182 = vmatpush1.msra.mxu0 %v2986
    %3183 = vmatprep.subr.mxu0 0.0
    %3184 = vmatpush1.msra.mxu0 %v2987
    %3185 = vmatprep.subr.mxu0 0.0
    %3186 = vmatpush1.msra.mxu0 %v2988
    %3187 = vmatprep.subr.mxu0 0.0
    %3188 = vmatpush1.msra.mxu0 %v2989
    %3189 = vmatprep.subr.mxu0 0.0
    %3190 = vmatpush1.msra.mxu0 %v2990
    %3191 = vmatprep.subr.mxu0 0.0
    %3192 = vmatpush1.msra.mxu0 %v2991
    %3193 = vmatprep.subr.mxu0 0.0
    %3194 = vmatpush1.msra.mxu0 %v2992
    %3195 = vmatprep.subr.mxu0 0.0
    %3196 = vmatpush1.msra.mxu0 %v2993
    %3197 = vmatprep.subr.mxu0 0.0
    %3198 = vmatpush1.msra.mxu0 %v2994
    %3199 = vmatprep.subr.mxu0 0.0
    %3200 = vmatpush1.msra.mxu0 %v2995
    %3201 = vmatprep.subr.mxu0 0.0
    %3202 = vmatpush1.msra.mxu0 %v2996
    %3203 = vmatprep.subr.mxu0 0.0
    %3204 = vmatpush1.msra.mxu0 %v2997
    %3205 = vmatprep.subr.mxu0 0.0
    %3206 = vmatpush1.msra.mxu0 %v2998
    %3207 = vmatprep.subr.mxu0 0.0
    %3208 = vmatpush1.msra.mxu0 %v2999
    %3209 = vmatprep.subr.mxu0 0.0
    %3210 = vmatpush1.msra.mxu0 %v3000
    %3211 = vmatprep.subr.mxu0 0.0
    %3212 = vmatpush1.msra.mxu0 %v3001
    %3213 = vmatprep.mubr.f32.mxu0 %v2905
    %3214 = vmatmul.mubr.f32.gmra.mrb[0].mxu0 %v2904
    %v3215 = vpop.f32.mrb[0].mxu0
    %v3216 = vadd.f32 %v3146, %v3215
    %v3217 = vpop.f32.mrb[0].mxu0
    %3218 = vdwg.mxu0
    %3219 = vst.msk [vmem:[#allocation10] sm:$0xff] %vm211, %v3216
    // Predicated region
    $region50: #{tpu_custom_call.1} parent=1 // pred_check
      _
    $region51: #{tpu_custom_call.1} parent=1 // pred_check_branch
      %3221 = sbr.rel (0) target = $region53
    $region52: #{tpu_custom_call.1} parent=1 // pred_region
      %s3223 = ssub.s32 128, 128
      %3224 = vsyncadd [#allocation3], %s3223
      %s3226 = sshll.u32 [#allocation10], 4
      %s3227 = int_to_ptr.vmem [resolvable:$true] %s3226
      %3229 = dma.vmem_to_hbm [thread:$0]  %s3227, 128, %s8, [#allocation3]
    $region53: #{tpu_custom_call.1} parent=1 // pred_fallthru
      _
    // Predicated region
    $region54: #{tpu_custom_call.1} parent=1 // pred_check
      _
    $region55: #{tpu_custom_call.1} parent=1 // pred_check_branch
      %3231 = sbr.rel (0) target = $region57
    $region56: #{tpu_custom_call.1} parent=1 // pred_region
      %3232 = dma.done [#allocation3], 128
    $region57: #{tpu_custom_call.1} parent=1 // pred_fallthru
      _
    %3233 = vsyncpa [#allocation3], 1
    %3234 = vsyncpa [#allocation4], 1
    %3235 = vsyncpa [#allocation6], 1
    %3236 = vsyncpa [#allocation9], 1

</llo_original>
